<compile_context>
chip_gen: v5e
topology: v5e:2x2
jax: 0.10.0
libtpu: 0.0.40
codegen_flags: <defaults>
</compile_context>

<pallas_src>
import functools
import math

import jax
import jax.numpy as jnp
import numpy as np
from jax import lax
from jax.experimental import pallas as pl
from jax.experimental.pallas import tpu as pltpu


# ----------------------------- in-kernel helpers -----------------------------

def _erf_poly(x):
    """erf approximation (Abramowitz & Stegun 7.1.26), |err| < 1.5e-7."""
    a1, a2, a3, a4, a5 = (0.254829592, -0.284496736, 1.421413741,
                          -1.453152027, 1.061405429)
    p = 0.3275911
    ax = jnp.abs(x)
    t = 1.0 / (1.0 + p * ax)
    poly = ((((a5 * t + a4) * t + a3) * t + a2) * t + a1) * t
    y = 1.0 - poly * jnp.exp(-ax * ax)
    return jnp.where(x >= 0, y, -y)


def _gelu(x):
    """Exact (erf-based) gelu, matching FeedForward.gelu."""
    return 0.5 * x * (1.0 + _erf_poly(x * (1.0 / math.sqrt(2.0))))


def _layer_norm(y, gamma, beta, eps):
    mu = jnp.mean(y, axis=-1, keepdims=True)
    d = y - mu
    var = jnp.mean(d * d, axis=-1, keepdims=True)
    return d * lax.rsqrt(var + eps) * gamma + beta


# --------------------------------- kernel ------------------------------------

def encoder_kernel(x_ref, mask_ref,
                   wqkv_ref, bqkv_ref, wo_ref, bo_ref,
                   ln1_g_ref, ln1_b_ref,
                   w1_ref, b1_ref, w2_ref, b2_ref,
                   ln2_g_ref, ln2_b_ref,
                   o_ref, *, n_layers, n_heads, eps):
    """One batch tile (TB sequences) through all transformer layers.

    x_ref:    [TB, S, H]
    mask_ref: [TB, 1, S, S]          (additive attention mask)
    wqkv:     [L, H, 3H]   bqkv: [L, 1, 3H]
    wo:       [L, H, H]    bo:   [L, 1, H]
    w1:       [L, H, inner]  b1: [L, 1, inner]
    w2:       [L, inner, H]  b2: [L, 1, H]
    ln*_g/b:  [L, 1, H]
    o_ref:    [L, TB, S, H]          (per-layer outputs)
    """
    x = x_ref[...]                                  # [TB, S, H], input dtype
    TB, S, H = x.shape
    dh = H // n_heads
    inv_sqrt_dh = 1.0 / math.sqrt(dh)
    dtype = x.dtype

    mask = mask_ref[:, 0].astype(jnp.float32)       # [TB, S, S]

    xr = x.reshape(TB * S, H)                       # lane-dense row view
    for l in range(n_layers):                       # layers are sequential; L is small
        # ---------------- multi-head self-attention ----------------
        # Fused QKV projection: [TB*S, H] @ [H, 3H]  (lane-dense, one MXU pass)
        qkv = jnp.dot(xr, wqkv_ref[l],
                      preferred_element_type=jnp.float32) + bqkv_ref[l]
        qkv = qkv.reshape(TB, S, 3 * H)             # [TB, S, 3H] f32

        ctx_heads = []
        for h in range(n_heads):                    # static unroll, n_heads small
            q_h = qkv[:, :, h * dh:(h + 1) * dh]                    # [TB, S, dh]
            k_h = qkv[:, :, H + h * dh:H + (h + 1) * dh]
            v_h = qkv[:, :, 2 * H + h * dh:2 * H + (h + 1) * dh]

            scores = jnp.einsum('bqd,bkd->bqk', q_h, k_h,
                                preferred_element_type=jnp.float32)
            scores = scores * inv_sqrt_dh + mask

            m = jnp.max(scores, axis=-1, keepdims=True)
            e = jnp.exp(scores - m)
            denom = jnp.sum(e, axis=-1, keepdims=True)
            probs = e * pl.reciprocal(denom, approx=True)

            ctx_heads.append(jnp.einsum('bqk,bkd->bqd', probs, v_h,
                                        preferred_element_type=jnp.float32))

        # Lane-concat of head contexts (XLU) + one K=H output projection.
        ctx = jnp.concatenate(ctx_heads, axis=-1).reshape(TB * S, H)
        attn = jnp.dot(ctx.astype(dtype), wo_ref[l],
                       preferred_element_type=jnp.float32) + bo_ref[l]
        y = _layer_norm(attn + xr.astype(jnp.float32),
                        ln1_g_ref[l], ln1_b_ref[l], eps)            # [TB*S, H] f32

        # ---------------- point-wise feed-forward ----------------
        h1 = jnp.dot(y.astype(dtype), w1_ref[l],
                     preferred_element_type=jnp.float32) + b1_ref[l]
        h1 = _gelu(h1)
        h2 = jnp.dot(h1.astype(dtype), w2_ref[l],
                     preferred_element_type=jnp.float32) + b2_ref[l]
        out = _layer_norm(h2 + y, ln2_g_ref[l], ln2_b_ref[l], eps)

        o_ref[l] = out.reshape(TB, S, H).astype(o_ref.dtype)
        xr = out.astype(dtype)                       # feed next layer (stays in VMEM)


# --------------------------------- wrappers -----------------------------------

def _full_spec(a):
    """Grid-invariant BlockSpec: whole array resident, constant index_map."""
    n = a.ndim
    return pl.BlockSpec(a.shape, lambda b: (0,) * n)


def _choose_batch_tile(B):
    """Pick TB | B, prefer grid >= 2 (megacore / v7x dual-TC) and <= 32 rows-ish."""
    for tb in (32, 16, 8, 4, 2, 1):
        if B % tb == 0 and B // tb >= 2:
            return tb
    return B


def transformer_encoder(x, mask, packed, *, n_heads, eps,
                        output_all_encoded_layers=True, batch_tile=None):
    """Mirrors TransformerEncoder.forward (eval mode).

    x: [B, S, H]; mask: [B, 1, S, S] additive; packed: dict of layer-stacked params.
    Returns a list of per-layer outputs (or only the last).
    """
    B, S, H = x.shape
    L = packed["wqkv"].shape[0]
    TB = batch_tile if batch_tile is not None else _choose_batch_tile(B)
    assert B % TB == 0, f"batch {B} must be divisible by batch tile {TB}"

    kernel = functools.partial(encoder_kernel, n_layers=L, n_heads=n_heads, eps=eps)

    weight_names = ["wqkv", "bqkv", "wo", "bo", "ln1_g", "ln1_b",
                    "w1", "b1", "w2", "b2", "ln2_g", "ln2_b"]
    weights = [packed[k] for k in weight_names]

    in_specs = [
        pl.BlockSpec((TB, S, H), lambda b: (b, 0, 0)),
        pl.BlockSpec((TB, 1, S, S), lambda b: (b, 0, 0, 0)),
    ] + [_full_spec(w) for w in weights]

    out = pl.pallas_call(
        kernel,
        out_shape=jax.ShapeDtypeStruct((L, B, S, H), x.dtype),
        grid_spec=pltpu.PrefetchScalarGridSpec(
            num_scalar_prefetch=0,
            grid=(B // TB,),
            in_specs=in_specs,
            out_specs=pl.BlockSpec((L, TB, S, H), lambda b: (0, b, 0, 0)),
        ),
        compiler_params=pltpu.CompilerParams(
            dimension_semantics=("parallel",)),
    )(x, mask, *weights)

    if output_all_encoded_layers:
        return [out[l] for l in range(L)]
    return [out[L - 1]]


# ----------------------------- pure-JAX reference -----------------------------

def _layer_norm_ref(y, gamma, beta, eps):
    mu = jnp.mean(y, axis=-1, keepdims=True)
    var = jnp.mean((y - mu) ** 2, axis=-1, keepdims=True)
    return (y - mu) * lax.rsqrt(var + eps) * gamma + beta


def transformer_encoder_ref(x, mask, packed, *, n_heads, eps,
                            output_all_encoded_layers=True):
    """Mirrors the PyTorch TransformerEncoder forward (eval mode)."""
    B, S, H = x.shape
    L = packed["wqkv"].shape[0]
    dh = H // n_heads

    outs = []
    h = x
    for l in range(L):
        qkv = h @ packed["wqkv"][l] + packed["bqkv"][l]
        q, k, v = qkv[..., :H], qkv[..., H:2 * H], qkv[..., 2 * H:]

        def split_heads(t):
            return t.reshape(B, S, n_heads, dh).transpose(0, 2, 1, 3)

        qh, kh, vh = split_heads(q), split_heads(k), split_heads(v)
        scores = jnp.einsum("bhqd,bhkd->bhqk", qh, kh) / math.sqrt(dh) + mask
        probs = jax.nn.softmax(scores, axis=-1)
        ctx = jnp.einsum("bhqk,bhkd->bhqd", probs, vh)
        ctx = ctx.transpose(0, 2, 1, 3).reshape(B, S, H)

        attn = ctx @ packed["wo"][l] + packed["bo"][l]
        y = _layer_norm_ref(attn + h, packed["ln1_g"][l], packed["ln1_b"][l], eps)

        h1 = y @ packed["w1"][l] + packed["b1"][l]
        h1 = h1 * 0.5 * (1.0 + lax.erf(h1 / math.sqrt(2.0)))        # exact gelu
        h2 = h1 @ packed["w2"][l] + packed["b2"][l]
        h = _layer_norm_ref(h2 + y, packed["ln2_g"][l], packed["ln2_b"][l], eps)
        outs.append(h)

    if output_all_encoded_layers:
        return outs
    return [outs[-1]]


# ----------------------------------- demo --------------------------------------

if __name__ == "__main__":
    # Module defaults: n_layers=2, n_heads=2, hidden_size=64, inner_size=256,
    # hidden_act='gelu', layer_norm_eps=1e-12.  Small demo sequence/batch.
    n_layers, n_heads = 2, 2
    hidden_size, inner_size = 64, 256
    layer_norm_eps = 1e-12
    B, S = 8, 8                         # B=8 -> batch tile 4, grid of 2 (megacore)

    key = jax.random.PRNGKey(0)
    key, kx = jax.random.split(key)
    x = jax.random.normal(kx, (B, S, hidden_size), dtype=jnp.float32)

    # Additive attention mask [B, 1, S, S]: 0 -> attend, -10000 -> masked (causal here).
    causal = jnp.tril(jnp.ones((S, S), dtype=jnp.float32))
    mask = jnp.tile(((1.0 - causal) * -10000.0)[None, None, :, :], (B, 1, 1, 1))

    def init_layer(k):
        ks = jax.random.split(k, 16)
        s = 0.1
        f32 = jnp.float32
        wq = s * jax.random.normal(ks[0], (hidden_size, hidden_size), f32)
        bq = s * jax.random.normal(ks[1], (1, hidden_size), f32)
        wk = s * jax.random.normal(ks[2], (hidden_size, hidden_size), f32)
        bk = s * jax.random.normal(ks[3], (1, hidden_size), f32)
        wv = s * jax.random.normal(ks[4], (hidden_size, hidden_size), f32)
        bv = s * jax.random.normal(ks[5], (1, hidden_size), f32)
        return {
            # Fused QKV (lane-dense [H, 3H] projection)
            "wqkv": jnp.concatenate([wq, wk, wv], axis=-1),
            "bqkv": jnp.concatenate([bq, bk, bv], axis=-1),
            "wo": s * jax.random.normal(ks[6], (hidden_size, hidden_size), f32),
            "bo": s * jax.random.normal(ks[7], (1, hidden_size), f32),
            "ln1_g": 1.0 + 0.1 * jax.random.normal(ks[8], (1, hidden_size), f32),
            "ln1_b": 0.1 * jax.random.normal(ks[9], (1, hidden_size), f32),
            "w1": s * jax.random.normal(ks[10], (hidden_size, inner_size), f32),
            "b1": s * jax.random.normal(ks[11], (1, inner_size), f32),
            "w2": s * jax.random.normal(ks[12], (inner_size, hidden_size), f32),
            "b2": s * jax.random.normal(ks[13], (1, hidden_size), f32),
            "ln2_g": 1.0 + 0.1 * jax.random.normal(ks[14], (1, hidden_size), f32),
            "ln2_b": 0.1 * jax.random.normal(ks[15], (1, hidden_size), f32),
        }

    layers = [init_layer(k) for k in jax.random.split(key, n_layers)]
    # Stack per-layer params with a leading layer axis (stays VMEM-resident).
    packed = {k: jnp.stack([p[k] for p in layers], axis=0) for k in layers[0]}

    outs = transformer_encoder(x, mask, packed, n_heads=n_heads,
                               eps=layer_norm_eps, output_all_encoded_layers=True)
    outs = jax.block_until_ready(outs)

    refs = transformer_encoder_ref(x, mask, packed, n_heads=n_heads,
                                   eps=layer_norm_eps,
                                   output_all_encoded_layers=True)

    for o, r in zip(outs, refs):
        np.testing.assert_allclose(np.asarray(o), np.asarray(r),
                                   rtol=2e-2, atol=2e-2)
    print("KERNEL_OK")
</pallas_src>

<mosaic_0001>
module attributes {stable_mosaic.version = 11 : i64} {
  func.func @encoder_kernel(%arg0: i32, %arg1: memref<4x8x64xf32, #tpu.memory_space<vmem>>, %arg2: memref<4x1x8x8xf32, #tpu.memory_space<vmem>>, %arg3: memref<2x64x192xf32, #tpu.memory_space<vmem>>, %arg4: memref<2x1x192xf32, #tpu.memory_space<vmem>>, %arg5: memref<2x64x64xf32, #tpu.memory_space<vmem>>, %arg6: memref<2x1x64xf32, #tpu.memory_space<vmem>>, %arg7: memref<2x1x64xf32, #tpu.memory_space<vmem>>, %arg8: memref<2x1x64xf32, #tpu.memory_space<vmem>>, %arg9: memref<2x64x256xf32, #tpu.memory_space<vmem>>, %arg10: memref<2x1x256xf32, #tpu.memory_space<vmem>>, %arg11: memref<2x256x64xf32, #tpu.memory_space<vmem>>, %arg12: memref<2x1x64xf32, #tpu.memory_space<vmem>>, %arg13: memref<2x1x64xf32, #tpu.memory_space<vmem>>, %arg14: memref<2x1x64xf32, #tpu.memory_space<vmem>>, %arg15: memref<2x4x8x64xf32, #tpu.memory_space<vmem>>) attributes {dimension_semantics = [#tpu.dimension_semantics<parallel>], iteration_bounds = array<i64: 2>, scalar_prefetch = 0 : i64, scratch_operands = 0 : i64, tpu.core_type = #tpu.core_type<tc>, window_params = [{transform_indices = @transform_0, window_bounds = array<i64: 4, 8, 64>}, {transform_indices = @transform_1, window_bounds = array<i64: 4, 1, 8, 8>}, {pipeline_mode = #tpu.pipeline_mode<synchronous>, transform_indices = @transform_2, window_bounds = array<i64: 2, 64, 192>}, {pipeline_mode = #tpu.pipeline_mode<synchronous>, transform_indices = @transform_3, window_bounds = array<i64: 2, 1, 192>}, {pipeline_mode = #tpu.pipeline_mode<synchronous>, transform_indices = @transform_4, window_bounds = array<i64: 2, 64, 64>}, {pipeline_mode = #tpu.pipeline_mode<synchronous>, transform_indices = @transform_5, window_bounds = array<i64: 2, 1, 64>}, {pipeline_mode = #tpu.pipeline_mode<synchronous>, transform_indices = @transform_6, window_bounds = array<i64: 2, 1, 64>}, {pipeline_mode = #tpu.pipeline_mode<synchronous>, transform_indices = @transform_7, window_bounds = array<i64: 2, 1, 64>}, {pipeline_mode = #tpu.pipeline_mode<synchronous>, transform_indices = @transform_8, window_bounds = array<i64: 2, 64, 256>}, {pipeline_mode = #tpu.pipeline_mode<synchronous>, transform_indices = @transform_9, window_bounds = array<i64: 2, 1, 256>}, {pipeline_mode = #tpu.pipeline_mode<synchronous>, transform_indices = @transform_10, window_bounds = array<i64: 2, 256, 64>}, {pipeline_mode = #tpu.pipeline_mode<synchronous>, transform_indices = @transform_11, window_bounds = array<i64: 2, 1, 64>}, {pipeline_mode = #tpu.pipeline_mode<synchronous>, transform_indices = @transform_12, window_bounds = array<i64: 2, 1, 64>}, {pipeline_mode = #tpu.pipeline_mode<synchronous>, transform_indices = @transform_13, window_bounds = array<i64: 2, 1, 64>}, {transform_indices = @transform_14, window_bounds = array<i64: 2, 4, 8, 64>}]} {
    %c0 = arith.constant 0 : index
    %c0_0 = arith.constant 0 : index
    %c0_1 = arith.constant 0 : index
    %0 = vector.load %arg1[%c0, %c0_0, %c0_1] : memref<4x8x64xf32, #tpu.memory_space<vmem>>, vector<4x8x64xf32>
    %c0_2 = arith.constant 0 : index
    %c0_3 = arith.constant 0 : index
    %c0_4 = arith.constant 0 : index
    %c0_5 = arith.constant 0 : index
    %1 = vector.load %arg2[%c0_2, %c0_3, %c0_4, %c0_5] : memref<4x1x8x8xf32, #tpu.memory_space<vmem>>, vector<4x1x8x8xf32>
    %2 = vector.shape_cast %1 : vector<4x1x8x8xf32> to vector<4x8x8xf32>
    %3 = vector.shape_cast %0 : vector<4x8x64xf32> to vector<32x64xf32>
    %c0_6 = arith.constant 0 : index
    %c0_7 = arith.constant 0 : index
    %c0_8 = arith.constant 0 : index
    %4 = vector.load %arg3[%c0_6, %c0_7, %c0_8] : memref<2x64x192xf32, #tpu.memory_space<vmem>>, vector<1x64x192xf32>
    %5 = vector.shape_cast %4 : vector<1x64x192xf32> to vector<64x192xf32>
    %cst = arith.constant dense<0.000000e+00> : vector<32x192xf32>
    %6 = tpu.matmul %3, %5, %cst {dimension_numbers = #tpu.dot_dimension_numbers<[1], [0], [0], [1], [0, 0, 1, 1], [], []>} : vector<32x64xf32>, vector<64x192xf32>, vector<32x192xf32> -> vector<32x192xf32>
    %c0_9 = arith.constant 0 : index
    %c0_10 = arith.constant 0 : index
    %c0_11 = arith.constant 0 : index
    %7 = vector.load %arg4[%c0_9, %c0_10, %c0_11] : memref<2x1x192xf32, #tpu.memory_space<vmem>>, vector<1x1x192xf32>
    %8 = vector.shape_cast %7 : vector<1x1x192xf32> to vector<1x192xf32>
    %9 = vector.broadcast %8 : vector<1x192xf32> to vector<32x192xf32>
    %10 = arith.addf %6, %9 : vector<32x192xf32>
    %11 = vector.shape_cast %10 : vector<32x192xf32> to vector<4x8x192xf32>
    %12 = vector.extract_strided_slice %11 {offsets = [0, 0, 0], sizes = [4, 8, 32], strides = [1, 1, 1]} : vector<4x8x192xf32> to vector<4x8x32xf32>
    %13 = vector.extract_strided_slice %11 {offsets = [0, 0, 64], sizes = [4, 8, 32], strides = [1, 1, 1]} : vector<4x8x192xf32> to vector<4x8x32xf32>
    %14 = vector.extract_strided_slice %11 {offsets = [0, 0, 128], sizes = [4, 8, 32], strides = [1, 1, 1]} : vector<4x8x192xf32> to vector<4x8x32xf32>
    "tpu.trace_start"() <{level = 10 : i32, message = "bqd,bkd->bqk"}> : () -> ()
    %cst_12 = arith.constant dense<0.000000e+00> : vector<4x8x8xf32>
    %15 = tpu.matmul %12, %13, %cst_12 {dimension_numbers = #tpu.dot_dimension_numbers<[2], [2], [1], [1], [0, 0, 0, 1, 1, 1], [0], [0]>} : vector<4x8x32xf32>, vector<4x8x32xf32>, vector<4x8x8xf32> -> vector<4x8x8xf32>
    "tpu.trace_stop"() : () -> ()
    %cst_13 = arith.constant 0.176776692 : f32
    %16 = vector.broadcast %cst_13 : f32 to vector<4x8x8xf32>
    %17 = arith.mulf %15, %16 : vector<4x8x8xf32>
    %18 = arith.addf %17, %2 : vector<4x8x8xf32>
    %cst_14 = arith.constant dense<0xFF800000> : vector<4x8xf32>
    %19 = vector.multi_reduction <maximumf>, %18, %cst_14 [2] : vector<4x8x8xf32> to vector<4x8xf32>
    %20 = vector.shape_cast %19 : vector<4x8xf32> to vector<4x8x1xf32>
    %21 = vector.broadcast %20 : vector<4x8x1xf32> to vector<4x8x8xf32>
    %22 = arith.subf %18, %21 : vector<4x8x8xf32>
    %23 = math.exp %22 : vector<4x8x8xf32>
    %cst_15 = arith.constant dense<0.000000e+00> : vector<4x8xf32>
    %24 = vector.multi_reduction <add>, %23, %cst_15 [2] : vector<4x8x8xf32> to vector<4x8xf32>
    %25 = vector.shape_cast %24 : vector<4x8xf32> to vector<4x8x1xf32>
    %26 = tpu.reciprocal %25 {approx = true} : vector<4x8x1xf32> -> vector<4x8x1xf32>
    %27 = vector.broadcast %26 : vector<4x8x1xf32> to vector<4x8x8xf32>
    %28 = arith.mulf %23, %27 : vector<4x8x8xf32>
    "tpu.trace_start"() <{level = 10 : i32, message = "bqk,bkd->bqd"}> : () -> ()
    %cst_16 = arith.constant dense<0.000000e+00> : vector<4x8x32xf32>
    %29 = tpu.matmul %28, %14, %cst_16 {dimension_numbers = #tpu.dot_dimension_numbers<[2], [1], [1], [2], [0, 0, 0, 1, 1, 2], [0], [0]>} : vector<4x8x8xf32>, vector<4x8x32xf32>, vector<4x8x32xf32> -> vector<4x8x32xf32>
    "tpu.trace_stop"() : () -> ()
    %30 = vector.extract_strided_slice %11 {offsets = [0, 0, 32], sizes = [4, 8, 32], strides = [1, 1, 1]} : vector<4x8x192xf32> to vector<4x8x32xf32>
    %31 = vector.extract_strided_slice %11 {offsets = [0, 0, 96], sizes = [4, 8, 32], strides = [1, 1, 1]} : vector<4x8x192xf32> to vector<4x8x32xf32>
    %32 = vector.extract_strided_slice %11 {offsets = [0, 0, 160], sizes = [4, 8, 32], strides = [1, 1, 1]} : vector<4x8x192xf32> to vector<4x8x32xf32>
    "tpu.trace_start"() <{level = 10 : i32, message = "bqd,bkd->bqk"}> : () -> ()
    %cst_17 = arith.constant dense<0.000000e+00> : vector<4x8x8xf32>
    %33 = tpu.matmul %30, %31, %cst_17 {dimension_numbers = #tpu.dot_dimension_numbers<[2], [2], [1], [1], [0, 0, 0, 1, 1, 1], [0], [0]>} : vector<4x8x32xf32>, vector<4x8x32xf32>, vector<4x8x8xf32> -> vector<4x8x8xf32>
    "tpu.trace_stop"() : () -> ()
    %cst_18 = arith.constant 0.176776692 : f32
    %34 = vector.broadcast %cst_18 : f32 to vector<4x8x8xf32>
    %35 = arith.mulf %33, %34 : vector<4x8x8xf32>
    %36 = arith.addf %35, %2 : vector<4x8x8xf32>
    %cst_19 = arith.constant dense<0xFF800000> : vector<4x8xf32>
    %37 = vector.multi_reduction <maximumf>, %36, %cst_19 [2] : vector<4x8x8xf32> to vector<4x8xf32>
    %38 = vector.shape_cast %37 : vector<4x8xf32> to vector<4x8x1xf32>
    %39 = vector.broadcast %38 : vector<4x8x1xf32> to vector<4x8x8xf32>
    %40 = arith.subf %36, %39 : vector<4x8x8xf32>
    %41 = math.exp %40 : vector<4x8x8xf32>
    %cst_20 = arith.constant dense<0.000000e+00> : vector<4x8xf32>
    %42 = vector.multi_reduction <add>, %41, %cst_20 [2] : vector<4x8x8xf32> to vector<4x8xf32>
    %43 = vector.shape_cast %42 : vector<4x8xf32> to vector<4x8x1xf32>
    %44 = tpu.reciprocal %43 {approx = true} : vector<4x8x1xf32> -> vector<4x8x1xf32>
    %45 = vector.broadcast %44 : vector<4x8x1xf32> to vector<4x8x8xf32>
    %46 = arith.mulf %41, %45 : vector<4x8x8xf32>
    "tpu.trace_start"() <{level = 10 : i32, message = "bqk,bkd->bqd"}> : () -> ()
    %cst_21 = arith.constant dense<0.000000e+00> : vector<4x8x32xf32>
    %47 = tpu.matmul %46, %32, %cst_21 {dimension_numbers = #tpu.dot_dimension_numbers<[2], [1], [1], [2], [0, 0, 0, 1, 1, 2], [0], [0]>} : vector<4x8x8xf32>, vector<4x8x32xf32>, vector<4x8x32xf32> -> vector<4x8x32xf32>
    "tpu.trace_stop"() : () -> ()
    %48 = tpu.concatenate %29, %47 in 2 : vector<4x8x32xf32>, vector<4x8x32xf32> -> vector<4x8x64xf32>
    %49 = vector.shape_cast %48 : vector<4x8x64xf32> to vector<32x64xf32>
    %c0_22 = arith.constant 0 : index
    %c0_23 = arith.constant 0 : index
    %c0_24 = arith.constant 0 : index
    %50 = vector.load %arg5[%c0_22, %c0_23, %c0_24] : memref<2x64x64xf32, #tpu.memory_space<vmem>>, vector<1x64x64xf32>
    %51 = vector.shape_cast %50 : vector<1x64x64xf32> to vector<64x64xf32>
    %cst_25 = arith.constant dense<0.000000e+00> : vector<32x64xf32>
    %52 = tpu.matmul %49, %51, %cst_25 {dimension_numbers = #tpu.dot_dimension_numbers<[1], [0], [0], [1], [0, 0, 1, 1], [], []>} : vector<32x64xf32>, vector<64x64xf32>, vector<32x64xf32> -> vector<32x64xf32>
    %c0_26 = arith.constant 0 : index
    %c0_27 = arith.constant 0 : index
    %c0_28 = arith.constant 0 : index
    %53 = vector.load %arg6[%c0_26, %c0_27, %c0_28] : memref<2x1x64xf32, #tpu.memory_space<vmem>>, vector<1x1x64xf32>
    %54 = vector.shape_cast %53 : vector<1x1x64xf32> to vector<1x64xf32>
    %55 = vector.broadcast %54 : vector<1x64xf32> to vector<32x64xf32>
    %56 = arith.addf %52, %55 : vector<32x64xf32>
    %57 = arith.addf %56, %3 : vector<32x64xf32>
    %c0_29 = arith.constant 0 : index
    %c0_30 = arith.constant 0 : index
    %c0_31 = arith.constant 0 : index
    %58 = vector.load %arg7[%c0_29, %c0_30, %c0_31] : memref<2x1x64xf32, #tpu.memory_space<vmem>>, vector<1x1x64xf32>
    %59 = vector.shape_cast %58 : vector<1x1x64xf32> to vector<1x64xf32>
    %c0_32 = arith.constant 0 : index
    %c0_33 = arith.constant 0 : index
    %c0_34 = arith.constant 0 : index
    %60 = vector.load %arg8[%c0_32, %c0_33, %c0_34] : memref<2x1x64xf32, #tpu.memory_space<vmem>>, vector<1x1x64xf32>
    %61 = vector.shape_cast %60 : vector<1x1x64xf32> to vector<1x64xf32>
    %cst_35 = arith.constant dense<0.000000e+00> : vector<32xf32>
    %62 = vector.multi_reduction <add>, %57, %cst_35 [1] : vector<32x64xf32> to vector<32xf32>
    %63 = vector.shape_cast %62 : vector<32xf32> to vector<32x1xf32>
    %cst_36 = arith.constant 6.400000e+01 : f32
    %64 = vector.broadcast %cst_36 : f32 to vector<32x1xf32>
    %65 = arith.divf %63, %64 : vector<32x1xf32>
    %66 = vector.broadcast %65 : vector<32x1xf32> to vector<32x64xf32>
    %67 = arith.subf %57, %66 : vector<32x64xf32>
    %68 = arith.mulf %67, %67 : vector<32x64xf32>
    %cst_37 = arith.constant dense<0.000000e+00> : vector<32xf32>
    %69 = vector.multi_reduction <add>, %68, %cst_37 [1] : vector<32x64xf32> to vector<32xf32>
    %70 = vector.shape_cast %69 : vector<32xf32> to vector<32x1xf32>
    %cst_38 = arith.constant 6.400000e+01 : f32
    %71 = vector.broadcast %cst_38 : f32 to vector<32x1xf32>
    %72 = arith.divf %70, %71 : vector<32x1xf32>
    %cst_39 = arith.constant 9.99999996E-13 : f32
    %73 = vector.broadcast %cst_39 : f32 to vector<32x1xf32>
    %74 = arith.addf %72, %73 : vector<32x1xf32>
    %75 = math.rsqrt %74 : vector<32x1xf32>
    %76 = vector.broadcast %75 : vector<32x1xf32> to vector<32x64xf32>
    %77 = arith.mulf %67, %76 : vector<32x64xf32>
    %78 = vector.broadcast %59 : vector<1x64xf32> to vector<32x64xf32>
    %79 = arith.mulf %77, %78 : vector<32x64xf32>
    %80 = vector.broadcast %61 : vector<1x64xf32> to vector<32x64xf32>
    %81 = arith.addf %79, %80 : vector<32x64xf32>
    %c0_40 = arith.constant 0 : index
    %c0_41 = arith.constant 0 : index
    %c0_42 = arith.constant 0 : index
    %82 = vector.load %arg9[%c0_40, %c0_41, %c0_42] : memref<2x64x256xf32, #tpu.memory_space<vmem>>, vector<1x64x256xf32>
    %83 = vector.shape_cast %82 : vector<1x64x256xf32> to vector<64x256xf32>
    %cst_43 = arith.constant dense<0.000000e+00> : vector<32x256xf32>
    %84 = tpu.matmul %81, %83, %cst_43 {dimension_numbers = #tpu.dot_dimension_numbers<[1], [0], [0], [1], [0, 0, 1, 1], [], []>} : vector<32x64xf32>, vector<64x256xf32>, vector<32x256xf32> -> vector<32x256xf32>
    %c0_44 = arith.constant 0 : index
    %c0_45 = arith.constant 0 : index
    %c0_46 = arith.constant 0 : index
    %85 = vector.load %arg10[%c0_44, %c0_45, %c0_46] : memref<2x1x256xf32, #tpu.memory_space<vmem>>, vector<1x1x256xf32>
    %86 = vector.shape_cast %85 : vector<1x1x256xf32> to vector<1x256xf32>
    %87 = vector.broadcast %86 : vector<1x256xf32> to vector<32x256xf32>
    %88 = arith.addf %84, %87 : vector<32x256xf32>
    %cst_47 = arith.constant 5.000000e-01 : f32
    %89 = vector.broadcast %cst_47 : f32 to vector<32x256xf32>
    %90 = arith.mulf %89, %88 : vector<32x256xf32>
    %cst_48 = arith.constant 0.707106769 : f32
    %91 = vector.broadcast %cst_48 : f32 to vector<32x256xf32>
    %92 = arith.mulf %88, %91 : vector<32x256xf32>
    %93 = math.absf %92 : vector<32x256xf32>
    %cst_49 = arith.constant 0.327591091 : f32
    %94 = vector.broadcast %cst_49 : f32 to vector<32x256xf32>
    %95 = arith.mulf %94, %93 : vector<32x256xf32>
    %cst_50 = arith.constant 1.000000e+00 : f32
    %96 = vector.broadcast %cst_50 : f32 to vector<32x256xf32>
    %97 = arith.addf %96, %95 : vector<32x256xf32>
    %cst_51 = arith.constant 1.000000e+00 : f32
    %98 = vector.broadcast %cst_51 : f32 to vector<32x256xf32>
    %99 = arith.divf %98, %97 : vector<32x256xf32>
    %cst_52 = arith.constant 1.06140542 : f32
    %100 = vector.broadcast %cst_52 : f32 to vector<32x256xf32>
    %101 = arith.mulf %100, %99 : vector<32x256xf32>
    %cst_53 = arith.constant -1.45315206 : f32
    %102 = vector.broadcast %cst_53 : f32 to vector<32x256xf32>
    %103 = arith.addf %101, %102 : vector<32x256xf32>
    %104 = arith.mulf %103, %99 : vector<32x256xf32>
    %cst_54 = arith.constant 1.42141378 : f32
    %105 = vector.broadcast %cst_54 : f32 to vector<32x256xf32>
    %106 = arith.addf %104, %105 : vector<32x256xf32>
    %107 = arith.mulf %106, %99 : vector<32x256xf32>
    %cst_55 = arith.constant -0.284496725 : f32
    %108 = vector.broadcast %cst_55 : f32 to vector<32x256xf32>
    %109 = arith.addf %107, %108 : vector<32x256xf32>
    %110 = arith.mulf %109, %99 : vector<32x256xf32>
    %cst_56 = arith.constant 0.254829586 : f32
    %111 = vector.broadcast %cst_56 : f32 to vector<32x256xf32>
    %112 = arith.addf %110, %111 : vector<32x256xf32>
    %113 = arith.mulf %112, %99 : vector<32x256xf32>
    %cst_57 = arith.constant 0.000000e+00 : f32
    %114 = vector.broadcast %cst_57 : f32 to vector<32x256xf32>
    %115 = arith.subf %114, %93 : vector<32x256xf32>
    %116 = arith.mulf %115, %93 : vector<32x256xf32>
    %117 = math.exp %116 : vector<32x256xf32>
    %118 = arith.mulf %113, %117 : vector<32x256xf32>
    %cst_58 = arith.constant 1.000000e+00 : f32
    %119 = vector.broadcast %cst_58 : f32 to vector<32x256xf32>
    %120 = arith.subf %119, %118 : vector<32x256xf32>
    %cst_59 = arith.constant 0.000000e+00 : f32
    %121 = vector.broadcast %cst_59 : f32 to vector<32x256xf32>
    %122 = arith.cmpf oge, %92, %121 : vector<32x256xf32>
    %cst_60 = arith.constant 0.000000e+00 : f32
    %123 = vector.broadcast %cst_60 : f32 to vector<32x256xf32>
    %124 = arith.subf %123, %120 : vector<32x256xf32>
    %125 = arith.select %122, %120, %124 : vector<32x256xi1>, vector<32x256xf32>
    %cst_61 = arith.constant 1.000000e+00 : f32
    %126 = vector.broadcast %cst_61 : f32 to vector<32x256xf32>
    %127 = arith.addf %126, %125 : vector<32x256xf32>
    %128 = arith.mulf %90, %127 : vector<32x256xf32>
    %c0_62 = arith.constant 0 : index
    %c0_63 = arith.constant 0 : index
    %c0_64 = arith.constant 0 : index
    %129 = vector.load %arg11[%c0_62, %c0_63, %c0_64] : memref<2x256x64xf32, #tpu.memory_space<vmem>>, vector<1x256x64xf32>
    %130 = vector.shape_cast %129 : vector<1x256x64xf32> to vector<256x64xf32>
    %cst_65 = arith.constant dense<0.000000e+00> : vector<32x64xf32>
    %131 = tpu.matmul %128, %130, %cst_65 {dimension_numbers = #tpu.dot_dimension_numbers<[1], [0], [0], [1], [0, 0, 1, 1], [], []>} : vector<32x256xf32>, vector<256x64xf32>, vector<32x64xf32> -> vector<32x64xf32>
    %c0_66 = arith.constant 0 : index
    %c0_67 = arith.constant 0 : index
    %c0_68 = arith.constant 0 : index
    %132 = vector.load %arg12[%c0_66, %c0_67, %c0_68] : memref<2x1x64xf32, #tpu.memory_space<vmem>>, vector<1x1x64xf32>
    %133 = vector.shape_cast %132 : vector<1x1x64xf32> to vector<1x64xf32>
    %134 = vector.broadcast %133 : vector<1x64xf32> to vector<32x64xf32>
    %135 = arith.addf %131, %134 : vector<32x64xf32>
    %136 = arith.addf %135, %81 : vector<32x64xf32>
    %c0_69 = arith.constant 0 : index
    %c0_70 = arith.constant 0 : index
    %c0_71 = arith.constant 0 : index
    %137 = vector.load %arg13[%c0_69, %c0_70, %c0_71] : memref<2x1x64xf32, #tpu.memory_space<vmem>>, vector<1x1x64xf32>
    %138 = vector.shape_cast %137 : vector<1x1x64xf32> to vector<1x64xf32>
    %c0_72 = arith.constant 0 : index
    %c0_73 = arith.constant 0 : index
    %c0_74 = arith.constant 0 : index
    %139 = vector.load %arg14[%c0_72, %c0_73, %c0_74] : memref<2x1x64xf32, #tpu.memory_space<vmem>>, vector<1x1x64xf32>
    %140 = vector.shape_cast %139 : vector<1x1x64xf32> to vector<1x64xf32>
    %cst_75 = arith.constant dense<0.000000e+00> : vector<32xf32>
    %141 = vector.multi_reduction <add>, %136, %cst_75 [1] : vector<32x64xf32> to vector<32xf32>
    %142 = vector.shape_cast %141 : vector<32xf32> to vector<32x1xf32>
    %cst_76 = arith.constant 6.400000e+01 : f32
    %143 = vector.broadcast %cst_76 : f32 to vector<32x1xf32>
    %144 = arith.divf %142, %143 : vector<32x1xf32>
    %145 = vector.broadcast %144 : vector<32x1xf32> to vector<32x64xf32>
    %146 = arith.subf %136, %145 : vector<32x64xf32>
    %147 = arith.mulf %146, %146 : vector<32x64xf32>
    %cst_77 = arith.constant dense<0.000000e+00> : vector<32xf32>
    %148 = vector.multi_reduction <add>, %147, %cst_77 [1] : vector<32x64xf32> to vector<32xf32>
    %149 = vector.shape_cast %148 : vector<32xf32> to vector<32x1xf32>
    %cst_78 = arith.constant 6.400000e+01 : f32
    %150 = vector.broadcast %cst_78 : f32 to vector<32x1xf32>
    %151 = arith.divf %149, %150 : vector<32x1xf32>
    %cst_79 = arith.constant 9.99999996E-13 : f32
    %152 = vector.broadcast %cst_79 : f32 to vector<32x1xf32>
    %153 = arith.addf %151, %152 : vector<32x1xf32>
    %154 = math.rsqrt %153 : vector<32x1xf32>
    %155 = vector.broadcast %154 : vector<32x1xf32> to vector<32x64xf32>
    %156 = arith.mulf %146, %155 : vector<32x64xf32>
    %157 = vector.broadcast %138 : vector<1x64xf32> to vector<32x64xf32>
    %158 = arith.mulf %156, %157 : vector<32x64xf32>
    %159 = vector.broadcast %140 : vector<1x64xf32> to vector<32x64xf32>
    %160 = arith.addf %158, %159 : vector<32x64xf32>
    %161 = vector.shape_cast %160 : vector<32x64xf32> to vector<4x8x64xf32>
    %c0_80 = arith.constant 0 : index
    %c0_81 = arith.constant 0 : index
    %c0_82 = arith.constant 0 : index
    %c0_83 = arith.constant 0 : index
    %162 = vector.load %arg15[%c0_80, %c0_81, %c0_82, %c0_83] : memref<2x4x8x64xf32, #tpu.memory_space<vmem>>, vector<1x4x8x64xf32>
    %163 = vector.shape_cast %162 : vector<1x4x8x64xf32> to vector<4x8x64xf32>
    %164 = vector.shape_cast %161 : vector<4x8x64xf32> to vector<1x4x8x64xf32>
    tpu.vector_store %arg15[%c0_80, %c0_81, %c0_82, %c0_83], %164 {strides = array<i32>} : memref<2x4x8x64xf32, #tpu.memory_space<vmem>>, vector<1x4x8x64xf32>,
    %c1 = arith.constant 1 : index
    %c0_84 = arith.constant 0 : index
    %c0_85 = arith.constant 0 : index
    %165 = vector.load %arg3[%c1, %c0_84, %c0_85] : memref<2x64x192xf32, #tpu.memory_space<vmem>>, vector<1x64x192xf32>
    %166 = vector.shape_cast %165 : vector<1x64x192xf32> to vector<64x192xf32>
    %cst_86 = arith.constant dense<0.000000e+00> : vector<32x192xf32>
    %167 = tpu.matmul %160, %166, %cst_86 {dimension_numbers = #tpu.dot_dimension_numbers<[1], [0], [0], [1], [0, 0, 1, 1], [], []>} : vector<32x64xf32>, vector<64x192xf32>, vector<32x192xf32> -> vector<32x192xf32>
    %c1_87 = arith.constant 1 : index
    %c0_88 = arith.constant 0 : index
    %c0_89 = arith.constant 0 : index
    %168 = vector.load %arg4[%c1_87, %c0_88, %c0_89] : memref<2x1x192xf32, #tpu.memory_space<vmem>>, vector<1x1x192xf32>
    %169 = vector.shape_cast %168 : vector<1x1x192xf32> to vector<1x192xf32>
    %170 = vector.broadcast %169 : vector<1x192xf32> to vector<32x192xf32>
    %171 = arith.addf %167, %170 : vector<32x192xf32>
    %172 = vector.shape_cast %171 : vector<32x192xf32> to vector<4x8x192xf32>
    %173 = vector.extract_strided_slice %172 {offsets = [0, 0, 0], sizes = [4, 8, 32], strides = [1, 1, 1]} : vector<4x8x192xf32> to vector<4x8x32xf32>
    %174 = vector.extract_strided_slice %172 {offsets = [0, 0, 64], sizes = [4, 8, 32], strides = [1, 1, 1]} : vector<4x8x192xf32> to vector<4x8x32xf32>
    %175 = vector.extract_strided_slice %172 {offsets = [0, 0, 128], sizes = [4, 8, 32], strides = [1, 1, 1]} : vector<4x8x192xf32> to vector<4x8x32xf32>
    "tpu.trace_start"() <{level = 10 : i32, message = "bqd,bkd->bqk"}> : () -> ()
    %cst_90 = arith.constant dense<0.000000e+00> : vector<4x8x8xf32>
    %176 = tpu.matmul %173, %174, %cst_90 {dimension_numbers = #tpu.dot_dimension_numbers<[2], [2], [1], [1], [0, 0, 0, 1, 1, 1], [0], [0]>} : vector<4x8x32xf32>, vector<4x8x32xf32>, vector<4x8x8xf32> -> vector<4x8x8xf32>
    "tpu.trace_stop"() : () -> ()
    %cst_91 = arith.constant 0.176776692 : f32
    %177 = vector.broadcast %cst_91 : f32 to vector<4x8x8xf32>
    %178 = arith.mulf %176, %177 : vector<4x8x8xf32>
    %179 = arith.addf %178, %2 : vector<4x8x8xf32>
    %cst_92 = arith.constant dense<0xFF800000> : vector<4x8xf32>
    %180 = vector.multi_reduction <maximumf>, %179, %cst_92 [2] : vector<4x8x8xf32> to vector<4x8xf32>
    %181 = vector.shape_cast %180 : vector<4x8xf32> to vector<4x8x1xf32>
    %182 = vector.broadcast %181 : vector<4x8x1xf32> to vector<4x8x8xf32>
    %183 = arith.subf %179, %182 : vector<4x8x8xf32>
    %184 = math.exp %183 : vector<4x8x8xf32>
    %cst_93 = arith.constant dense<0.000000e+00> : vector<4x8xf32>
    %185 = vector.multi_reduction <add>, %184, %cst_93 [2] : vector<4x8x8xf32> to vector<4x8xf32>
    %186 = vector.shape_cast %185 : vector<4x8xf32> to vector<4x8x1xf32>
    %187 = tpu.reciprocal %186 {approx = true} : vector<4x8x1xf32> -> vector<4x8x1xf32>
    %188 = vector.broadcast %187 : vector<4x8x1xf32> to vector<4x8x8xf32>
    %189 = arith.mulf %184, %188 : vector<4x8x8xf32>
    "tpu.trace_start"() <{level = 10 : i32, message = "bqk,bkd->bqd"}> : () -> ()
    %cst_94 = arith.constant dense<0.000000e+00> : vector<4x8x32xf32>
    %190 = tpu.matmul %189, %175, %cst_94 {dimension_numbers = #tpu.dot_dimension_numbers<[2], [1], [1], [2], [0, 0, 0, 1, 1, 2], [0], [0]>} : vector<4x8x8xf32>, vector<4x8x32xf32>, vector<4x8x32xf32> -> vector<4x8x32xf32>
    "tpu.trace_stop"() : () -> ()
    %191 = vector.extract_strided_slice %172 {offsets = [0, 0, 32], sizes = [4, 8, 32], strides = [1, 1, 1]} : vector<4x8x192xf32> to vector<4x8x32xf32>
    %192 = vector.extract_strided_slice %172 {offsets = [0, 0, 96], sizes = [4, 8, 32], strides = [1, 1, 1]} : vector<4x8x192xf32> to vector<4x8x32xf32>
    %193 = vector.extract_strided_slice %172 {offsets = [0, 0, 160], sizes = [4, 8, 32], strides = [1, 1, 1]} : vector<4x8x192xf32> to vector<4x8x32xf32>
    "tpu.trace_start"() <{level = 10 : i32, message = "bqd,bkd->bqk"}> : () -> ()
    %cst_95 = arith.constant dense<0.000000e+00> : vector<4x8x8xf32>
    %194 = tpu.matmul %191, %192, %cst_95 {dimension_numbers = #tpu.dot_dimension_numbers<[2], [2], [1], [1], [0, 0, 0, 1, 1, 1], [0], [0]>} : vector<4x8x32xf32>, vector<4x8x32xf32>, vector<4x8x8xf32> -> vector<4x8x8xf32>
    "tpu.trace_stop"() : () -> ()
    %cst_96 = arith.constant 0.176776692 : f32
    %195 = vector.broadcast %cst_96 : f32 to vector<4x8x8xf32>
    %196 = arith.mulf %194, %195 : vector<4x8x8xf32>
    %197 = arith.addf %196, %2 : vector<4x8x8xf32>
    %cst_97 = arith.constant dense<0xFF800000> : vector<4x8xf32>
    %198 = vector.multi_reduction <maximumf>, %197, %cst_97 [2] : vector<4x8x8xf32> to vector<4x8xf32>
    %199 = vector.shape_cast %198 : vector<4x8xf32> to vector<4x8x1xf32>
    %200 = vector.broadcast %199 : vector<4x8x1xf32> to vector<4x8x8xf32>
    %201 = arith.subf %197, %200 : vector<4x8x8xf32>
    %202 = math.exp %201 : vector<4x8x8xf32>
    %cst_98 = arith.constant dense<0.000000e+00> : vector<4x8xf32>
    %203 = vector.multi_reduction <add>, %202, %cst_98 [2] : vector<4x8x8xf32> to vector<4x8xf32>
    %204 = vector.shape_cast %203 : vector<4x8xf32> to vector<4x8x1xf32>
    %205 = tpu.reciprocal %204 {approx = true} : vector<4x8x1xf32> -> vector<4x8x1xf32>
    %206 = vector.broadcast %205 : vector<4x8x1xf32> to vector<4x8x8xf32>
    %207 = arith.mulf %202, %206 : vector<4x8x8xf32>
    "tpu.trace_start"() <{level = 10 : i32, message = "bqk,bkd->bqd"}> : () -> ()
    %cst_99 = arith.constant dense<0.000000e+00> : vector<4x8x32xf32>
    %208 = tpu.matmul %207, %193, %cst_99 {dimension_numbers = #tpu.dot_dimension_numbers<[2], [1], [1], [2], [0, 0, 0, 1, 1, 2], [0], [0]>} : vector<4x8x8xf32>, vector<4x8x32xf32>, vector<4x8x32xf32> -> vector<4x8x32xf32>
    "tpu.trace_stop"() : () -> ()
    %209 = tpu.concatenate %190, %208 in 2 : vector<4x8x32xf32>, vector<4x8x32xf32> -> vector<4x8x64xf32>
    %210 = vector.shape_cast %209 : vector<4x8x64xf32> to vector<32x64xf32>
    %c1_100 = arith.constant 1 : index
    %c0_101 = arith.constant 0 : index
    %c0_102 = arith.constant 0 : index
    %211 = vector.load %arg5[%c1_100, %c0_101, %c0_102] : memref<2x64x64xf32, #tpu.memory_space<vmem>>, vector<1x64x64xf32>
    %212 = vector.shape_cast %211 : vector<1x64x64xf32> to vector<64x64xf32>
    %cst_103 = arith.constant dense<0.000000e+00> : vector<32x64xf32>
    %213 = tpu.matmul %210, %212, %cst_103 {dimension_numbers = #tpu.dot_dimension_numbers<[1], [0], [0], [1], [0, 0, 1, 1], [], []>} : vector<32x64xf32>, vector<64x64xf32>, vector<32x64xf32> -> vector<32x64xf32>
    %c1_104 = arith.constant 1 : index
    %c0_105 = arith.constant 0 : index
    %c0_106 = arith.constant 0 : index
    %214 = vector.load %arg6[%c1_104, %c0_105, %c0_106] : memref<2x1x64xf32, #tpu.memory_space<vmem>>, vector<1x1x64xf32>
    %215 = vector.shape_cast %214 : vector<1x1x64xf32> to vector<1x64xf32>
    %216 = vector.broadcast %215 : vector<1x64xf32> to vector<32x64xf32>
    %217 = arith.addf %213, %216 : vector<32x64xf32>
    %218 = arith.addf %217, %160 : vector<32x64xf32>
    %c1_107 = arith.constant 1 : index
    %c0_108 = arith.constant 0 : index
    %c0_109 = arith.constant 0 : index
    %219 = vector.load %arg7[%c1_107, %c0_108, %c0_109] : memref<2x1x64xf32, #tpu.memory_space<vmem>>, vector<1x1x64xf32>
    %220 = vector.shape_cast %219 : vector<1x1x64xf32> to vector<1x64xf32>
    %c1_110 = arith.constant 1 : index
    %c0_111 = arith.constant 0 : index
    %c0_112 = arith.constant 0 : index
    %221 = vector.load %arg8[%c1_110, %c0_111, %c0_112] : memref<2x1x64xf32, #tpu.memory_space<vmem>>, vector<1x1x64xf32>
    %222 = vector.shape_cast %221 : vector<1x1x64xf32> to vector<1x64xf32>
    %cst_113 = arith.constant dense<0.000000e+00> : vector<32xf32>
    %223 = vector.multi_reduction <add>, %218, %cst_113 [1] : vector<32x64xf32> to vector<32xf32>
    %224 = vector.shape_cast %223 : vector<32xf32> to vector<32x1xf32>
    %cst_114 = arith.constant 6.400000e+01 : f32
    %225 = vector.broadcast %cst_114 : f32 to vector<32x1xf32>
    %226 = arith.divf %224, %225 : vector<32x1xf32>
    %227 = vector.broadcast %226 : vector<32x1xf32> to vector<32x64xf32>
    %228 = arith.subf %218, %227 : vector<32x64xf32>
    %229 = arith.mulf %228, %228 : vector<32x64xf32>
    %cst_115 = arith.constant dense<0.000000e+00> : vector<32xf32>
    %230 = vector.multi_reduction <add>, %229, %cst_115 [1] : vector<32x64xf32> to vector<32xf32>
    %231 = vector.shape_cast %230 : vector<32xf32> to vector<32x1xf32>
    %cst_116 = arith.constant 6.400000e+01 : f32
    %232 = vector.broadcast %cst_116 : f32 to vector<32x1xf32>
    %233 = arith.divf %231, %232 : vector<32x1xf32>
    %cst_117 = arith.constant 9.99999996E-13 : f32
    %234 = vector.broadcast %cst_117 : f32 to vector<32x1xf32>
    %235 = arith.addf %233, %234 : vector<32x1xf32>
    %236 = math.rsqrt %235 : vector<32x1xf32>
    %237 = vector.broadcast %236 : vector<32x1xf32> to vector<32x64xf32>
    %238 = arith.mulf %228, %237 : vector<32x64xf32>
    %239 = vector.broadcast %220 : vector<1x64xf32> to vector<32x64xf32>
    %240 = arith.mulf %238, %239 : vector<32x64xf32>
    %241 = vector.broadcast %222 : vector<1x64xf32> to vector<32x64xf32>
    %242 = arith.addf %240, %241 : vector<32x64xf32>
    %c1_118 = arith.constant 1 : index
    %c0_119 = arith.constant 0 : index
    %c0_120 = arith.constant 0 : index
    %243 = vector.load %arg9[%c1_118, %c0_119, %c0_120] : memref<2x64x256xf32, #tpu.memory_space<vmem>>, vector<1x64x256xf32>
    %244 = vector.shape_cast %243 : vector<1x64x256xf32> to vector<64x256xf32>
    %cst_121 = arith.constant dense<0.000000e+00> : vector<32x256xf32>
    %245 = tpu.matmul %242, %244, %cst_121 {dimension_numbers = #tpu.dot_dimension_numbers<[1], [0], [0], [1], [0, 0, 1, 1], [], []>} : vector<32x64xf32>, vector<64x256xf32>, vector<32x256xf32> -> vector<32x256xf32>
    %c1_122 = arith.constant 1 : index
    %c0_123 = arith.constant 0 : index
    %c0_124 = arith.constant 0 : index
    %246 = vector.load %arg10[%c1_122, %c0_123, %c0_124] : memref<2x1x256xf32, #tpu.memory_space<vmem>>, vector<1x1x256xf32>
    %247 = vector.shape_cast %246 : vector<1x1x256xf32> to vector<1x256xf32>
    %248 = vector.broadcast %247 : vector<1x256xf32> to vector<32x256xf32>
    %249 = arith.addf %245, %248 : vector<32x256xf32>
    %cst_125 = arith.constant 5.000000e-01 : f32
    %250 = vector.broadcast %cst_125 : f32 to vector<32x256xf32>
    %251 = arith.mulf %250, %249 : vector<32x256xf32>
    %cst_126 = arith.constant 0.707106769 : f32
    %252 = vector.broadcast %cst_126 : f32 to vector<32x256xf32>
    %253 = arith.mulf %249, %252 : vector<32x256xf32>
    %254 = math.absf %253 : vector<32x256xf32>
    %cst_127 = arith.constant 0.327591091 : f32
    %255 = vector.broadcast %cst_127 : f32 to vector<32x256xf32>
    %256 = arith.mulf %255, %254 : vector<32x256xf32>
    %cst_128 = arith.constant 1.000000e+00 : f32
    %257 = vector.broadcast %cst_128 : f32 to vector<32x256xf32>
    %258 = arith.addf %257, %256 : vector<32x256xf32>
    %cst_129 = arith.constant 1.000000e+00 : f32
    %259 = vector.broadcast %cst_129 : f32 to vector<32x256xf32>
    %260 = arith.divf %259, %258 : vector<32x256xf32>
    %cst_130 = arith.constant 1.06140542 : f32
    %261 = vector.broadcast %cst_130 : f32 to vector<32x256xf32>
    %262 = arith.mulf %261, %260 : vector<32x256xf32>
    %cst_131 = arith.constant -1.45315206 : f32
    %263 = vector.broadcast %cst_131 : f32 to vector<32x256xf32>
    %264 = arith.addf %262, %263 : vector<32x256xf32>
    %265 = arith.mulf %264, %260 : vector<32x256xf32>
    %cst_132 = arith.constant 1.42141378 : f32
    %266 = vector.broadcast %cst_132 : f32 to vector<32x256xf32>
    %267 = arith.addf %265, %266 : vector<32x256xf32>
    %268 = arith.mulf %267, %260 : vector<32x256xf32>
    %cst_133 = arith.constant -0.284496725 : f32
    %269 = vector.broadcast %cst_133 : f32 to vector<32x256xf32>
    %270 = arith.addf %268, %269 : vector<32x256xf32>
    %271 = arith.mulf %270, %260 : vector<32x256xf32>
    %cst_134 = arith.constant 0.254829586 : f32
    %272 = vector.broadcast %cst_134 : f32 to vector<32x256xf32>
    %273 = arith.addf %271, %272 : vector<32x256xf32>
    %274 = arith.mulf %273, %260 : vector<32x256xf32>
    %cst_135 = arith.constant 0.000000e+00 : f32
    %275 = vector.broadcast %cst_135 : f32 to vector<32x256xf32>
    %276 = arith.subf %275, %254 : vector<32x256xf32>
    %277 = arith.mulf %276, %254 : vector<32x256xf32>
    %278 = math.exp %277 : vector<32x256xf32>
    %279 = arith.mulf %274, %278 : vector<32x256xf32>
    %cst_136 = arith.constant 1.000000e+00 : f32
    %280 = vector.broadcast %cst_136 : f32 to vector<32x256xf32>
    %281 = arith.subf %280, %279 : vector<32x256xf32>
    %cst_137 = arith.constant 0.000000e+00 : f32
    %282 = vector.broadcast %cst_137 : f32 to vector<32x256xf32>
    %283 = arith.cmpf oge, %253, %282 : vector<32x256xf32>
    %cst_138 = arith.constant 0.000000e+00 : f32
    %284 = vector.broadcast %cst_138 : f32 to vector<32x256xf32>
    %285 = arith.subf %284, %281 : vector<32x256xf32>
    %286 = arith.select %283, %281, %285 : vector<32x256xi1>, vector<32x256xf32>
    %cst_139 = arith.constant 1.000000e+00 : f32
    %287 = vector.broadcast %cst_139 : f32 to vector<32x256xf32>
    %288 = arith.addf %287, %286 : vector<32x256xf32>
    %289 = arith.mulf %251, %288 : vector<32x256xf32>
    %c1_140 = arith.constant 1 : index
    %c0_141 = arith.constant 0 : index
    %c0_142 = arith.constant 0 : index
    %290 = vector.load %arg11[%c1_140, %c0_141, %c0_142] : memref<2x256x64xf32, #tpu.memory_space<vmem>>, vector<1x256x64xf32>
    %291 = vector.shape_cast %290 : vector<1x256x64xf32> to vector<256x64xf32>
    %cst_143 = arith.constant dense<0.000000e+00> : vector<32x64xf32>
    %292 = tpu.matmul %289, %291, %cst_143 {dimension_numbers = #tpu.dot_dimension_numbers<[1], [0], [0], [1], [0, 0, 1, 1], [], []>} : vector<32x256xf32>, vector<256x64xf32>, vector<32x64xf32> -> vector<32x64xf32>
    %c1_144 = arith.constant 1 : index
    %c0_145 = arith.constant 0 : index
    %c0_146 = arith.constant 0 : index
    %293 = vector.load %arg12[%c1_144, %c0_145, %c0_146] : memref<2x1x64xf32, #tpu.memory_space<vmem>>, vector<1x1x64xf32>
    %294 = vector.shape_cast %293 : vector<1x1x64xf32> to vector<1x64xf32>
    %295 = vector.broadcast %294 : vector<1x64xf32> to vector<32x64xf32>
    %296 = arith.addf %292, %295 : vector<32x64xf32>
    %297 = arith.addf %296, %242 : vector<32x64xf32>
    %c1_147 = arith.constant 1 : index
    %c0_148 = arith.constant 0 : index
    %c0_149 = arith.constant 0 : index
    %298 = vector.load %arg13[%c1_147, %c0_148, %c0_149] : memref<2x1x64xf32, #tpu.memory_space<vmem>>, vector<1x1x64xf32>
    %299 = vector.shape_cast %298 : vector<1x1x64xf32> to vector<1x64xf32>
    %c1_150 = arith.constant 1 : index
    %c0_151 = arith.constant 0 : index
    %c0_152 = arith.constant 0 : index
    %300 = vector.load %arg14[%c1_150, %c0_151, %c0_152] : memref<2x1x64xf32, #tpu.memory_space<vmem>>, vector<1x1x64xf32>
    %301 = vector.shape_cast %300 : vector<1x1x64xf32> to vector<1x64xf32>
    %cst_153 = arith.constant dense<0.000000e+00> : vector<32xf32>
    %302 = vector.multi_reduction <add>, %297, %cst_153 [1] : vector<32x64xf32> to vector<32xf32>
    %303 = vector.shape_cast %302 : vector<32xf32> to vector<32x1xf32>
    %cst_154 = arith.constant 6.400000e+01 : f32
    %304 = vector.broadcast %cst_154 : f32 to vector<32x1xf32>
    %305 = arith.divf %303, %304 : vector<32x1xf32>
    %306 = vector.broadcast %305 : vector<32x1xf32> to vector<32x64xf32>
    %307 = arith.subf %297, %306 : vector<32x64xf32>
    %308 = arith.mulf %307, %307 : vector<32x64xf32>
    %cst_155 = arith.constant dense<0.000000e+00> : vector<32xf32>
    %309 = vector.multi_reduction <add>, %308, %cst_155 [1] : vector<32x64xf32> to vector<32xf32>
    %310 = vector.shape_cast %309 : vector<32xf32> to vector<32x1xf32>
    %cst_156 = arith.constant 6.400000e+01 : f32
    %311 = vector.broadcast %cst_156 : f32 to vector<32x1xf32>
    %312 = arith.divf %310, %311 : vector<32x1xf32>
    %cst_157 = arith.constant 9.99999996E-13 : f32
    %313 = vector.broadcast %cst_157 : f32 to vector<32x1xf32>
    %314 = arith.addf %312, %313 : vector<32x1xf32>
    %315 = math.rsqrt %314 : vector<32x1xf32>
    %316 = vector.broadcast %315 : vector<32x1xf32> to vector<32x64xf32>
    %317 = arith.mulf %307, %316 : vector<32x64xf32>
    %318 = vector.broadcast %299 : vector<1x64xf32> to vector<32x64xf32>
    %319 = arith.mulf %317, %318 : vector<32x64xf32>
    %320 = vector.broadcast %301 : vector<1x64xf32> to vector<32x64xf32>
    %321 = arith.addf %319, %320 : vector<32x64xf32>
    %322 = vector.shape_cast %321 : vector<32x64xf32> to vector<4x8x64xf32>
    %c1_158 = arith.constant 1 : index
    %c0_159 = arith.constant 0 : index
    %c0_160 = arith.constant 0 : index
    %c0_161 = arith.constant 0 : index
    %323 = vector.load %arg15[%c1_158, %c0_159, %c0_160, %c0_161] : memref<2x4x8x64xf32, #tpu.memory_space<vmem>>, vector<1x4x8x64xf32>
    %324 = vector.shape_cast %323 : vector<1x4x8x64xf32> to vector<4x8x64xf32>
    %325 = vector.shape_cast %322 : vector<4x8x64xf32> to vector<1x4x8x64xf32>
    tpu.vector_store %arg15[%c1_158, %c0_159, %c0_160, %c0_161], %325 {strides = array<i32>} : memref<2x4x8x64xf32, #tpu.memory_space<vmem>>, vector<1x4x8x64xf32>,
    return
  }
  func.func @transform_0(%arg0: i32) -> (i32, i32, i32) {
    %c0_i32 = arith.constant 0 : i32
    %c0_i32_0 = arith.constant 0 : i32
    %c0_i32_1 = arith.constant 0 : i32
    return %arg0, %c0_i32, %c0_i32_0 : i32, i32, i32
  }
  func.func @transform_1(%arg0: i32) -> (i32, i32, i32, i32) {
    %c0_i32 = arith.constant 0 : i32
    %c0_i32_0 = arith.constant 0 : i32
    %c0_i32_1 = arith.constant 0 : i32
    %c0_i32_2 = arith.constant 0 : i32
    return %arg0, %c0_i32, %c0_i32_0, %c0_i32_1 : i32, i32, i32, i32
  }
  func.func @transform_2(%arg0: i32) -> (i32, i32, i32) {
    %c0_i32 = arith.constant 0 : i32
    %c0_i32_0 = arith.constant 0 : i32
    %c0_i32_1 = arith.constant 0 : i32
    %c0_i32_2 = arith.constant 0 : i32
    return %c0_i32, %c0_i32_0, %c0_i32_1 : i32, i32, i32
  }
  func.func @transform_3(%arg0: i32) -> (i32, i32, i32) {
    %c0_i32 = arith.constant 0 : i32
    %c0_i32_0 = arith.constant 0 : i32
    %c0_i32_1 = arith.constant 0 : i32
    %c0_i32_2 = arith.constant 0 : i32
    return %c0_i32, %c0_i32_0, %c0_i32_1 : i32, i32, i32
  }
  func.func @transform_4(%arg0: i32) -> (i32, i32, i32) {
    %c0_i32 = arith.constant 0 : i32
    %c0_i32_0 = arith.constant 0 : i32
    %c0_i32_1 = arith.constant 0 : i32
    %c0_i32_2 = arith.constant 0 : i32
    return %c0_i32, %c0_i32_0, %c0_i32_1 : i32, i32, i32
  }
  func.func @transform_5(%arg0: i32) -> (i32, i32, i32) {
    %c0_i32 = arith.constant 0 : i32
    %c0_i32_0 = arith.constant 0 : i32
    %c0_i32_1 = arith.constant 0 : i32
    %c0_i32_2 = arith.constant 0 : i32
    return %c0_i32, %c0_i32_0, %c0_i32_1 : i32, i32, i32
  }
  func.func @transform_6(%arg0: i32) -> (i32, i32, i32) {
    %c0_i32 = arith.constant 0 : i32
    %c0_i32_0 = arith.constant 0 : i32
    %c0_i32_1 = arith.constant 0 : i32
    %c0_i32_2 = arith.constant 0 : i32
    return %c0_i32, %c0_i32_0, %c0_i32_1 : i32, i32, i32
  }
  func.func @transform_7(%arg0: i32) -> (i32, i32, i32) {
    %c0_i32 = arith.constant 0 : i32
    %c0_i32_0 = arith.constant 0 : i32
    %c0_i32_1 = arith.constant 0 : i32
    %c0_i32_2 = arith.constant 0 : i32
    return %c0_i32, %c0_i32_0, %c0_i32_1 : i32, i32, i32
  }
  func.func @transform_8(%arg0: i32) -> (i32, i32, i32) {
    %c0_i32 = arith.constant 0 : i32
    %c0_i32_0 = arith.constant 0 : i32
    %c0_i32_1 = arith.constant 0 : i32
    %c0_i32_2 = arith.constant 0 : i32
    return %c0_i32, %c0_i32_0, %c0_i32_1 : i32, i32, i32
  }
  func.func @transform_9(%arg0: i32) -> (i32, i32, i32) {
    %c0_i32 = arith.constant 0 : i32
    %c0_i32_0 = arith.constant 0 : i32
    %c0_i32_1 = arith.constant 0 : i32
    %c0_i32_2 = arith.constant 0 : i32
    return %c0_i32, %c0_i32_0, %c0_i32_1 : i32, i32, i32
  }
  func.func @transform_10(%arg0: i32) -> (i32, i32, i32) {
    %c0_i32 = arith.constant 0 : i32
    %c0_i32_0 = arith.constant 0 : i32
    %c0_i32_1 = arith.constant 0 : i32
    %c0_i32_2 = arith.constant 0 : i32
    return %c0_i32, %c0_i32_0, %c0_i32_1 : i32, i32, i32
  }
  func.func @transform_11(%arg0: i32) -> (i32, i32, i32) {
    %c0_i32 = arith.constant 0 : i32
    %c0_i32_0 = arith.constant 0 : i32
    %c0_i32_1 = arith.constant 0 : i32
    %c0_i32_2 = arith.constant 0 : i32
    return %c0_i32, %c0_i32_0, %c0_i32_1 : i32, i32, i32
  }
  func.func @transform_12(%arg0: i32) -> (i32, i32, i32) {
    %c0_i32 = arith.constant 0 : i32
    %c0_i32_0 = arith.constant 0 : i32
    %c0_i32_1 = arith.constant 0 : i32
    %c0_i32_2 = arith.constant 0 : i32
    return %c0_i32, %c0_i32_0, %c0_i32_1 : i32, i32, i32
  }
  func.func @transform_13(%arg0: i32) -> (i32, i32, i32) {
    %c0_i32 = arith.constant 0 : i32
    %c0_i32_0 = arith.constant 0 : i32
    %c0_i32_1 = arith.constant 0 : i32
    %c0_i32_2 = arith.constant 0 : i32
    return %c0_i32, %c0_i32_0, %c0_i32_1 : i32, i32, i32
  }
  func.func @transform_14(%arg0: i32) -> (i32, i32, i32, i32) {
    %c0_i32 = arith.constant 0 : i32
    %c0_i32_0 = arith.constant 0 : i32
    %c0_i32_1 = arith.constant 0 : i32
    %c0_i32_2 = arith.constant 0 : i32
    return %c0_i32, %arg0, %c0_i32_0, %c0_i32_1 : i32, i32, i32, i32
  }
}

</mosaic_0001>

<llo_original>
// kernel: tpu_custom_call.1
$region0: #{tpu_custom_call.1}
  #allocation0 [shape = 'u32[]', space=smem, size = 0x4, offset = 0x4, fixed_abs, tag = 'smem constant byte address 0x4 - core index']
  #allocation1 [shape = 'u32[72,128]{1,0:T(1,128)}', space=vmem, size = 0x9000, scoped, tag = 'internal scratch']
  #allocation12 [shape = 's32[]', space=sflag, size = 0x4, offset = 0, fixed_abs, tag = 'sflag constant byte address 0x0 - dummy sync flag']
  %s0 = inlined_call_operand.vmem [shape: f32[8,8,64], index: 0, kind: input, shape index: {}]
  %s1 = inlined_call_operand.vmem [shape: f32[8,1,8,8], index: 1, kind: input, shape index: {}]
  %s2 = inlined_call_operand.vmem [shape: f32[2,64,192], index: 2, kind: input, shape index: {}]
  %s3 = inlined_call_operand.hbm [shape: f32[2,1,192], index: 3, kind: input, shape index: {}]
  %s4 = inlined_call_operand.vmem [shape: f32[2,64,64], index: 4, kind: input, shape index: {}]
  %s5 = inlined_call_operand.hbm [shape: f32[2,1,64], index: 5, kind: input, shape index: {}]
  %s6 = inlined_call_operand.hbm [shape: f32[2,1,64], index: 6, kind: input, shape index: {}]
  %s7 = inlined_call_operand.hbm [shape: f32[2,1,64], index: 7, kind: input, shape index: {}]
  %s8 = inlined_call_operand.vmem [shape: f32[2,64,256], index: 8, kind: input, shape index: {}]
  %s9 = inlined_call_operand.vmem [shape: f32[2,1,256], index: 9, kind: input, shape index: {}]
  %s10 = inlined_call_operand.vmem [shape: f32[2,256,64], index: 10, kind: input, shape index: {}]
  %s11 = inlined_call_operand.vmem [shape: f32[2,1,64], index: 11, kind: input, shape index: {}]
  %s12 = inlined_call_operand.vmem [shape: f32[2,1,64], index: 12, kind: input, shape index: {}]
  %s13 = inlined_call_operand.hbm [shape: f32[2,1,64], index: 13, kind: input, shape index: {}]
  %s14 = inlined_call_operand.hbm [shape: f32[2,8,8,64], index: 14, kind: output, shape index: {}]
  %s15 = sld [smem:[#allocation0]]
  $region109: #{tpu_custom_call.1} parent=0
    _
  %s17 = ssub.s32 1, %s15
  %s18 = scalar_select 0, %s17, %s15
  $region1: #{tpu_custom_call.1} parent=0
    #allocation2 [shape = 'u8[2048]{0}', space=vmem, size = 0x800, scoped, tag = 'input window, operand 3, single buffered']
    #allocation3 [shape = 's32[2]{0}', space=sflag, size = 0x8, scoped, tag = 'scoped memory for tpu_custom_call.1']
    #allocation4 [shape = 's32[2]{0}', space=sflag, size = 0x8, scoped, tag = 'scoped memory for tpu_custom_call.1']
    #allocation5 [shape = 'u8[1024]{0}', space=vmem, size = 0x400, scoped, tag = 'input window, operand 5, single buffered']
    #allocation6 [shape = 's32[1]{0}', space=sflag, size = 0x4, scoped, tag = 'scoped memory for tpu_custom_call.1']
    #allocation7 [shape = 'u8[1024]{0}', space=vmem, size = 0x400, scoped, tag = 'input window, operand 6, single buffered']
    #allocation8 [shape = 'u8[1024]{0}', space=vmem, size = 0x400, scoped, tag = 'input window, operand 7, single buffered']
    #allocation9 [shape = 's32[1]{0}', space=sflag, size = 0x4, scoped, tag = 'scoped memory for tpu_custom_call.1']
    #allocation10 [shape = 'u8[1024]{0}', space=vmem, size = 0x400, scoped, tag = 'input window, operand 13, single buffered']
    #allocation11 [shape = 'u8[65536]{0}', space=vmem, size = 0x10000, scoped, tag = 'output window, operand 0']
    %19 = vsyncpa [#allocation3], 0
    %20 = vsyncpa [#allocation6], 0
    %21 = vsyncpa [#allocation9], 0
    %22 = vsyncpa [#allocation4], 0
    %s23 = scalar_lea.sflag [#allocation4], 1
    %24 = vsyncpa %s23, 0
    loop: start=0, step=1, limit=4
    $region2: #{tpu_custom_call.1} parent=1 // loop_pre_header
      _
    $region3: #{tpu_custom_call.1} parent=1 // loop_header
      %s26 = sphi 0, %s30
      %p27 = scmp.ge.s32.totalorder %s26, 4
      %s36 = sphi 0, %s38
      %s39 = sphi 0, %s36
      %s40 = sphi 0, %s39
      %s56 = sphi 0, %s40
      %s62 = sphi 0, %s64
      %s65 = sphi 0, %s62
      %s66 = sphi 0, %s65
      %s82 = sphi 0, %s66
      %s86 = sphi 0, %s86
      %s88 = sphi 0, %s86
      %s89 = sphi 0, %s88
      %s103 = sphi 0, %s89
      %s107 = sphi 0, %s107
      %s109 = sphi 0, %s107
      %s110 = sphi 0, %s109
      %s124 = sphi 0, %s110
      %s128 = sphi 0, %s128
      %s130 = sphi 0, %s128
      %s131 = sphi 0, %s130
      %s145 = sphi 0, %s131
      %s149 = sphi 0, %s149
      %s151 = sphi 0, %s149
      %s152 = sphi 0, %s151
      %s166 = sphi 0, %s152
      %s170 = sphi 0, %s170
      %s172 = sphi 0, %s170
      %s173 = sphi 0, %s172
      %s187 = sphi 0, %s173
      %s191 = sphi 0, %s191
      %s193 = sphi 0, %s191
      %s194 = sphi 0, %s193
      %s208 = sphi 0, %s194
      %s212 = sphi 0, %s212
      %s214 = sphi 0, %s212
      %s215 = sphi 0, %s214
      %s229 = sphi 0, %s215
      %s233 = sphi 0, %s233
      %s235 = sphi 0, %s233
      %s236 = sphi 0, %s235
      %s250 = sphi 0, %s236
      %s254 = sphi 0, %s254
      %s256 = sphi 0, %s254
      %s257 = sphi 0, %s256
      %s271 = sphi 0, %s257
      %s275 = sphi 0, %s275
      %s277 = sphi 0, %s275
      %s278 = sphi 0, %s277
      %s292 = sphi 0, %s278
      %s296 = sphi 0, %s296
      %s298 = sphi 0, %s296
      %s299 = sphi 0, %s298
      %s313 = sphi 0, %s299
      %s317 = sphi 0, %s317
      %s319 = sphi 0, %s317
      %s320 = sphi 0, %s319
      %s334 = sphi 0, %s320
      %s340 = sphi 0, %s342
      %s343 = sphi 0, %s340
      %s344 = sphi 0, %s343
      %s360 = sphi 0, %s344
    $region4: #{tpu_custom_call.1} parent=1 // loop_header_branch
      %29 = sbr.rel (%p27) target = $region8
    $region5: #{tpu_custom_call.1} parent=1 // loop_body
      %s31 = ssub.s32 %s26, 1
      %s32 = ssub.s32 %s26, 2
      %s33 = sadd.s32 %s26, 1
      %s34 = ssub.s32 %s26, %s33
      %p35 = scmp.eq.s32.totalorder %s34, 0
      %s37 = sadd.s32 %s36, 1
      %s38 = scalar_select %p35, %s36, %s37
      %p41 = pneg %p35
      %p42 = scmp.eq.s32.totalorder %s26, 1
      %p43 = por %p41, %p42
      %p44 = scmp.ne.s32.totalorder %s36, %s39
      %p45 = scmp.eq.s32.totalorder %s26, 0
      %p46 = por %p44, %p45
      %p47 = scmp.ne.s32.totalorder %s36, %s39
      %p48 = scmp.eq.s32.totalorder %s31, 1
      %p49 = por %p47, %p48
      %p50 = scmp.ne.s32.totalorder %s39, %s40
      %p51 = scmp.eq.s32.totalorder %s31, 0
      %p52 = por %p50, %p51
      %p53 = scmp.ne.s32.totalorder %s39, %s40
      %p54 = scmp.eq.s32.totalorder %s32, 1
      %p55 = por %p53, %p54
      %p57 = scmp.ne.s32.totalorder %s40, %s56
      %p58 = scmp.eq.s32.totalorder %s32, 0
      %p59 = por %p57, %p58
      %s60 = ssub.s32 %s26, %s33
      %p61 = scmp.eq.s32.totalorder %s60, 0
      %s63 = sadd.s32 %s62, 1
      %s64 = scalar_select %p61, %s62, %s63
      %p67 = pneg %p61
      %p68 = scmp.eq.s32.totalorder %s26, 1
      %p69 = por %p67, %p68
      %p70 = scmp.ne.s32.totalorder %s62, %s65
      %p71 = scmp.eq.s32.totalorder %s26, 0
      %p72 = por %p70, %p71
      %p73 = scmp.ne.s32.totalorder %s62, %s65
      %p74 = scmp.eq.s32.totalorder %s31, 1
      %p75 = por %p73, %p74
      %p76 = scmp.ne.s32.totalorder %s65, %s66
      %p77 = scmp.eq.s32.totalorder %s31, 0
      %p78 = por %p76, %p77
      %p79 = scmp.ne.s32.totalorder %s65, %s66
      %p80 = scmp.eq.s32.totalorder %s32, 1
      %p81 = por %p79, %p80
      %p83 = scmp.ne.s32.totalorder %s66, %s82
      %p84 = scmp.eq.s32.totalorder %s32, 0
      %p85 = por %p83, %p84
      %s87 = sadd.s32 %s86, 1
      %p90 = scmp.eq.s32.totalorder %s26, 1
      %p91 = scmp.ne.s32.totalorder %s86, %s88
      %p92 = scmp.eq.s32.totalorder %s26, 0
      %p93 = por %p91, %p92
      %p94 = scmp.ne.s32.totalorder %s86, %s88
      %p95 = scmp.eq.s32.totalorder %s31, 1
      %p96 = por %p94, %p95
      %p97 = scmp.ne.s32.totalorder %s88, %s89
      %p98 = scmp.eq.s32.totalorder %s31, 0
      %p99 = por %p97, %p98
      %p100 = scmp.ne.s32.totalorder %s88, %s89
      %p101 = scmp.eq.s32.totalorder %s32, 1
      %p102 = por %p100, %p101
      %p104 = scmp.ne.s32.totalorder %s89, %s103
      %p105 = scmp.eq.s32.totalorder %s32, 0
      %p106 = por %p104, %p105
      %s108 = sadd.s32 %s107, 1
      %p111 = scmp.eq.s32.totalorder %s26, 1
      %p112 = scmp.ne.s32.totalorder %s107, %s109
      %p113 = scmp.eq.s32.totalorder %s26, 0
      %p114 = por %p112, %p113
      %p115 = scmp.ne.s32.totalorder %s107, %s109
      %p116 = scmp.eq.s32.totalorder %s31, 1
      %p117 = por %p115, %p116
      %p118 = scmp.ne.s32.totalorder %s109, %s110
      %p119 = scmp.eq.s32.totalorder %s31, 0
      %p120 = por %p118, %p119
      %p121 = scmp.ne.s32.totalorder %s109, %s110
      %p122 = scmp.eq.s32.totalorder %s32, 1
      %p123 = por %p121, %p122
      %p125 = scmp.ne.s32.totalorder %s110, %s124
      %p126 = scmp.eq.s32.totalorder %s32, 0
      %p127 = por %p125, %p126
      %s129 = sadd.s32 %s128, 1
      %p132 = scmp.eq.s32.totalorder %s26, 1
      %p133 = scmp.ne.s32.totalorder %s128, %s130
      %p134 = scmp.eq.s32.totalorder %s26, 0
      %p135 = por %p133, %p134
      %p136 = scmp.ne.s32.totalorder %s128, %s130
      %p137 = scmp.eq.s32.totalorder %s31, 1
      %p138 = por %p136, %p137
      %p139 = scmp.ne.s32.totalorder %s130, %s131
      %p140 = scmp.eq.s32.totalorder %s31, 0
      %p141 = por %p139, %p140
      %p142 = scmp.ne.s32.totalorder %s130, %s131
      %p143 = scmp.eq.s32.totalorder %s32, 1
      %p144 = por %p142, %p143
      %p146 = scmp.ne.s32.totalorder %s131, %s145
      %p147 = scmp.eq.s32.totalorder %s32, 0
      %p148 = por %p146, %p147
      %s150 = sadd.s32 %s149, 1
      %p153 = scmp.eq.s32.totalorder %s26, 1
      %p154 = scmp.ne.s32.totalorder %s149, %s151
      %p155 = scmp.eq.s32.totalorder %s26, 0
      %p156 = por %p154, %p155
      %p157 = scmp.ne.s32.totalorder %s149, %s151
      %p158 = scmp.eq.s32.totalorder %s31, 1
      %p159 = por %p157, %p158
      %p160 = scmp.ne.s32.totalorder %s151, %s152
      %p161 = scmp.eq.s32.totalorder %s31, 0
      %p162 = por %p160, %p161
      %p163 = scmp.ne.s32.totalorder %s151, %s152
      %p164 = scmp.eq.s32.totalorder %s32, 1
      %p165 = por %p163, %p164
      %p167 = scmp.ne.s32.totalorder %s152, %s166
      %p168 = scmp.eq.s32.totalorder %s32, 0
      %p169 = por %p167, %p168
      %s171 = sadd.s32 %s170, 1
      %p174 = scmp.eq.s32.totalorder %s26, 1
      %p175 = scmp.ne.s32.totalorder %s170, %s172
      %p176 = scmp.eq.s32.totalorder %s26, 0
      %p177 = por %p175, %p176
      %p178 = scmp.ne.s32.totalorder %s170, %s172
      %p179 = scmp.eq.s32.totalorder %s31, 1
      %p180 = por %p178, %p179
      %p181 = scmp.ne.s32.totalorder %s172, %s173
      %p182 = scmp.eq.s32.totalorder %s31, 0
      %p183 = por %p181, %p182
      %p184 = scmp.ne.s32.totalorder %s172, %s173
      %p185 = scmp.eq.s32.totalorder %s32, 1
      %p186 = por %p184, %p185
      %p188 = scmp.ne.s32.totalorder %s173, %s187
      %p189 = scmp.eq.s32.totalorder %s32, 0
      %p190 = por %p188, %p189
      %s192 = sadd.s32 %s191, 1
      %p195 = scmp.eq.s32.totalorder %s26, 1
      %p196 = scmp.ne.s32.totalorder %s191, %s193
      %p197 = scmp.eq.s32.totalorder %s26, 0
      %p198 = por %p196, %p197
      %p199 = scmp.ne.s32.totalorder %s191, %s193
      %p200 = scmp.eq.s32.totalorder %s31, 1
      %p201 = por %p199, %p200
      %p202 = scmp.ne.s32.totalorder %s193, %s194
      %p203 = scmp.eq.s32.totalorder %s31, 0
      %p204 = por %p202, %p203
      %p205 = scmp.ne.s32.totalorder %s193, %s194
      %p206 = scmp.eq.s32.totalorder %s32, 1
      %p207 = por %p205, %p206
      %p209 = scmp.ne.s32.totalorder %s194, %s208
      %p210 = scmp.eq.s32.totalorder %s32, 0
      %p211 = por %p209, %p210
      %s213 = sadd.s32 %s212, 1
      %p216 = scmp.eq.s32.totalorder %s26, 1
      %p217 = scmp.ne.s32.totalorder %s212, %s214
      %p218 = scmp.eq.s32.totalorder %s26, 0
      %p219 = por %p217, %p218
      %p220 = scmp.ne.s32.totalorder %s212, %s214
      %p221 = scmp.eq.s32.totalorder %s31, 1
      %p222 = por %p220, %p221
      %p223 = scmp.ne.s32.totalorder %s214, %s215
      %p224 = scmp.eq.s32.totalorder %s31, 0
      %p225 = por %p223, %p224
      %p226 = scmp.ne.s32.totalorder %s214, %s215
      %p227 = scmp.eq.s32.totalorder %s32, 1
      %p228 = por %p226, %p227
      %p230 = scmp.ne.s32.totalorder %s215, %s229
      %p231 = scmp.eq.s32.totalorder %s32, 0
      %p232 = por %p230, %p231
      %s234 = sadd.s32 %s233, 1
      %p237 = scmp.eq.s32.totalorder %s26, 1
      %p238 = scmp.ne.s32.totalorder %s233, %s235
      %p239 = scmp.eq.s32.totalorder %s26, 0
      %p240 = por %p238, %p239
      %p241 = scmp.ne.s32.totalorder %s233, %s235
      %p242 = scmp.eq.s32.totalorder %s31, 1
      %p243 = por %p241, %p242
      %p244 = scmp.ne.s32.totalorder %s235, %s236
      %p245 = scmp.eq.s32.totalorder %s31, 0
      %p246 = por %p244, %p245
      %p247 = scmp.ne.s32.totalorder %s235, %s236
      %p248 = scmp.eq.s32.totalorder %s32, 1
      %p249 = por %p247, %p248
      %p251 = scmp.ne.s32.totalorder %s236, %s250
      %p252 = scmp.eq.s32.totalorder %s32, 0
      %p253 = por %p251, %p252
      %s255 = sadd.s32 %s254, 1
      %p258 = scmp.eq.s32.totalorder %s26, 1
      %p259 = scmp.ne.s32.totalorder %s254, %s256
      %p260 = scmp.eq.s32.totalorder %s26, 0
      %p261 = por %p259, %p260
      %p262 = scmp.ne.s32.totalorder %s254, %s256
      %p263 = scmp.eq.s32.totalorder %s31, 1
      %p264 = por %p262, %p263
      %p265 = scmp.ne.s32.totalorder %s256, %s257
      %p266 = scmp.eq.s32.totalorder %s31, 0
      %p267 = por %p265, %p266
      %p268 = scmp.ne.s32.totalorder %s256, %s257
      %p269 = scmp.eq.s32.totalorder %s32, 1
      %p270 = por %p268, %p269
      %p272 = scmp.ne.s32.totalorder %s257, %s271
      %p273 = scmp.eq.s32.totalorder %s32, 0
      %p274 = por %p272, %p273
      %s276 = sadd.s32 %s275, 1
      %p279 = scmp.eq.s32.totalorder %s26, 1
      %p280 = scmp.ne.s32.totalorder %s275, %s277
      %p281 = scmp.eq.s32.totalorder %s26, 0
      %p282 = por %p280, %p281
      %p283 = scmp.ne.s32.totalorder %s275, %s277
      %p284 = scmp.eq.s32.totalorder %s31, 1
      %p285 = por %p283, %p284
      %p286 = scmp.ne.s32.totalorder %s277, %s278
      %p287 = scmp.eq.s32.totalorder %s31, 0
      %p288 = por %p286, %p287
      %p289 = scmp.ne.s32.totalorder %s277, %s278
      %p290 = scmp.eq.s32.totalorder %s32, 1
      %p291 = por %p289, %p290
      %p293 = scmp.ne.s32.totalorder %s278, %s292
      %p294 = scmp.eq.s32.totalorder %s32, 0
      %p295 = por %p293, %p294
      %s297 = sadd.s32 %s296, 1
      %p300 = scmp.eq.s32.totalorder %s26, 1
      %p301 = scmp.ne.s32.totalorder %s296, %s298
      %p302 = scmp.eq.s32.totalorder %s26, 0
      %p303 = por %p301, %p302
      %p304 = scmp.ne.s32.totalorder %s296, %s298
      %p305 = scmp.eq.s32.totalorder %s31, 1
      %p306 = por %p304, %p305
      %p307 = scmp.ne.s32.totalorder %s298, %s299
      %p308 = scmp.eq.s32.totalorder %s31, 0
      %p309 = por %p307, %p308
      %p310 = scmp.ne.s32.totalorder %s298, %s299
      %p311 = scmp.eq.s32.totalorder %s32, 1
      %p312 = por %p310, %p311
      %p314 = scmp.ne.s32.totalorder %s299, %s313
      %p315 = scmp.eq.s32.totalorder %s32, 0
      %p316 = por %p314, %p315
      %s318 = sadd.s32 %s317, 1
      %p321 = scmp.eq.s32.totalorder %s26, 1
      %p322 = scmp.ne.s32.totalorder %s317, %s319
      %p323 = scmp.eq.s32.totalorder %s26, 0
      %p324 = por %p322, %p323
      %p325 = scmp.ne.s32.totalorder %s317, %s319
      %p326 = scmp.eq.s32.totalorder %s31, 1
      %p327 = por %p325, %p326
      %p328 = scmp.ne.s32.totalorder %s319, %s320
      %p329 = scmp.eq.s32.totalorder %s31, 0
      %p330 = por %p328, %p329
      %p331 = scmp.ne.s32.totalorder %s319, %s320
      %p332 = scmp.eq.s32.totalorder %s32, 1
      %p333 = por %p331, %p332
      %p335 = scmp.ne.s32.totalorder %s320, %s334
      %p336 = scmp.eq.s32.totalorder %s32, 0
      %p337 = por %p335, %p336
      %s338 = ssub.s32 %s26, %s33
      %p339 = scmp.eq.s32.totalorder %s338, 0
      %s341 = sadd.s32 %s340, 1
      %s342 = scalar_select %p339, %s340, %s341
      %p345 = pneg %p339
      %p346 = scmp.eq.s32.totalorder %s26, 1
      %p347 = por %p345, %p346
      %p348 = scmp.ne.s32.totalorder %s340, %s343
      %p349 = scmp.eq.s32.totalorder %s26, 0
      %p350 = por %p348, %p349
      %p351 = scmp.ne.s32.totalorder %s340, %s343
      %p352 = scmp.eq.s32.totalorder %s31, 1
      %p353 = por %p351, %p352
      %p354 = scmp.ne.s32.totalorder %s343, %s344
      %p355 = scmp.eq.s32.totalorder %s31, 0
      %p356 = por %p354, %p355
      %p357 = scmp.ne.s32.totalorder %s343, %s344
      %p358 = scmp.eq.s32.totalorder %s32, 1
      %p359 = por %p357, %p358
      %p361 = scmp.ne.s32.totalorder %s344, %s360
      %p362 = scmp.eq.s32.totalorder %s32, 0
      %p363 = por %p361, %p362
      %p364 = scmp.le.s32.totalorder 1, %s26
      %p365 = scmp.lt.s32.totalorder %s26, 3
      %p366 = pnand %p364, %p365
      %p367 = pneg %p366
      // Predicated region
      $region9: #{tpu_custom_call.1} parent=5 // pred_check
        _
      $region10: #{tpu_custom_call.1} parent=5 // pred_check_branch
        %369 = sbr.rel (%p366) target = $region12
      $region11: #{tpu_custom_call.1} parent=5 // pred_region
        %s370 = ssub.s32 %s26, 1
        // Predicated region
        $region13: #{tpu_custom_call.1} parent=11 // pred_check
          %p371 = pneg %p99
        $region14: #{tpu_custom_call.1} parent=11 // pred_check_branch
          %373 = sbr.rel (%p371) target = $region16
        $region15: #{tpu_custom_call.1} parent=11 // pred_region
          _
        $region16: #{tpu_custom_call.1} parent=11 // pred_fallthru
          _
        // Predicated region
        $region17: #{tpu_custom_call.1} parent=11 // pred_check
          %p374 = pneg %p120
        $region18: #{tpu_custom_call.1} parent=11 // pred_check_branch
          %376 = sbr.rel (%p374) target = $region20
        $region19: #{tpu_custom_call.1} parent=11 // pred_region
          %378 = vsyncadd [#allocation3], 0
          %s379 = sshll.u32 %s3, 4
          %s380 = int_to_ptr.hbm [resolvable:$true] %s379
          %s381 = sshll.u32 [#allocation2], 4
          %s382 = int_to_ptr.vmem [resolvable:$true] %s381
          %387 = dma.hbm_to_vmem [thread:$0]  %s380, 64, %s382, [#allocation3], 32, 32, 2
        $region20: #{tpu_custom_call.1} parent=11 // pred_fallthru
          _
        // Predicated region
        $region21: #{tpu_custom_call.1} parent=11 // pred_check
          %p388 = pneg %p141
        $region22: #{tpu_custom_call.1} parent=11 // pred_check_branch
          %390 = sbr.rel (%p388) target = $region24
        $region23: #{tpu_custom_call.1} parent=11 // pred_region
          _
        $region24: #{tpu_custom_call.1} parent=11 // pred_fallthru
          _
        // Predicated region
        $region25: #{tpu_custom_call.1} parent=11 // pred_check
          %p391 = pneg %p162
        $region26: #{tpu_custom_call.1} parent=11 // pred_check_branch
          %393 = sbr.rel (%p391) target = $region28
        $region27: #{tpu_custom_call.1} parent=11 // pred_region
          %395 = vsyncadd [#allocation6], 0
          %s396 = sshll.u32 %s5, 4
          %s397 = int_to_ptr.hbm [resolvable:$true] %s396
          %s398 = sshll.u32 [#allocation5], 4
          %s399 = int_to_ptr.vmem [resolvable:$true] %s398
          %404 = dma.hbm_to_vmem [thread:$0]  %s397, 32, %s399, [#allocation6], 16, 16, 1
        $region28: #{tpu_custom_call.1} parent=11 // pred_fallthru
          _
        // Predicated region
        $region29: #{tpu_custom_call.1} parent=11 // pred_check
          %p405 = pneg %p183
        $region30: #{tpu_custom_call.1} parent=11 // pred_check_branch
          %407 = sbr.rel (%p405) target = $region32
        $region31: #{tpu_custom_call.1} parent=11 // pred_region
          %409 = vsyncadd [#allocation6], 0
          %s410 = sshll.u32 %s6, 4
          %s411 = int_to_ptr.hbm [resolvable:$true] %s410
          %s412 = sshll.u32 [#allocation7], 4
          %s413 = int_to_ptr.vmem [resolvable:$true] %s412
          %418 = dma.hbm_to_vmem [thread:$0]  %s411, 32, %s413, [#allocation6], 16, 16, 1
        $region32: #{tpu_custom_call.1} parent=11 // pred_fallthru
          _
        // Predicated region
        $region33: #{tpu_custom_call.1} parent=11 // pred_check
          %p419 = pneg %p204
        $region34: #{tpu_custom_call.1} parent=11 // pred_check_branch
          %421 = sbr.rel (%p419) target = $region36
        $region35: #{tpu_custom_call.1} parent=11 // pred_region
          %423 = vsyncadd [#allocation9], 0
          %s424 = sshll.u32 %s7, 4
          %s425 = int_to_ptr.hbm [resolvable:$true] %s424
          %s426 = sshll.u32 [#allocation8], 4
          %s427 = int_to_ptr.vmem [resolvable:$true] %s426
          %432 = dma.hbm_to_vmem [thread:$0]  %s425, 32, %s427, [#allocation9], 16, 16, 1
        $region36: #{tpu_custom_call.1} parent=11 // pred_fallthru
          _
        // Predicated region
        $region37: #{tpu_custom_call.1} parent=11 // pred_check
          %p433 = pneg %p225
        $region38: #{tpu_custom_call.1} parent=11 // pred_check_branch
          %435 = sbr.rel (%p433) target = $region40
        $region39: #{tpu_custom_call.1} parent=11 // pred_region
          _
        $region40: #{tpu_custom_call.1} parent=11 // pred_fallthru
          _
        // Predicated region
        $region41: #{tpu_custom_call.1} parent=11 // pred_check
          %p436 = pneg %p246
        $region42: #{tpu_custom_call.1} parent=11 // pred_check_branch
          %438 = sbr.rel (%p436) target = $region44
        $region43: #{tpu_custom_call.1} parent=11 // pred_region
          _
        $region44: #{tpu_custom_call.1} parent=11 // pred_fallthru
          _
        // Predicated region
        $region45: #{tpu_custom_call.1} parent=11 // pred_check
          %p439 = pneg %p267
        $region46: #{tpu_custom_call.1} parent=11 // pred_check_branch
          %441 = sbr.rel (%p439) target = $region48
        $region47: #{tpu_custom_call.1} parent=11 // pred_region
          _
        $region48: #{tpu_custom_call.1} parent=11 // pred_fallthru
          _
        // Predicated region
        $region49: #{tpu_custom_call.1} parent=11 // pred_check
          %p442 = pneg %p288
        $region50: #{tpu_custom_call.1} parent=11 // pred_check_branch
          %444 = sbr.rel (%p442) target = $region52
        $region51: #{tpu_custom_call.1} parent=11 // pred_region
          _
        $region52: #{tpu_custom_call.1} parent=11 // pred_fallthru
          _
        // Predicated region
        $region53: #{tpu_custom_call.1} parent=11 // pred_check
          %p445 = pneg %p309
        $region54: #{tpu_custom_call.1} parent=11 // pred_check_branch
          %447 = sbr.rel (%p445) target = $region56
        $region55: #{tpu_custom_call.1} parent=11 // pred_region
          _
        $region56: #{tpu_custom_call.1} parent=11 // pred_fallthru
          _
        // Predicated region
        $region57: #{tpu_custom_call.1} parent=11 // pred_check
          %p448 = pneg %p330
        $region58: #{tpu_custom_call.1} parent=11 // pred_check_branch
          %450 = sbr.rel (%p448) target = $region60
        $region59: #{tpu_custom_call.1} parent=11 // pred_region
          %452 = vsyncadd [#allocation9], 0
          %s453 = sshll.u32 %s13, 4
          %s454 = int_to_ptr.hbm [resolvable:$true] %s453
          %s455 = sshll.u32 [#allocation10], 4
          %s456 = int_to_ptr.vmem [resolvable:$true] %s455
          %461 = dma.hbm_to_vmem [thread:$0]  %s454, 32, %s456, [#allocation9], 16, 16, 1
        $region60: #{tpu_custom_call.1} parent=11 // pred_fallthru
          _
      $region12: #{tpu_custom_call.1} parent=5 // pred_fallthru
        _
      %p462 = scmp.lt.s32.totalorder %s26, 2
      // Predicated region
      $region61: #{tpu_custom_call.1} parent=5 // pred_check
        %p463 = pneg %p462
      $region62: #{tpu_custom_call.1} parent=5 // pred_check_branch
        %465 = sbr.rel (%p463) target = $region64
      $region63: #{tpu_custom_call.1} parent=5 // pred_region
        // Predicated region
        $region65: #{tpu_custom_call.1} parent=63 // pred_check
          %p466 = pneg %p46
        $region66: #{tpu_custom_call.1} parent=63 // pred_check_branch
          %468 = sbr.rel (%p466) target = $region68
        $region67: #{tpu_custom_call.1} parent=63 // pred_region
          %s469 = smul.u32 4, %s26
          %p470 = scmp.lt.s32.totalorder %s469, 7
          %s471 = scalar_select %p470, %s469, 7
          %s472 = smul.addr %s471, 8
          %s473 = scalar_lea.vmem %s0, %s472
          %s474 = smul.u32 4, %s26
        $region68: #{tpu_custom_call.1} parent=63 // pred_fallthru
          _
        // Predicated region
        $region69: #{tpu_custom_call.1} parent=63 // pred_check
          %p475 = pneg %p72
        $region70: #{tpu_custom_call.1} parent=63 // pred_check_branch
          %477 = sbr.rel (%p475) target = $region72
        $region71: #{tpu_custom_call.1} parent=63 // pred_region
          %s478 = smul.u32 4, %s26
          %p479 = scmp.lt.s32.totalorder %s478, 7
          %s480 = scalar_select %p479, %s478, 7
          %s481 = smul.addr %s480, 8
          %s482 = scalar_lea.vmem %s1, %s481
          %s483 = smul.u32 4, %s26
        $region72: #{tpu_custom_call.1} parent=63 // pred_fallthru
          _
      $region64: #{tpu_custom_call.1} parent=5 // pred_fallthru
        _
      %p484 = scmp.le.s32.totalorder 1, %s26
      %p485 = scmp.lt.s32.totalorder %s26, 3
      %p486 = pnand %p484, %p485
      %p487 = pneg %p486
      // Predicated region
      $region73: #{tpu_custom_call.1} parent=5 // pred_check
        _
      $region74: #{tpu_custom_call.1} parent=5 // pred_check_branch
        %489 = sbr.rel (%p486) target = $region76
      $region75: #{tpu_custom_call.1} parent=5 // pred_region
        %s490 = ssub.s32 %s26, 1
        // Predicated region
        $region77: #{tpu_custom_call.1} parent=75 // pred_check
          %p491 = pneg %p120
        $region78: #{tpu_custom_call.1} parent=75 // pred_check_branch
          %493 = sbr.rel (%p491) target = $region80
        $region79: #{tpu_custom_call.1} parent=75 // pred_region
          %495 = dma.done [#allocation3], 64
        $region80: #{tpu_custom_call.1} parent=75 // pred_fallthru
          _
        // Predicated region
        $region81: #{tpu_custom_call.1} parent=75 // pred_check
          %p496 = pneg %p162
        $region82: #{tpu_custom_call.1} parent=75 // pred_check_branch
          %498 = sbr.rel (%p496) target = $region84
        $region83: #{tpu_custom_call.1} parent=75 // pred_region
          %500 = dma.done [#allocation6], 32
        $region84: #{tpu_custom_call.1} parent=75 // pred_fallthru
          _
        // Predicated region
        $region85: #{tpu_custom_call.1} parent=75 // pred_check
          %p501 = pneg %p183
        $region86: #{tpu_custom_call.1} parent=75 // pred_check_branch
          %503 = sbr.rel (%p501) target = $region88
        $region87: #{tpu_custom_call.1} parent=75 // pred_region
          %505 = dma.done [#allocation6], 32
        $region88: #{tpu_custom_call.1} parent=75 // pred_fallthru
          _
        // Predicated region
        $region89: #{tpu_custom_call.1} parent=75 // pred_check
          %p506 = pneg %p204
        $region90: #{tpu_custom_call.1} parent=75 // pred_check_branch
          %508 = sbr.rel (%p506) target = $region92
        $region91: #{tpu_custom_call.1} parent=75 // pred_region
          %510 = dma.done [#allocation9], 32
        $region92: #{tpu_custom_call.1} parent=75 // pred_fallthru
          _
        // Predicated region
        $region93: #{tpu_custom_call.1} parent=75 // pred_check
          %p511 = pneg %p330
        $region94: #{tpu_custom_call.1} parent=75 // pred_check_branch
          %513 = sbr.rel (%p511) target = $region96
        $region95: #{tpu_custom_call.1} parent=75 // pred_region
          %515 = dma.done [#allocation9], 32
        $region96: #{tpu_custom_call.1} parent=75 // pred_fallthru
          _
        %s516 = smul.u32 4, %s31
        %p517 = scmp.lt.s32.totalorder %s516, 7
        %s518 = scalar_select %p517, %s516, 7
        %s519 = smul.addr %s518, 8
        %s520 = scalar_lea.vmem %s0, %s519
        %p521 = pneg %p52
        %p522 = pneg %p49
        %s523 = smul.u32 4, %s31
        %p524 = scmp.lt.s32.totalorder %s523, 7
        %s525 = scalar_select %p524, %s523, 7
        %s526 = smul.addr %s525, 8
        %s527 = scalar_lea.vmem %s1, %s526
        %p528 = pneg %p78
        %p529 = pneg %p75
        %p530 = pneg %p99
        %p531 = pneg %p96
        %p532 = pneg %p120
        %p533 = pneg %p117
        %p534 = pneg %p141
        %p535 = pneg %p138
        %p536 = pneg %p162
        %p537 = pneg %p159
        %p538 = pneg %p183
        %p539 = pneg %p180
        %p540 = pneg %p204
        %p541 = pneg %p201
        %p542 = pneg %p225
        %p543 = pneg %p222
        %p544 = pneg %p246
        %p545 = pneg %p243
        %p546 = pneg %p267
        %p547 = pneg %p264
        %p548 = pneg %p288
        %p549 = pneg %p285
        %p550 = pneg %p309
        %p551 = pneg %p306
        %p552 = pneg %p330
        %p553 = pneg %p327
        %p554 = pneg %p356
        %p555 = pneg %p353
        %s556 = sand.u32 %s343, 1
        %s557 = scalar_lea.sflag [#allocation4], %s556
        %s558 = sand.u32 %s343, 1
        %s559 = smul.addr %s558, 64
        %s560 = scalar_lea.vmem [#allocation11], %s559
        %s561 = smul.u32 4, %s31
        %p562 = scmp.lt.s32.totalorder %s561, 7
        %s563 = scalar_select %p562, %s561, 7
        %s564 = smul.addr %s563, 8
        %s565 = scalar_lea.vmem %s0, %s564
        %s566 = smul.u32 4, %s31
        %s567 = smul.u32 4, %s31
        %p568 = scmp.lt.s32.totalorder %s567, 7
        %s569 = scalar_select %p568, %s567, 7
        %s570 = smul.addr %s569, 8
        %s571 = scalar_lea.vmem %s1, %s570
        %s572 = smul.u32 4, %s31
        %s573 = smul.u32 4, %s31
        %v574 = vld [vmem:[%s565] sm:$0xff]
        %v575 = vld [vmem:[%s565 + $0x8] sm:$0xff]
        %v576 = vld [vmem:[%s565 + $0x10] sm:$0xff]
        %v577 = vld [vmem:[%s565 + $0x18] sm:$0xff]
        %v578 = vld [vmem:[%s571] sm:$0xff]
        %v579 = vld [vmem:[%s571 + $0x8] sm:$0xff]
        %v580 = vld [vmem:[%s571 + $0x10] sm:$0xff]
        %v581 = vld [vmem:[%s571 + $0x18] sm:$0xff]
        %v582 = vld [vmem:[%s2] sm:$0xff]
        %v583 = vld [vmem:[%s2 + $0x8] sm:$0xff]
        %v584 = vld [vmem:[%s2 + $0x10] sm:$0xff]
        %v585 = vld [vmem:[%s2 + $0x18] sm:$0xff]
        %v586 = vld [vmem:[%s2 + $0x20] sm:$0xff]
        %v587 = vld [vmem:[%s2 + $0x28] sm:$0xff]
        %v588 = vld [vmem:[%s2 + $0x30] sm:$0xff]
        %v589 = vld [vmem:[%s2 + $0x38] sm:$0xff]
        %v590 = vld [vmem:[%s2 + $0x40] sm:$0xff]
        %v591 = vld [vmem:[%s2 + $0x48] sm:$0xff]
        %v592 = vld [vmem:[%s2 + $0x50] sm:$0xff]
        %v593 = vld [vmem:[%s2 + $0x58] sm:$0xff]
        %v594 = vld [vmem:[%s2 + $0x60] sm:$0xff]
        %v595 = vld [vmem:[%s2 + $0x68] sm:$0xff]
        %v596 = vld [vmem:[%s2 + $0x70] sm:$0xff]
        %v597 = vld [vmem:[%s2 + $0x78] sm:$0xff]
        %v598 = vld [vmem:[#allocation2] sm:$0x3]
        %v600 = vperm.slane %v598, 0
        %v601 = vperm.slane %v598, 1
        %vm604 = vcmask 523264
        %v606 = vsel %vm604, %v574, 0
        %v609 = vsel %vm604, %v575, 0
        %v612 = vsel %vm604, %v576, 0
        %v615 = vsel %vm604, %v577, 0
        %617 = vmatpush.msra.mxu0 0.0
        %618 = vmatpush.msra.mxu0 0.0
        %619 = vmatpush.msra.mxu0 0.0
        %620 = vmatpush.msra.mxu0 0.0
        %621 = vmatpush.msra.mxu0 0.0
        %622 = vmatpush.msra.mxu0 0.0
        %623 = vmatpush.msra.mxu0 0.0
        %624 = vmatpush.msra.mxu0 0.0
        %625 = vmatpush.msra.mxu0 %v596
        %626 = vmatpush.msra.mxu0 %v594
        %627 = vmatpush.msra.mxu0 %v592
        %628 = vmatpush.msra.mxu0 %v590
        %629 = vmatpush.msra.mxu0 %v588
        %630 = vmatpush.msra.mxu0 %v586
        %631 = vmatpush.msra.mxu0 %v584
        %632 = vmatpush.msra.mxu0 %v582
        %633 = vmatmul.f32.gmra.mxu0 %v606
        %v634 = vpop.f32.mrf.mxu0
        %v635 = vadd.f32 %v600, %v634
        %636 = vmatmul.f32.gmra.mxu0 %v609
        %v637 = vpop.f32.mrf.mxu0
        %v638 = vadd.f32 %v600, %v637
        %639 = vmatmul.f32.gmra.mxu0 %v612
        %v640 = vpop.f32.mrf.mxu0
        %v641 = vadd.f32 %v600, %v640
        %642 = vmatmul.f32.gmra.mxu0 %v615
        %v643 = vpop.f32.mrf.mxu0
        %v644 = vadd.f32 %v600, %v643
        %645 = vdwg.mxu0
        %646 = vmatpush.msra.mxu0 0.0
        %647 = vmatpush.msra.mxu0 0.0
        %648 = vmatpush.msra.mxu0 0.0
        %649 = vmatpush.msra.mxu0 0.0
        %650 = vmatpush.msra.mxu0 0.0
        %651 = vmatpush.msra.mxu0 0.0
        %652 = vmatpush.msra.mxu0 0.0
        %653 = vmatpush.msra.mxu0 0.0
        %654 = vmatpush.msra.mxu0 %v597
        %655 = vmatpush.msra.mxu0 %v595
        %656 = vmatpush.msra.mxu0 %v593
        %657 = vmatpush.msra.mxu0 %v591
        %658 = vmatpush.msra.mxu0 %v589
        %659 = vmatpush.msra.mxu0 %v587
        %660 = vmatpush.msra.mxu0 %v585
        %661 = vmatpush.msra.mxu0 %v583
        %662 = vmatmul.f32.gmra.mxu0 %v606
        %v663 = vpop.f32.mrf.mxu0
        %v664 = vadd.f32 %v601, %v663
        %665 = vmatmul.f32.gmra.mxu0 %v609
        %v666 = vpop.f32.mrf.mxu0
        %v667 = vadd.f32 %v601, %v666
        %668 = vmatmul.f32.gmra.mxu0 %v612
        %v669 = vpop.f32.mrf.mxu0
        %v670 = vadd.f32 %v601, %v669
        %671 = vmatmul.f32.gmra.mxu0 %v615
        %v672 = vpop.f32.mrf.mxu0
        %v673 = vadd.f32 %v601, %v672
        %674 = vdwg.mxu0
        %676 = vrot.lane.b32.xlu0 %v635, 64
        %v677 = vpop.permute.xlu0 %676
        %vm678 = vcmask 261120
        %v679 = vsel %vm678, %v635, 0
        %v681 = vsel %vm678, %v677, 0
        %683 = vmatpush.xpose.msra.mxu0 0.0
        %684 = vmatpush.xpose.msra.mxu0 0.0
        %685 = vmatpush.xpose.msra.mxu0 0.0
        %686 = vmatpush.xpose.msra.mxu0 0.0
        %687 = vmatpush.xpose.msra.mxu0 0.0
        %688 = vmatpush.xpose.msra.mxu0 0.0
        %689 = vmatpush.xpose.msra.mxu0 0.0
        %690 = vmatpush.xpose.msra.mxu0 0.0
        %691 = vmatpush.xpose.msra.mxu0 0.0
        %692 = vmatpush.xpose.msra.mxu0 0.0
        %693 = vmatpush.xpose.msra.mxu0 0.0
        %694 = vmatpush.xpose.msra.mxu0 0.0
        %695 = vmatpush.xpose.msra.mxu0 0.0
        %696 = vmatpush.xpose.msra.mxu0 0.0
        %697 = vmatpush.xpose.msra.mxu0 0.0
        %698 = vmatpush.xpose.msra.mxu0 %v681
        %699 = vmatmul.f32.gmra.mxu0 %v679
        %v700 = vpop.f32.mrf.mxu0
        %v701 = vadd.f32 0.0, %v700
        %702 = vdwg.mxu0
        %704 = vrot.lane.b32.xlu0 %v638, 64
        %v705 = vpop.permute.xlu0 %704
        %v706 = vsel %vm678, %v638, 0
        %v708 = vsel %vm678, %v705, 0
        %710 = vmatpush.xpose.msra.mxu0 0.0
        %711 = vmatpush.xpose.msra.mxu0 0.0
        %712 = vmatpush.xpose.msra.mxu0 0.0
        %713 = vmatpush.xpose.msra.mxu0 0.0
        %714 = vmatpush.xpose.msra.mxu0 0.0
        %715 = vmatpush.xpose.msra.mxu0 0.0
        %716 = vmatpush.xpose.msra.mxu0 0.0
        %717 = vmatpush.xpose.msra.mxu0 0.0
        %718 = vmatpush.xpose.msra.mxu0 0.0
        %719 = vmatpush.xpose.msra.mxu0 0.0
        %720 = vmatpush.xpose.msra.mxu0 0.0
        %721 = vmatpush.xpose.msra.mxu0 0.0
        %722 = vmatpush.xpose.msra.mxu0 0.0
        %723 = vmatpush.xpose.msra.mxu0 0.0
        %724 = vmatpush.xpose.msra.mxu0 0.0
        %725 = vmatpush.xpose.msra.mxu0 %v708
        %726 = vmatmul.f32.gmra.mxu0 %v706
        %v727 = vpop.f32.mrf.mxu0
        %v728 = vadd.f32 0.0, %v727
        %729 = vdwg.mxu0
        %731 = vrot.lane.b32.xlu0 %v641, 64
        %v732 = vpop.permute.xlu0 %731
        %v733 = vsel %vm678, %v641, 0
        %v735 = vsel %vm678, %v732, 0
        %737 = vmatpush.xpose.msra.mxu0 0.0
        %738 = vmatpush.xpose.msra.mxu0 0.0
        %739 = vmatpush.xpose.msra.mxu0 0.0
        %740 = vmatpush.xpose.msra.mxu0 0.0
        %741 = vmatpush.xpose.msra.mxu0 0.0
        %742 = vmatpush.xpose.msra.mxu0 0.0
        %743 = vmatpush.xpose.msra.mxu0 0.0
        %744 = vmatpush.xpose.msra.mxu0 0.0
        %745 = vmatpush.xpose.msra.mxu0 0.0
        %746 = vmatpush.xpose.msra.mxu0 0.0
        %747 = vmatpush.xpose.msra.mxu0 0.0
        %748 = vmatpush.xpose.msra.mxu0 0.0
        %749 = vmatpush.xpose.msra.mxu0 0.0
        %750 = vmatpush.xpose.msra.mxu0 0.0
        %751 = vmatpush.xpose.msra.mxu0 0.0
        %752 = vmatpush.xpose.msra.mxu0 %v735
        %753 = vmatmul.f32.gmra.mxu0 %v733
        %v754 = vpop.f32.mrf.mxu0
        %v755 = vadd.f32 0.0, %v754
        %756 = vdwg.mxu0
        %758 = vrot.lane.b32.xlu0 %v644, 64
        %v759 = vpop.permute.xlu0 %758
        %v760 = vsel %vm678, %v644, 0
        %v762 = vsel %vm678, %v759, 0
        %764 = vmatpush.xpose.msra.mxu0 0.0
        %765 = vmatpush.xpose.msra.mxu0 0.0
        %766 = vmatpush.xpose.msra.mxu0 0.0
        %767 = vmatpush.xpose.msra.mxu0 0.0
        %768 = vmatpush.xpose.msra.mxu0 0.0
        %769 = vmatpush.xpose.msra.mxu0 0.0
        %770 = vmatpush.xpose.msra.mxu0 0.0
        %771 = vmatpush.xpose.msra.mxu0 0.0
        %772 = vmatpush.xpose.msra.mxu0 0.0
        %773 = vmatpush.xpose.msra.mxu0 0.0
        %774 = vmatpush.xpose.msra.mxu0 0.0
        %775 = vmatpush.xpose.msra.mxu0 0.0
        %776 = vmatpush.xpose.msra.mxu0 0.0
        %777 = vmatpush.xpose.msra.mxu0 0.0
        %778 = vmatpush.xpose.msra.mxu0 0.0
        %779 = vmatpush.xpose.msra.mxu0 %v762
        %780 = vmatmul.f32.gmra.mxu0 %v760
        %v781 = vpop.f32.mrf.mxu0
        %v782 = vadd.f32 0.0, %v781
        %783 = vdwg.mxu0
        %v784 = vmul.f32 %v701, 0.17677669
        %v785 = vmul.f32 %v728, 0.17677669
        %v786 = vmul.f32 %v755, 0.17677669
        %v787 = vmul.f32 %v782, 0.17677669
        %v788 = vadd.f32 %v784, %v578
        %v789 = vadd.f32 %v785, %v579
        %v790 = vadd.f32 %v786, %v580
        %v791 = vadd.f32 %v787, %v581
        %vm792 = vcmask 64512
        %v793 = vsel %vm792, %v788, -inf
        %794 = vmax.xlane.f32.xlu0 %v793
        %v795 = vpop.xlane.xlu0 %794
        %v796 = vsel %vm792, %v789, -inf
        %797 = vmax.xlane.f32.xlu0 %v796
        %v798 = vpop.xlane.xlu0 %797
        %v799 = vsel %vm792, %v790, -inf
        %800 = vmax.xlane.f32.xlu0 %v799
        %v801 = vpop.xlane.xlu0 %800
        %v802 = vsel %vm792, %v791, -inf
        %803 = vmax.xlane.f32.xlu0 %v802
        %v804 = vpop.xlane.xlu0 %803
        %v805 = vsub.f32 %v788, %v795
        %v806 = vsub.f32 %v789, %v798
        %v807 = vsub.f32 %v790, %v801
        %v808 = vsub.f32 %v791, %v804
        %v809 = vmul.f32 %v805, 1.442695
        %v810 = vpow.pop %v809
        %v811 = vmul.f32 %v806, 1.442695
        %v812 = vpow.pop %v811
        %v813 = vmul.f32 %v807, 1.442695
        %v814 = vpow.pop %v813
        %v815 = vmul.f32 %v808, 1.442695
        %v816 = vpow.pop %v815
        %v817 = vsel %vm792, %v810, 0.0
        %818 = vadd.xlane.f32.xlu0 %v817
        %v819 = vpop.xlane.xlu0 %818
        %v820 = vsel %vm792, %v812, 0.0
        %821 = vadd.xlane.f32.xlu0 %v820
        %v822 = vpop.xlane.xlu0 %821
        %v823 = vsel %vm792, %v814, 0.0
        %824 = vadd.xlane.f32.xlu0 %v823
        %v825 = vpop.xlane.xlu0 %824
        %v826 = vsel %vm792, %v816, 0.0
        %827 = vadd.xlane.f32.xlu0 %v826
        %v828 = vpop.xlane.xlu0 %827
        %v829 = vrcp.pop %v819
        %v830 = vrcp.pop %v822
        %v831 = vrcp.pop %v825
        %v832 = vrcp.pop %v828
        %v833 = vmul.f32 %v810, %v829
        %v834 = vmul.f32 %v812, %v830
        %v835 = vmul.f32 %v814, %v831
        %v836 = vmul.f32 %v816, %v832
        %v838 = vsel %vm792, %v833, 0
        %840 = vmatpush.msra.mxu0 0.0
        %841 = vmatpush.msra.mxu0 0.0
        %842 = vmatpush.msra.mxu0 0.0
        %843 = vmatpush.msra.mxu0 0.0
        %844 = vmatpush.msra.mxu0 0.0
        %845 = vmatpush.msra.mxu0 0.0
        %846 = vmatpush.msra.mxu0 0.0
        %847 = vmatpush.msra.mxu0 0.0
        %848 = vmatpush.msra.mxu0 0.0
        %849 = vmatpush.msra.mxu0 0.0
        %850 = vmatpush.msra.mxu0 0.0
        %851 = vmatpush.msra.mxu0 0.0
        %852 = vmatpush.msra.mxu0 0.0
        %853 = vmatpush.msra.mxu0 0.0
        %854 = vmatpush.msra.mxu0 0.0
        %855 = vmatpush.msra.mxu0 %v664
        %856 = vmatmul.f32.gmra.mxu0 %v838
        %v857 = vpop.f32.mrf.mxu0
        %v858 = vadd.f32 0.0, %v857
        %859 = vdwg.mxu0
        %v861 = vsel %vm792, %v834, 0
        %863 = vmatpush.msra.mxu0 0.0
        %864 = vmatpush.msra.mxu0 0.0
        %865 = vmatpush.msra.mxu0 0.0
        %866 = vmatpush.msra.mxu0 0.0
        %867 = vmatpush.msra.mxu0 0.0
        %868 = vmatpush.msra.mxu0 0.0
        %869 = vmatpush.msra.mxu0 0.0
        %870 = vmatpush.msra.mxu0 0.0
        %871 = vmatpush.msra.mxu0 0.0
        %872 = vmatpush.msra.mxu0 0.0
        %873 = vmatpush.msra.mxu0 0.0
        %874 = vmatpush.msra.mxu0 0.0
        %875 = vmatpush.msra.mxu0 0.0
        %876 = vmatpush.msra.mxu0 0.0
        %877 = vmatpush.msra.mxu0 0.0
        %878 = vmatpush.msra.mxu0 %v667
        %879 = vmatmul.f32.gmra.mxu0 %v861
        %v880 = vpop.f32.mrf.mxu0
        %v881 = vadd.f32 0.0, %v880
        %882 = vdwg.mxu0
        %v884 = vsel %vm792, %v835, 0
        %886 = vmatpush.msra.mxu0 0.0
        %887 = vmatpush.msra.mxu0 0.0
        %888 = vmatpush.msra.mxu0 0.0
        %889 = vmatpush.msra.mxu0 0.0
        %890 = vmatpush.msra.mxu0 0.0
        %891 = vmatpush.msra.mxu0 0.0
        %892 = vmatpush.msra.mxu0 0.0
        %893 = vmatpush.msra.mxu0 0.0
        %894 = vmatpush.msra.mxu0 0.0
        %895 = vmatpush.msra.mxu0 0.0
        %896 = vmatpush.msra.mxu0 0.0
        %897 = vmatpush.msra.mxu0 0.0
        %898 = vmatpush.msra.mxu0 0.0
        %899 = vmatpush.msra.mxu0 0.0
        %900 = vmatpush.msra.mxu0 0.0
        %901 = vmatpush.msra.mxu0 %v670
        %902 = vmatmul.f32.gmra.mxu0 %v884
        %v903 = vpop.f32.mrf.mxu0
        %v904 = vadd.f32 0.0, %v903
        %905 = vdwg.mxu0
        %v907 = vsel %vm792, %v836, 0
        %909 = vmatpush.msra.mxu0 0.0
        %910 = vmatpush.msra.mxu0 0.0
        %911 = vmatpush.msra.mxu0 0.0
        %912 = vmatpush.msra.mxu0 0.0
        %913 = vmatpush.msra.mxu0 0.0
        %914 = vmatpush.msra.mxu0 0.0
        %915 = vmatpush.msra.mxu0 0.0
        %916 = vmatpush.msra.mxu0 0.0
        %917 = vmatpush.msra.mxu0 0.0
        %918 = vmatpush.msra.mxu0 0.0
        %919 = vmatpush.msra.mxu0 0.0
        %920 = vmatpush.msra.mxu0 0.0
        %921 = vmatpush.msra.mxu0 0.0
        %922 = vmatpush.msra.mxu0 0.0
        %923 = vmatpush.msra.mxu0 0.0
        %924 = vmatpush.msra.mxu0 %v673
        %925 = vmatmul.f32.gmra.mxu0 %v907
        %v926 = vpop.f32.mrf.mxu0
        %v927 = vadd.f32 0.0, %v926
        %928 = vdwg.mxu0
        %929 = vrot.lane.b32.xlu0 %v635, 96
        %v930 = vpop.permute.xlu0 %929
        %931 = vrot.lane.b32.xlu0 %v635, 32
        %v932 = vpop.permute.xlu0 %931
        %v933 = vsel %vm678, %v930, 0
        %v935 = vsel %vm678, %v932, 0
        %937 = vmatpush.xpose.msra.mxu0 0.0
        %938 = vmatpush.xpose.msra.mxu0 0.0
        %939 = vmatpush.xpose.msra.mxu0 0.0
        %940 = vmatpush.xpose.msra.mxu0 0.0
        %941 = vmatpush.xpose.msra.mxu0 0.0
        %942 = vmatpush.xpose.msra.mxu0 0.0
        %943 = vmatpush.xpose.msra.mxu0 0.0
        %944 = vmatpush.xpose.msra.mxu0 0.0
        %945 = vmatpush.xpose.msra.mxu0 0.0
        %946 = vmatpush.xpose.msra.mxu0 0.0
        %947 = vmatpush.xpose.msra.mxu0 0.0
        %948 = vmatpush.xpose.msra.mxu0 0.0
        %949 = vmatpush.xpose.msra.mxu0 0.0
        %950 = vmatpush.xpose.msra.mxu0 0.0
        %951 = vmatpush.xpose.msra.mxu0 0.0
        %952 = vmatpush.xpose.msra.mxu0 %v935
        %953 = vmatmul.f32.gmra.mxu0 %v933
        %v954 = vpop.f32.mrf.mxu0
        %v955 = vadd.f32 0.0, %v954
        %956 = vdwg.mxu0
        %957 = vrot.lane.b32.xlu0 %v638, 96
        %v958 = vpop.permute.xlu0 %957
        %959 = vrot.lane.b32.xlu0 %v638, 32
        %v960 = vpop.permute.xlu0 %959
        %v961 = vsel %vm678, %v958, 0
        %v963 = vsel %vm678, %v960, 0
        %965 = vmatpush.xpose.msra.mxu0 0.0
        %966 = vmatpush.xpose.msra.mxu0 0.0
        %967 = vmatpush.xpose.msra.mxu0 0.0
        %968 = vmatpush.xpose.msra.mxu0 0.0
        %969 = vmatpush.xpose.msra.mxu0 0.0
        %970 = vmatpush.xpose.msra.mxu0 0.0
        %971 = vmatpush.xpose.msra.mxu0 0.0
        %972 = vmatpush.xpose.msra.mxu0 0.0
        %973 = vmatpush.xpose.msra.mxu0 0.0
        %974 = vmatpush.xpose.msra.mxu0 0.0
        %975 = vmatpush.xpose.msra.mxu0 0.0
        %976 = vmatpush.xpose.msra.mxu0 0.0
        %977 = vmatpush.xpose.msra.mxu0 0.0
        %978 = vmatpush.xpose.msra.mxu0 0.0
        %979 = vmatpush.xpose.msra.mxu0 0.0
        %980 = vmatpush.xpose.msra.mxu0 %v963
        %981 = vmatmul.f32.gmra.mxu0 %v961
        %v982 = vpop.f32.mrf.mxu0
        %v983 = vadd.f32 0.0, %v982
        %984 = vdwg.mxu0
        %985 = vrot.lane.b32.xlu0 %v641, 96
        %v986 = vpop.permute.xlu0 %985
        %987 = vrot.lane.b32.xlu0 %v641, 32
        %v988 = vpop.permute.xlu0 %987
        %v989 = vsel %vm678, %v986, 0
        %v991 = vsel %vm678, %v988, 0
        %993 = vmatpush.xpose.msra.mxu0 0.0
        %994 = vmatpush.xpose.msra.mxu0 0.0
        %995 = vmatpush.xpose.msra.mxu0 0.0
        %996 = vmatpush.xpose.msra.mxu0 0.0
        %997 = vmatpush.xpose.msra.mxu0 0.0
        %998 = vmatpush.xpose.msra.mxu0 0.0
        %999 = vmatpush.xpose.msra.mxu0 0.0
        %1000 = vmatpush.xpose.msra.mxu0 0.0
        %1001 = vmatpush.xpose.msra.mxu0 0.0
        %1002 = vmatpush.xpose.msra.mxu0 0.0
        %1003 = vmatpush.xpose.msra.mxu0 0.0
        %1004 = vmatpush.xpose.msra.mxu0 0.0
        %1005 = vmatpush.xpose.msra.mxu0 0.0
        %1006 = vmatpush.xpose.msra.mxu0 0.0
        %1007 = vmatpush.xpose.msra.mxu0 0.0
        %1008 = vmatpush.xpose.msra.mxu0 %v991
        %1009 = vmatmul.f32.gmra.mxu0 %v989
        %v1010 = vpop.f32.mrf.mxu0
        %v1011 = vadd.f32 0.0, %v1010
        %1012 = vdwg.mxu0
        %1013 = vrot.lane.b32.xlu0 %v644, 96
        %v1014 = vpop.permute.xlu0 %1013
        %1015 = vrot.lane.b32.xlu0 %v644, 32
        %v1016 = vpop.permute.xlu0 %1015
        %v1017 = vsel %vm678, %v1014, 0
        %v1019 = vsel %vm678, %v1016, 0
        %1021 = vmatpush.xpose.msra.mxu0 0.0
        %1022 = vmatpush.xpose.msra.mxu0 0.0
        %1023 = vmatpush.xpose.msra.mxu0 0.0
        %1024 = vmatpush.xpose.msra.mxu0 0.0
        %1025 = vmatpush.xpose.msra.mxu0 0.0
        %1026 = vmatpush.xpose.msra.mxu0 0.0
        %1027 = vmatpush.xpose.msra.mxu0 0.0
        %1028 = vmatpush.xpose.msra.mxu0 0.0
        %1029 = vmatpush.xpose.msra.mxu0 0.0
        %1030 = vmatpush.xpose.msra.mxu0 0.0
        %1031 = vmatpush.xpose.msra.mxu0 0.0
        %1032 = vmatpush.xpose.msra.mxu0 0.0
        %1033 = vmatpush.xpose.msra.mxu0 0.0
        %1034 = vmatpush.xpose.msra.mxu0 0.0
        %1035 = vmatpush.xpose.msra.mxu0 0.0
        %1036 = vmatpush.xpose.msra.mxu0 %v1019
        %1037 = vmatmul.f32.gmra.mxu0 %v1017
        %v1038 = vpop.f32.mrf.mxu0
        %v1039 = vadd.f32 0.0, %v1038
        %1040 = vdwg.mxu0
        %v1041 = vmul.f32 %v955, 0.17677669
        %v1042 = vmul.f32 %v983, 0.17677669
        %v1043 = vmul.f32 %v1011, 0.17677669
        %v1044 = vmul.f32 %v1039, 0.17677669
        %v1045 = vadd.f32 %v1041, %v578
        %v1046 = vadd.f32 %v1042, %v579
        %v1047 = vadd.f32 %v1043, %v580
        %v1048 = vadd.f32 %v1044, %v581
        %v1049 = vsel %vm792, %v1045, -inf
        %1050 = vmax.xlane.f32.xlu0 %v1049
        %v1051 = vpop.xlane.xlu0 %1050
        %v1052 = vsel %vm792, %v1046, -inf
        %1053 = vmax.xlane.f32.xlu0 %v1052
        %v1054 = vpop.xlane.xlu0 %1053
        %v1055 = vsel %vm792, %v1047, -inf
        %1056 = vmax.xlane.f32.xlu0 %v1055
        %v1057 = vpop.xlane.xlu0 %1056
        %v1058 = vsel %vm792, %v1048, -inf
        %1059 = vmax.xlane.f32.xlu0 %v1058
        %v1060 = vpop.xlane.xlu0 %1059
        %v1061 = vsub.f32 %v1045, %v1051
        %v1062 = vsub.f32 %v1046, %v1054
        %v1063 = vsub.f32 %v1047, %v1057
        %v1064 = vsub.f32 %v1048, %v1060
        %v1065 = vmul.f32 %v1061, 1.442695
        %v1066 = vpow.pop %v1065
        %v1067 = vmul.f32 %v1062, 1.442695
        %v1068 = vpow.pop %v1067
        %v1069 = vmul.f32 %v1063, 1.442695
        %v1070 = vpow.pop %v1069
        %v1071 = vmul.f32 %v1064, 1.442695
        %v1072 = vpow.pop %v1071
        %v1073 = vsel %vm792, %v1066, 0.0
        %1074 = vadd.xlane.f32.xlu0 %v1073
        %v1075 = vpop.xlane.xlu0 %1074
        %v1076 = vsel %vm792, %v1068, 0.0
        %1077 = vadd.xlane.f32.xlu0 %v1076
        %v1078 = vpop.xlane.xlu0 %1077
        %v1079 = vsel %vm792, %v1070, 0.0
        %1080 = vadd.xlane.f32.xlu0 %v1079
        %v1081 = vpop.xlane.xlu0 %1080
        %v1082 = vsel %vm792, %v1072, 0.0
        %1083 = vadd.xlane.f32.xlu0 %v1082
        %v1084 = vpop.xlane.xlu0 %1083
        %v1085 = vrcp.pop %v1075
        %v1086 = vrcp.pop %v1078
        %v1087 = vrcp.pop %v1081
        %v1088 = vrcp.pop %v1084
        %v1089 = vmul.f32 %v1066, %v1085
        %v1090 = vmul.f32 %v1068, %v1086
        %v1091 = vmul.f32 %v1070, %v1087
        %v1092 = vmul.f32 %v1072, %v1088
        %1094 = vrot.lane.b32.xlu0 %v664, 96
        %v1095 = vpop.permute.xlu0 %1094
        %v1098 = vsel %vm792, %v1089, 0
        %1100 = vmatpush.msra.mxu0 0.0
        %1101 = vmatpush.msra.mxu0 0.0
        %1102 = vmatpush.msra.mxu0 0.0
        %1103 = vmatpush.msra.mxu0 0.0
        %1104 = vmatpush.msra.mxu0 0.0
        %1105 = vmatpush.msra.mxu0 0.0
        %1106 = vmatpush.msra.mxu0 0.0
        %1107 = vmatpush.msra.mxu0 0.0
        %1108 = vmatpush.msra.mxu0 0.0
        %1109 = vmatpush.msra.mxu0 0.0
        %1110 = vmatpush.msra.mxu0 0.0
        %1111 = vmatpush.msra.mxu0 0.0
        %1112 = vmatpush.msra.mxu0 0.0
        %1113 = vmatpush.msra.mxu0 0.0
        %1114 = vmatpush.msra.mxu0 0.0
        %1115 = vmatpush.msra.mxu0 %v1095
        %1116 = vmatmul.f32.gmra.mxu0 %v1098
        %v1117 = vpop.f32.mrf.mxu0
        %v1118 = vadd.f32 0.0, %v1117
        %1119 = vdwg.mxu0
        %1121 = vrot.lane.b32.xlu0 %v667, 96
        %v1122 = vpop.permute.xlu0 %1121
        %v1125 = vsel %vm792, %v1090, 0
        %1127 = vmatpush.msra.mxu0 0.0
        %1128 = vmatpush.msra.mxu0 0.0
        %1129 = vmatpush.msra.mxu0 0.0
        %1130 = vmatpush.msra.mxu0 0.0
        %1131 = vmatpush.msra.mxu0 0.0
        %1132 = vmatpush.msra.mxu0 0.0
        %1133 = vmatpush.msra.mxu0 0.0
        %1134 = vmatpush.msra.mxu0 0.0
        %1135 = vmatpush.msra.mxu0 0.0
        %1136 = vmatpush.msra.mxu0 0.0
        %1137 = vmatpush.msra.mxu0 0.0
        %1138 = vmatpush.msra.mxu0 0.0
        %1139 = vmatpush.msra.mxu0 0.0
        %1140 = vmatpush.msra.mxu0 0.0
        %1141 = vmatpush.msra.mxu0 0.0
        %1142 = vmatpush.msra.mxu0 %v1122
        %1143 = vmatmul.f32.gmra.mxu0 %v1125
        %v1144 = vpop.f32.mrf.mxu0
        %v1145 = vadd.f32 0.0, %v1144
        %1146 = vdwg.mxu0
        %1148 = vrot.lane.b32.xlu0 %v670, 96
        %v1149 = vpop.permute.xlu0 %1148
        %v1152 = vsel %vm792, %v1091, 0
        %1154 = vmatpush.msra.mxu0 0.0
        %1155 = vmatpush.msra.mxu0 0.0
        %1156 = vmatpush.msra.mxu0 0.0
        %1157 = vmatpush.msra.mxu0 0.0
        %1158 = vmatpush.msra.mxu0 0.0
        %1159 = vmatpush.msra.mxu0 0.0
        %1160 = vmatpush.msra.mxu0 0.0
        %1161 = vmatpush.msra.mxu0 0.0
        %1162 = vmatpush.msra.mxu0 0.0
        %1163 = vmatpush.msra.mxu0 0.0
        %1164 = vmatpush.msra.mxu0 0.0
        %1165 = vmatpush.msra.mxu0 0.0
        %1166 = vmatpush.msra.mxu0 0.0
        %1167 = vmatpush.msra.mxu0 0.0
        %1168 = vmatpush.msra.mxu0 0.0
        %1169 = vmatpush.msra.mxu0 %v1149
        %1170 = vmatmul.f32.gmra.mxu0 %v1152
        %v1171 = vpop.f32.mrf.mxu0
        %v1172 = vadd.f32 0.0, %v1171
        %1173 = vdwg.mxu0
        %1175 = vrot.lane.b32.xlu0 %v673, 96
        %v1176 = vpop.permute.xlu0 %1175
        %v1179 = vsel %vm792, %v1092, 0
        %1181 = vmatpush.msra.mxu0 0.0
        %1182 = vmatpush.msra.mxu0 0.0
        %1183 = vmatpush.msra.mxu0 0.0
        %1184 = vmatpush.msra.mxu0 0.0
        %1185 = vmatpush.msra.mxu0 0.0
        %1186 = vmatpush.msra.mxu0 0.0
        %1187 = vmatpush.msra.mxu0 0.0
        %1188 = vmatpush.msra.mxu0 0.0
        %1189 = vmatpush.msra.mxu0 0.0
        %1190 = vmatpush.msra.mxu0 0.0
        %1191 = vmatpush.msra.mxu0 0.0
        %1192 = vmatpush.msra.mxu0 0.0
        %1193 = vmatpush.msra.mxu0 0.0
        %1194 = vmatpush.msra.mxu0 0.0
        %1195 = vmatpush.msra.mxu0 0.0
        %1196 = vmatpush.msra.mxu0 %v1176
        %1197 = vmatmul.f32.gmra.mxu0 %v1179
        %v1198 = vpop.f32.mrf.mxu0
        %v1199 = vadd.f32 0.0, %v1198
        %1200 = vdwg.mxu0
        %1205 = vrot.lane.b32.xlu0 %v1118, 32
        %v1206 = vpop.permute.xlu0 %1205
        %1207 = vrot.lane.b32.xlu0 %v1145, 32
        %v1208 = vpop.permute.xlu0 %1207
        %1209 = vrot.lane.b32.xlu0 %v1172, 32
        %v1210 = vpop.permute.xlu0 %1209
        %1211 = vrot.lane.b32.xlu0 %v1199, 32
        %v1212 = vpop.permute.xlu0 %1211
        %v1217 = vsel %vm678, %v858, %v1206
        %v1218 = vsel %vm678, %v881, %v1208
        %v1219 = vsel %vm678, %v904, %v1210
        %v1220 = vsel %vm678, %v927, %v1212
        %v1221 = vld [vmem:[%s4] sm:$0xff]
        %v1222 = vld [vmem:[%s4 + $0x8] sm:$0xff]
        %v1223 = vld [vmem:[%s4 + $0x10] sm:$0xff]
        %v1224 = vld [vmem:[%s4 + $0x18] sm:$0xff]
        %v1225 = vld [vmem:[%s4 + $0x20] sm:$0xff]
        %v1226 = vld [vmem:[%s4 + $0x28] sm:$0xff]
        %v1227 = vld [vmem:[%s4 + $0x30] sm:$0xff]
        %v1228 = vld [vmem:[%s4 + $0x38] sm:$0xff]
        %v1229 = vld [vmem:[#allocation5] sm:$0x1]
        %v1231 = vperm.slane %v1229, 0
        %v1234 = vsel %vm604, %v1217, 0
        %v1237 = vsel %vm604, %v1218, 0
        %v1240 = vsel %vm604, %v1219, 0
        %v1243 = vsel %vm604, %v1220, 0
        %1245 = vmatpush.msra.mxu0 0.0
        %1246 = vmatpush.msra.mxu0 0.0
        %1247 = vmatpush.msra.mxu0 0.0
        %1248 = vmatpush.msra.mxu0 0.0
        %1249 = vmatpush.msra.mxu0 0.0
        %1250 = vmatpush.msra.mxu0 0.0
        %1251 = vmatpush.msra.mxu0 0.0
        %1252 = vmatpush.msra.mxu0 0.0
        %1253 = vmatpush.msra.mxu0 %v1228
        %1254 = vmatpush.msra.mxu0 %v1227
        %1255 = vmatpush.msra.mxu0 %v1226
        %1256 = vmatpush.msra.mxu0 %v1225
        %1257 = vmatpush.msra.mxu0 %v1224
        %1258 = vmatpush.msra.mxu0 %v1223
        %1259 = vmatpush.msra.mxu0 %v1222
        %1260 = vmatpush.msra.mxu0 %v1221
        %1261 = vmatmul.f32.gmra.mxu0 %v1234
        %v1262 = vpop.f32.mrf.mxu0
        %v1263 = vadd.f32 %v1231, %v1262
        %1264 = vmatmul.f32.gmra.mxu0 %v1237
        %v1265 = vpop.f32.mrf.mxu0
        %v1266 = vadd.f32 %v1231, %v1265
        %1267 = vmatmul.f32.gmra.mxu0 %v1240
        %v1268 = vpop.f32.mrf.mxu0
        %v1269 = vadd.f32 %v1231, %v1268
        %1270 = vmatmul.f32.gmra.mxu0 %v1243
        %v1271 = vpop.f32.mrf.mxu0
        %v1272 = vadd.f32 %v1231, %v1271
        %1273 = vdwg.mxu0
        %v1274 = vadd.f32 %v1263, %v574
        %v1275 = vadd.f32 %v1266, %v575
        %v1276 = vadd.f32 %v1269, %v576
        %v1277 = vadd.f32 %v1272, %v577
        %v1278 = vld [vmem:[#allocation7] sm:$0x1]
        %v1279 = vld [vmem:[#allocation8] sm:$0x1]
        %v1280 = vsel %vm604, %v1274, 0.0
        %1281 = vadd.xlane.f32.xlu0 %v1280
        %v1282 = vpop.xlane.xlu0 %1281
        %v1283 = vsel %vm604, %v1275, 0.0
        %1284 = vadd.xlane.f32.xlu0 %v1283
        %v1285 = vpop.xlane.xlu0 %1284
        %v1286 = vsel %vm604, %v1276, 0.0
        %1287 = vadd.xlane.f32.xlu0 %v1286
        %v1288 = vpop.xlane.xlu0 %1287
        %v1289 = vsel %vm604, %v1277, 0.0
        %1290 = vadd.xlane.f32.xlu0 %v1289
        %v1291 = vpop.xlane.xlu0 %1290
        %v1292 = vrcp.pop 64.0
        %v1293 = vmul.f32 64.0, %v1292
        %v1294 = vsub.f32 1.0, %v1293
        %v1295 = vmul.f32 %v1292, %v1294
        %v1296 = vadd.f32 %v1292, %v1295
        %vm1297 = vweird.f32 %v1292
        %v1298 = vsel %vm1297, %v1292, %v1296
        %v1299 = vmul.f32 %v1282, %v1298
        %v1300 = vmul.f32 %v1285, %v1298
        %v1301 = vmul.f32 %v1288, %v1298
        %v1302 = vmul.f32 %v1291, %v1298
        %v1303 = vsub.f32 %v1274, %v1299
        %v1304 = vsub.f32 %v1275, %v1300
        %v1305 = vsub.f32 %v1276, %v1301
        %v1306 = vsub.f32 %v1277, %v1302
        %v1307 = vmul.f32 %v1303, %v1303
        %v1308 = vmul.f32 %v1304, %v1304
        %v1309 = vmul.f32 %v1305, %v1305
        %v1310 = vmul.f32 %v1306, %v1306
        %v1311 = vsel %vm604, %v1307, 0.0
        %1312 = vadd.xlane.f32.xlu0 %v1311
        %v1313 = vpop.xlane.xlu0 %1312
        %v1314 = vsel %vm604, %v1308, 0.0
        %1315 = vadd.xlane.f32.xlu0 %v1314
        %v1316 = vpop.xlane.xlu0 %1315
        %v1317 = vsel %vm604, %v1309, 0.0
        %1318 = vadd.xlane.f32.xlu0 %v1317
        %v1319 = vpop.xlane.xlu0 %1318
        %v1320 = vsel %vm604, %v1310, 0.0
        %1321 = vadd.xlane.f32.xlu0 %v1320
        %v1322 = vpop.xlane.xlu0 %1321
        %v1323 = vmul.f32 %v1313, %v1298
        %v1324 = vmul.f32 %v1316, %v1298
        %v1325 = vmul.f32 %v1319, %v1298
        %v1326 = vmul.f32 %v1322, %v1298
        %v1327 = vadd.f32 %v1323, 1e-12
        %v1328 = vadd.f32 %v1324, 1e-12
        %v1329 = vadd.f32 %v1325, 1e-12
        %v1330 = vadd.f32 %v1326, 1e-12
        %v1331 = vrsqrt.pop %v1327
        %v1332 = vmul.f32 %v1331, %v1327
        %v1333 = vmul.f32 %v1332, %v1331
        %v1334 = vmul.f32 0.5, %v1333
        %v1335 = vsub.f32 1.5, %v1334
        %v1336 = vmul.f32 %v1331, %v1335
        %vm1337 = vweird.f32 %v1327
        %vm1338 = vweird.f32 %v1331
        %vm1339 = vmor %vm1337, %vm1338
        %v1340 = vsel %vm1339, %v1331, %v1336
        %v1341 = vrsqrt.pop %v1328
        %v1342 = vmul.f32 %v1341, %v1328
        %v1343 = vmul.f32 %v1342, %v1341
        %v1344 = vmul.f32 0.5, %v1343
        %v1345 = vsub.f32 1.5, %v1344
        %v1346 = vmul.f32 %v1341, %v1345
        %vm1347 = vweird.f32 %v1328
        %vm1348 = vweird.f32 %v1341
        %vm1349 = vmor %vm1347, %vm1348
        %v1350 = vsel %vm1349, %v1341, %v1346
        %v1351 = vrsqrt.pop %v1329
        %v1352 = vmul.f32 %v1351, %v1329
        %v1353 = vmul.f32 %v1352, %v1351
        %v1354 = vmul.f32 0.5, %v1353
        %v1355 = vsub.f32 1.5, %v1354
        %v1356 = vmul.f32 %v1351, %v1355
        %vm1357 = vweird.f32 %v1329
        %vm1358 = vweird.f32 %v1351
        %vm1359 = vmor %vm1357, %vm1358
        %v1360 = vsel %vm1359, %v1351, %v1356
        %v1361 = vrsqrt.pop %v1330
        %v1362 = vmul.f32 %v1361, %v1330
        %v1363 = vmul.f32 %v1362, %v1361
        %v1364 = vmul.f32 0.5, %v1363
        %v1365 = vsub.f32 1.5, %v1364
        %v1366 = vmul.f32 %v1361, %v1365
        %vm1367 = vweird.f32 %v1330
        %vm1368 = vweird.f32 %v1361
        %vm1369 = vmor %vm1367, %vm1368
        %v1370 = vsel %vm1369, %v1361, %v1366
        %v1371 = vmul.f32 %v1303, %v1340
        %v1372 = vmul.f32 %v1304, %v1350
        %v1373 = vmul.f32 %v1305, %v1360
        %v1374 = vmul.f32 %v1306, %v1370
        %v1376 = vperm.slane %v1278, 0
        %v1378 = vmul.f32 %v1371, %v1376
        %v1379 = vmul.f32 %v1372, %v1376
        %v1380 = vmul.f32 %v1373, %v1376
        %v1381 = vmul.f32 %v1374, %v1376
        %v1383 = vperm.slane %v1279, 0
        %v1385 = vadd.f32 %v1378, %v1383
        %v1386 = vadd.f32 %v1379, %v1383
        %v1387 = vadd.f32 %v1380, %v1383
        %v1388 = vadd.f32 %v1381, %v1383
        %v1389 = vld [vmem:[%s8] sm:$0xff]
        %v1390 = vld [vmem:[%s8 + $0x8] sm:$0xff]
        %v1391 = vld [vmem:[%s8 + $0x10] sm:$0xff]
        %v1392 = vld [vmem:[%s8 + $0x18] sm:$0xff]
        %v1393 = vld [vmem:[%s8 + $0x20] sm:$0xff]
        %v1394 = vld [vmem:[%s8 + $0x28] sm:$0xff]
        %v1395 = vld [vmem:[%s8 + $0x30] sm:$0xff]
        %v1396 = vld [vmem:[%s8 + $0x38] sm:$0xff]
        %v1397 = vld [vmem:[%s8 + $0x40] sm:$0xff]
        %v1398 = vld [vmem:[%s8 + $0x48] sm:$0xff]
        %v1399 = vld [vmem:[%s8 + $0x50] sm:$0xff]
        %v1400 = vld [vmem:[%s8 + $0x58] sm:$0xff]
        %v1401 = vld [vmem:[%s8 + $0x60] sm:$0xff]
        %v1402 = vld [vmem:[%s8 + $0x68] sm:$0xff]
        %v1403 = vld [vmem:[%s8 + $0x70] sm:$0xff]
        %v1404 = vld [vmem:[%s8 + $0x78] sm:$0xff]
        %v1405 = vld [vmem:[%s9] sm:$0x3]
        %v1407 = vperm.slane %v1405, 0
        %v1408 = vperm.slane %v1405, 1
        %v1412 = vsel %vm604, %v1385, 0
        %v1415 = vsel %vm604, %v1386, 0
        %v1418 = vsel %vm604, %v1387, 0
        %v1421 = vsel %vm604, %v1388, 0
        %1423 = vmatpush.msra.mxu0 0.0
        %1424 = vmatpush.msra.mxu0 0.0
        %1425 = vmatpush.msra.mxu0 0.0
        %1426 = vmatpush.msra.mxu0 0.0
        %1427 = vmatpush.msra.mxu0 0.0
        %1428 = vmatpush.msra.mxu0 0.0
        %1429 = vmatpush.msra.mxu0 0.0
        %1430 = vmatpush.msra.mxu0 0.0
        %1431 = vmatpush.msra.mxu0 %v1403
        %1432 = vmatpush.msra.mxu0 %v1401
        %1433 = vmatpush.msra.mxu0 %v1399
        %1434 = vmatpush.msra.mxu0 %v1397
        %1435 = vmatpush.msra.mxu0 %v1395
        %1436 = vmatpush.msra.mxu0 %v1393
        %1437 = vmatpush.msra.mxu0 %v1391
        %1438 = vmatpush.msra.mxu0 %v1389
        %1439 = vmatmul.f32.gmra.mxu0 %v1412
        %v1440 = vpop.f32.mrf.mxu0
        %v1441 = vadd.f32 %v1407, %v1440
        %1442 = vmatmul.f32.gmra.mxu0 %v1415
        %v1443 = vpop.f32.mrf.mxu0
        %v1444 = vadd.f32 %v1407, %v1443
        %1445 = vmatmul.f32.gmra.mxu0 %v1418
        %v1446 = vpop.f32.mrf.mxu0
        %v1447 = vadd.f32 %v1407, %v1446
        %1448 = vmatmul.f32.gmra.mxu0 %v1421
        %v1449 = vpop.f32.mrf.mxu0
        %v1450 = vadd.f32 %v1407, %v1449
        %1451 = vdwg.mxu0
        %1452 = vmatpush.msra.mxu0 0.0
        %1453 = vmatpush.msra.mxu0 0.0
        %1454 = vmatpush.msra.mxu0 0.0
        %1455 = vmatpush.msra.mxu0 0.0
        %1456 = vmatpush.msra.mxu0 0.0
        %1457 = vmatpush.msra.mxu0 0.0
        %1458 = vmatpush.msra.mxu0 0.0
        %1459 = vmatpush.msra.mxu0 0.0
        %1460 = vmatpush.msra.mxu0 %v1404
        %1461 = vmatpush.msra.mxu0 %v1402
        %1462 = vmatpush.msra.mxu0 %v1400
        %1463 = vmatpush.msra.mxu0 %v1398
        %1464 = vmatpush.msra.mxu0 %v1396
        %1465 = vmatpush.msra.mxu0 %v1394
        %1466 = vmatpush.msra.mxu0 %v1392
        %1467 = vmatpush.msra.mxu0 %v1390
        %1468 = vmatmul.f32.gmra.mxu0 %v1412
        %v1469 = vpop.f32.mrf.mxu0
        %v1470 = vadd.f32 %v1408, %v1469
        %1471 = vmatmul.f32.gmra.mxu0 %v1415
        %v1472 = vpop.f32.mrf.mxu0
        %v1473 = vadd.f32 %v1408, %v1472
        %1474 = vmatmul.f32.gmra.mxu0 %v1418
        %v1475 = vpop.f32.mrf.mxu0
        %v1476 = vadd.f32 %v1408, %v1475
        %1477 = vmatmul.f32.gmra.mxu0 %v1421
        %v1478 = vpop.f32.mrf.mxu0
        %v1479 = vadd.f32 %v1408, %v1478
        %1480 = vdwg.mxu0
        %v1481 = vmul.f32 %v1441, 0.5
        %v1482 = vmul.f32 %v1470, 0.5
        %v1483 = vmul.f32 %v1444, 0.5
        %v1484 = vmul.f32 %v1473, 0.5
        %v1485 = vmul.f32 %v1447, 0.5
        %v1486 = vmul.f32 %v1476, 0.5
        %v1487 = vmul.f32 %v1450, 0.5
        %v1488 = vmul.f32 %v1479, 0.5
        %v1489 = vmul.f32 %v1441, 0.70710677
        %v1490 = vmul.f32 %v1470, 0.70710677
        %v1491 = vmul.f32 %v1444, 0.70710677
        %v1492 = vmul.f32 %v1473, 0.70710677
        %v1493 = vmul.f32 %v1447, 0.70710677
        %v1494 = vmul.f32 %v1476, 0.70710677
        %v1495 = vmul.f32 %v1450, 0.70710677
        %v1496 = vmul.f32 %v1479, 0.70710677
        %v1497 = vand.u32 2147483647, %v1489
        %v1498 = vand.u32 2147483647, %v1490
        %v1499 = vand.u32 2147483647, %v1491
        %v1500 = vand.u32 2147483647, %v1492
        %v1501 = vand.u32 2147483647, %v1493
        %v1502 = vand.u32 2147483647, %v1494
        %v1503 = vand.u32 2147483647, %v1495
        %v1504 = vand.u32 2147483647, %v1496
        %v1505 = vmul.f32 %v1497, 0.3275911
        %v1506 = vmul.f32 %v1498, 0.3275911
        %v1507 = vmul.f32 %v1499, 0.3275911
        %v1508 = vmul.f32 %v1500, 0.3275911
        %v1509 = vmul.f32 %v1501, 0.3275911
        %v1510 = vmul.f32 %v1502, 0.3275911
        %v1511 = vmul.f32 %v1503, 0.3275911
        %v1512 = vmul.f32 %v1504, 0.3275911
        %v1513 = vadd.f32 %v1505, 1.0
        %v1514 = vadd.f32 %v1506, 1.0
        %v1515 = vadd.f32 %v1507, 1.0
        %v1516 = vadd.f32 %v1508, 1.0
        %v1517 = vadd.f32 %v1509, 1.0
        %v1518 = vadd.f32 %v1510, 1.0
        %v1519 = vadd.f32 %v1511, 1.0
        %v1520 = vadd.f32 %v1512, 1.0
        %v1521 = vrcp.pop %v1513
        %v1522 = vmul.f32 %v1513, %v1521
        %v1523 = vsub.f32 1.0, %v1522
        %v1524 = vmul.f32 %v1521, %v1523
        %v1525 = vadd.f32 %v1521, %v1524
        %vm1526 = vweird.f32 %v1513
        %vm1527 = vweird.f32 %v1521
        %vm1528 = vmor %vm1526, %vm1527
        %v1529 = vsel %vm1528, %v1521, %v1525
        %v1530 = vand.u32 2147483647, %v1513
        %vm1531 = vcmp.eq.f32.partialorder %v1530, 8.507059e+37
        %v1532 = vand.u32 %v1513, 2147483648
        %v1533 = vor.u32 1.1754944e-38, %v1532
        %v1534 = vsel %vm1531, %v1533, %v1529
        %v1535 = vmul.f32 1.0, %v1534
        %v1536 = vrcp.pop %v1514
        %v1537 = vmul.f32 %v1514, %v1536
        %v1538 = vsub.f32 1.0, %v1537
        %v1539 = vmul.f32 %v1536, %v1538
        %v1540 = vadd.f32 %v1536, %v1539
        %vm1541 = vweird.f32 %v1514
        %vm1542 = vweird.f32 %v1536
        %vm1543 = vmor %vm1541, %vm1542
        %v1544 = vsel %vm1543, %v1536, %v1540
        %v1545 = vand.u32 2147483647, %v1514
        %vm1546 = vcmp.eq.f32.partialorder %v1545, 8.507059e+37
        %v1547 = vand.u32 %v1514, 2147483648
        %v1548 = vor.u32 1.1754944e-38, %v1547
        %v1549 = vsel %vm1546, %v1548, %v1544
        %v1550 = vmul.f32 1.0, %v1549
        %v1551 = vrcp.pop %v1515
        %v1552 = vmul.f32 %v1515, %v1551
        %v1553 = vsub.f32 1.0, %v1552
        %v1554 = vmul.f32 %v1551, %v1553
        %v1555 = vadd.f32 %v1551, %v1554
        %vm1556 = vweird.f32 %v1515
        %vm1557 = vweird.f32 %v1551
        %vm1558 = vmor %vm1556, %vm1557
        %v1559 = vsel %vm1558, %v1551, %v1555
        %v1560 = vand.u32 2147483647, %v1515
        %vm1561 = vcmp.eq.f32.partialorder %v1560, 8.507059e+37
        %v1562 = vand.u32 %v1515, 2147483648
        %v1563 = vor.u32 1.1754944e-38, %v1562
        %v1564 = vsel %vm1561, %v1563, %v1559
        %v1565 = vmul.f32 1.0, %v1564
        %v1566 = vrcp.pop %v1516
        %v1567 = vmul.f32 %v1516, %v1566
        %v1568 = vsub.f32 1.0, %v1567
        %v1569 = vmul.f32 %v1566, %v1568
        %v1570 = vadd.f32 %v1566, %v1569
        %vm1571 = vweird.f32 %v1516
        %vm1572 = vweird.f32 %v1566
        %vm1573 = vmor %vm1571, %vm1572
        %v1574 = vsel %vm1573, %v1566, %v1570
        %v1575 = vand.u32 2147483647, %v1516
        %vm1576 = vcmp.eq.f32.partialorder %v1575, 8.507059e+37
        %v1577 = vand.u32 %v1516, 2147483648
        %v1578 = vor.u32 1.1754944e-38, %v1577
        %v1579 = vsel %vm1576, %v1578, %v1574
        %v1580 = vmul.f32 1.0, %v1579
        %v1581 = vrcp.pop %v1517
        %v1582 = vmul.f32 %v1517, %v1581
        %v1583 = vsub.f32 1.0, %v1582
        %v1584 = vmul.f32 %v1581, %v1583
        %v1585 = vadd.f32 %v1581, %v1584
        %vm1586 = vweird.f32 %v1517
        %vm1587 = vweird.f32 %v1581
        %vm1588 = vmor %vm1586, %vm1587
        %v1589 = vsel %vm1588, %v1581, %v1585
        %v1590 = vand.u32 2147483647, %v1517
        %vm1591 = vcmp.eq.f32.partialorder %v1590, 8.507059e+37
        %v1592 = vand.u32 %v1517, 2147483648
        %v1593 = vor.u32 1.1754944e-38, %v1592
        %v1594 = vsel %vm1591, %v1593, %v1589
        %v1595 = vmul.f32 1.0, %v1594
        %v1596 = vrcp.pop %v1518
        %v1597 = vmul.f32 %v1518, %v1596
        %v1598 = vsub.f32 1.0, %v1597
        %v1599 = vmul.f32 %v1596, %v1598
        %v1600 = vadd.f32 %v1596, %v1599
        %vm1601 = vweird.f32 %v1518
        %vm1602 = vweird.f32 %v1596
        %vm1603 = vmor %vm1601, %vm1602
        %v1604 = vsel %vm1603, %v1596, %v1600
        %v1605 = vand.u32 2147483647, %v1518
        %vm1606 = vcmp.eq.f32.partialorder %v1605, 8.507059e+37
        %v1607 = vand.u32 %v1518, 2147483648
        %v1608 = vor.u32 1.1754944e-38, %v1607
        %v1609 = vsel %vm1606, %v1608, %v1604
        %v1610 = vmul.f32 1.0, %v1609
        %v1611 = vrcp.pop %v1519
        %v1612 = vmul.f32 %v1519, %v1611
        %v1613 = vsub.f32 1.0, %v1612
        %v1614 = vmul.f32 %v1611, %v1613
        %v1615 = vadd.f32 %v1611, %v1614
        %vm1616 = vweird.f32 %v1519
        %vm1617 = vweird.f32 %v1611
        %vm1618 = vmor %vm1616, %vm1617
        %v1619 = vsel %vm1618, %v1611, %v1615
        %v1620 = vand.u32 2147483647, %v1519
        %vm1621 = vcmp.eq.f32.partialorder %v1620, 8.507059e+37
        %v1622 = vand.u32 %v1519, 2147483648
        %v1623 = vor.u32 1.1754944e-38, %v1622
        %v1624 = vsel %vm1621, %v1623, %v1619
        %v1625 = vmul.f32 1.0, %v1624
        %v1626 = vrcp.pop %v1520
        %v1627 = vmul.f32 %v1520, %v1626
        %v1628 = vsub.f32 1.0, %v1627
        %v1629 = vmul.f32 %v1626, %v1628
        %v1630 = vadd.f32 %v1626, %v1629
        %vm1631 = vweird.f32 %v1520
        %vm1632 = vweird.f32 %v1626
        %vm1633 = vmor %vm1631, %vm1632
        %v1634 = vsel %vm1633, %v1626, %v1630
        %v1635 = vand.u32 2147483647, %v1520
        %vm1636 = vcmp.eq.f32.partialorder %v1635, 8.507059e+37
        %v1637 = vand.u32 %v1520, 2147483648
        %v1638 = vor.u32 1.1754944e-38, %v1637
        %v1639 = vsel %vm1636, %v1638, %v1634
        %v1640 = vmul.f32 1.0, %v1639
        %v1641 = vmul.f32 %v1535, 1.0614054
        %v1642 = vmul.f32 %v1550, 1.0614054
        %v1643 = vmul.f32 %v1565, 1.0614054
        %v1644 = vmul.f32 %v1580, 1.0614054
        %v1645 = vmul.f32 %v1595, 1.0614054
        %v1646 = vmul.f32 %v1610, 1.0614054
        %v1647 = vmul.f32 %v1625, 1.0614054
        %v1648 = vmul.f32 %v1640, 1.0614054
        %v1649 = vadd.f32 %v1641, -1.4531521
        %v1650 = vadd.f32 %v1642, -1.4531521
        %v1651 = vadd.f32 %v1643, -1.4531521
        %v1652 = vadd.f32 %v1644, -1.4531521
        %v1653 = vadd.f32 %v1645, -1.4531521
        %v1654 = vadd.f32 %v1646, -1.4531521
        %v1655 = vadd.f32 %v1647, -1.4531521
        %v1656 = vadd.f32 %v1648, -1.4531521
        %v1657 = vmul.f32 %v1649, %v1535
        %v1658 = vmul.f32 %v1650, %v1550
        %v1659 = vmul.f32 %v1651, %v1565
        %v1660 = vmul.f32 %v1652, %v1580
        %v1661 = vmul.f32 %v1653, %v1595
        %v1662 = vmul.f32 %v1654, %v1610
        %v1663 = vmul.f32 %v1655, %v1625
        %v1664 = vmul.f32 %v1656, %v1640
        %v1665 = vadd.f32 %v1657, 1.4214138
        %v1666 = vadd.f32 %v1658, 1.4214138
        %v1667 = vadd.f32 %v1659, 1.4214138
        %v1668 = vadd.f32 %v1660, 1.4214138
        %v1669 = vadd.f32 %v1661, 1.4214138
        %v1670 = vadd.f32 %v1662, 1.4214138
        %v1671 = vadd.f32 %v1663, 1.4214138
        %v1672 = vadd.f32 %v1664, 1.4214138
        %v1673 = vmul.f32 %v1665, %v1535
        %v1674 = vmul.f32 %v1666, %v1550
        %v1675 = vmul.f32 %v1667, %v1565
        %v1676 = vmul.f32 %v1668, %v1580
        %v1677 = vmul.f32 %v1669, %v1595
        %v1678 = vmul.f32 %v1670, %v1610
        %v1679 = vmul.f32 %v1671, %v1625
        %v1680 = vmul.f32 %v1672, %v1640
        %v1681 = vadd.f32 %v1673, -0.28449672
        %v1682 = vadd.f32 %v1674, -0.28449672
        %v1683 = vadd.f32 %v1675, -0.28449672
        %v1684 = vadd.f32 %v1676, -0.28449672
        %v1685 = vadd.f32 %v1677, -0.28449672
        %v1686 = vadd.f32 %v1678, -0.28449672
        %v1687 = vadd.f32 %v1679, -0.28449672
        %v1688 = vadd.f32 %v1680, -0.28449672
        %v1689 = vmul.f32 %v1681, %v1535
        %v1690 = vmul.f32 %v1682, %v1550
        %v1691 = vmul.f32 %v1683, %v1565
        %v1692 = vmul.f32 %v1684, %v1580
        %v1693 = vmul.f32 %v1685, %v1595
        %v1694 = vmul.f32 %v1686, %v1610
        %v1695 = vmul.f32 %v1687, %v1625
        %v1696 = vmul.f32 %v1688, %v1640
        %v1697 = vadd.f32 %v1689, 0.2548296
        %v1698 = vadd.f32 %v1690, 0.2548296
        %v1699 = vadd.f32 %v1691, 0.2548296
        %v1700 = vadd.f32 %v1692, 0.2548296
        %v1701 = vadd.f32 %v1693, 0.2548296
        %v1702 = vadd.f32 %v1694, 0.2548296
        %v1703 = vadd.f32 %v1695, 0.2548296
        %v1704 = vadd.f32 %v1696, 0.2548296
        %v1705 = vmul.f32 %v1697, %v1535
        %v1706 = vmul.f32 %v1698, %v1550
        %v1707 = vmul.f32 %v1699, %v1565
        %v1708 = vmul.f32 %v1700, %v1580
        %v1709 = vmul.f32 %v1701, %v1595
        %v1710 = vmul.f32 %v1702, %v1610
        %v1711 = vmul.f32 %v1703, %v1625
        %v1712 = vmul.f32 %v1704, %v1640
        %v1713 = vsub.f32 0.0, %v1497
        %v1714 = vsub.f32 0.0, %v1498
        %v1715 = vsub.f32 0.0, %v1499
        %v1716 = vsub.f32 0.0, %v1500
        %v1717 = vsub.f32 0.0, %v1501
        %v1718 = vsub.f32 0.0, %v1502
        %v1719 = vsub.f32 0.0, %v1503
        %v1720 = vsub.f32 0.0, %v1504
        %v1721 = vmul.f32 %v1713, %v1497
        %v1722 = vmul.f32 %v1714, %v1498
        %v1723 = vmul.f32 %v1715, %v1499
        %v1724 = vmul.f32 %v1716, %v1500
        %v1725 = vmul.f32 %v1717, %v1501
        %v1726 = vmul.f32 %v1718, %v1502
        %v1727 = vmul.f32 %v1719, %v1503
        %v1728 = vmul.f32 %v1720, %v1504
        %v1729 = vmul.f32 %v1721, 1.442695
        %v1730 = vpow.pop %v1729
        %v1731 = vmul.f32 %v1722, 1.442695
        %v1732 = vpow.pop %v1731
        %v1733 = vmul.f32 %v1723, 1.442695
        %v1734 = vpow.pop %v1733
        %v1735 = vmul.f32 %v1724, 1.442695
        %v1736 = vpow.pop %v1735
        %v1737 = vmul.f32 %v1725, 1.442695
        %v1738 = vpow.pop %v1737
        %v1739 = vmul.f32 %v1726, 1.442695
        %v1740 = vpow.pop %v1739
        %v1741 = vmul.f32 %v1727, 1.442695
        %v1742 = vpow.pop %v1741
        %v1743 = vmul.f32 %v1728, 1.442695
        %v1744 = vpow.pop %v1743
        %v1745 = vmul.f32 %v1705, %v1730
        %v1746 = vmul.f32 %v1706, %v1732
        %v1747 = vmul.f32 %v1707, %v1734
        %v1748 = vmul.f32 %v1708, %v1736
        %v1749 = vmul.f32 %v1709, %v1738
        %v1750 = vmul.f32 %v1710, %v1740
        %v1751 = vmul.f32 %v1711, %v1742
        %v1752 = vmul.f32 %v1712, %v1744
        %v1753 = vsub.f32 1.0, %v1745
        %v1754 = vsub.f32 1.0, %v1746
        %v1755 = vsub.f32 1.0, %v1747
        %v1756 = vsub.f32 1.0, %v1748
        %v1757 = vsub.f32 1.0, %v1749
        %v1758 = vsub.f32 1.0, %v1750
        %v1759 = vsub.f32 1.0, %v1751
        %v1760 = vsub.f32 1.0, %v1752
        %vm1761 = vcmp.ge.f32.partialorder %v1489, 0.0
        %vm1762 = vcmp.ge.f32.partialorder %v1490, 0.0
        %vm1763 = vcmp.ge.f32.partialorder %v1491, 0.0
        %vm1764 = vcmp.ge.f32.partialorder %v1492, 0.0
        %vm1765 = vcmp.ge.f32.partialorder %v1493, 0.0
        %vm1766 = vcmp.ge.f32.partialorder %v1494, 0.0
        %vm1767 = vcmp.ge.f32.partialorder %v1495, 0.0
        %vm1768 = vcmp.ge.f32.partialorder %v1496, 0.0
        %v1769 = vsub.f32 0.0, %v1753
        %v1770 = vsub.f32 0.0, %v1754
        %v1771 = vsub.f32 0.0, %v1755
        %v1772 = vsub.f32 0.0, %v1756
        %v1773 = vsub.f32 0.0, %v1757
        %v1774 = vsub.f32 0.0, %v1758
        %v1775 = vsub.f32 0.0, %v1759
        %v1776 = vsub.f32 0.0, %v1760
        %v1777 = vsel %vm1761, %v1753, %v1769
        %v1778 = vsel %vm1762, %v1754, %v1770
        %v1779 = vsel %vm1763, %v1755, %v1771
        %v1780 = vsel %vm1764, %v1756, %v1772
        %v1781 = vsel %vm1765, %v1757, %v1773
        %v1782 = vsel %vm1766, %v1758, %v1774
        %v1783 = vsel %vm1767, %v1759, %v1775
        %v1784 = vsel %vm1768, %v1760, %v1776
        %v1785 = vadd.f32 %v1777, 1.0
        %v1786 = vadd.f32 %v1778, 1.0
        %v1787 = vadd.f32 %v1779, 1.0
        %v1788 = vadd.f32 %v1780, 1.0
        %v1789 = vadd.f32 %v1781, 1.0
        %v1790 = vadd.f32 %v1782, 1.0
        %v1791 = vadd.f32 %v1783, 1.0
        %v1792 = vadd.f32 %v1784, 1.0
        %v1793 = vmul.f32 %v1481, %v1785
        %v1794 = vmul.f32 %v1482, %v1786
        %v1795 = vmul.f32 %v1483, %v1787
        %v1796 = vmul.f32 %v1484, %v1788
        %v1797 = vmul.f32 %v1485, %v1789
        %v1798 = vmul.f32 %v1486, %v1790
        %v1799 = vmul.f32 %v1487, %v1791
        %v1800 = vmul.f32 %v1488, %v1792
        %v1801 = vld [vmem:[%s10] sm:$0xff]
        %v1802 = vld [vmem:[%s10 + $0x8] sm:$0xff]
        %v1803 = vld [vmem:[%s10 + $0x10] sm:$0xff]
        %v1804 = vld [vmem:[%s10 + $0x18] sm:$0xff]
        %v1805 = vld [vmem:[%s10 + $0x20] sm:$0xff]
        %v1806 = vld [vmem:[%s10 + $0x28] sm:$0xff]
        %v1807 = vld [vmem:[%s10 + $0x30] sm:$0xff]
        %v1808 = vld [vmem:[%s10 + $0x38] sm:$0xff]
        %v1809 = vld [vmem:[%s10 + $0x40] sm:$0xff]
        %v1810 = vld [vmem:[%s10 + $0x48] sm:$0xff]
        %v1811 = vld [vmem:[%s10 + $0x50] sm:$0xff]
        %v1812 = vld [vmem:[%s10 + $0x58] sm:$0xff]
        %v1813 = vld [vmem:[%s10 + $0x60] sm:$0xff]
        %v1814 = vld [vmem:[%s10 + $0x68] sm:$0xff]
        %v1815 = vld [vmem:[%s10 + $0x70] sm:$0xff]
        %v1816 = vld [vmem:[%s10 + $0x78] sm:$0xff]
        %v1817 = vld [vmem:[%s10 + $0x80] sm:$0xff]
        %v1818 = vld [vmem:[%s10 + $0x88] sm:$0xff]
        %v1819 = vld [vmem:[%s10 + $0x90] sm:$0xff]
        %v1820 = vld [vmem:[%s10 + $0x98] sm:$0xff]
        %v1821 = vld [vmem:[%s10 + $0xa0] sm:$0xff]
        %v1822 = vld [vmem:[%s10 + $0xa8] sm:$0xff]
        %v1823 = vld [vmem:[%s10 + $0xb0] sm:$0xff]
        %v1824 = vld [vmem:[%s10 + $0xb8] sm:$0xff]
        %v1825 = vld [vmem:[%s10 + $0xc0] sm:$0xff]
        %v1826 = vld [vmem:[%s10 + $0xc8] sm:$0xff]
        %v1827 = vld [vmem:[%s10 + $0xd0] sm:$0xff]
        %v1828 = vld [vmem:[%s10 + $0xd8] sm:$0xff]
        %v1829 = vld [vmem:[%s10 + $0xe0] sm:$0xff]
        %v1830 = vld [vmem:[%s10 + $0xe8] sm:$0xff]
        %v1831 = vld [vmem:[%s10 + $0xf0] sm:$0xff]
        %v1832 = vld [vmem:[%s10 + $0xf8] sm:$0xff]
        %v1833 = vld [vmem:[%s11] sm:$0x1]
        %v1835 = vperm.slane %v1833, 0
        %1837 = vmatpush.msra.mxu0 %v1816
        %1838 = vmatpush.msra.mxu0 %v1815
        %1839 = vmatpush.msra.mxu0 %v1814
        %1840 = vmatpush.msra.mxu0 %v1813
        %1841 = vmatpush.msra.mxu0 %v1812
        %1842 = vmatpush.msra.mxu0 %v1811
        %1843 = vmatpush.msra.mxu0 %v1810
        %1844 = vmatpush.msra.mxu0 %v1809
        %1845 = vmatpush.msra.mxu0 %v1808
        %1846 = vmatpush.msra.mxu0 %v1807
        %1847 = vmatpush.msra.mxu0 %v1806
        %1848 = vmatpush.msra.mxu0 %v1805
        %1849 = vmatpush.msra.mxu0 %v1804
        %1850 = vmatpush.msra.mxu0 %v1803
        %1851 = vmatpush.msra.mxu0 %v1802
        %1852 = vmatpush.msra.mxu0 %v1801
        %1853 = vmatmul.f32.gmra.mxu0 %v1793
        %v1854 = vpop.f32.mrf.mxu0
        %v1855 = vadd.f32 %v1835, %v1854
        %1856 = vmatmul.f32.gmra.mxu0 %v1795
        %v1857 = vpop.f32.mrf.mxu0
        %v1858 = vadd.f32 %v1835, %v1857
        %1859 = vmatmul.f32.gmra.mxu0 %v1797
        %v1860 = vpop.f32.mrf.mxu0
        %v1861 = vadd.f32 %v1835, %v1860
        %1862 = vmatmul.f32.gmra.mxu0 %v1799
        %v1863 = vpop.f32.mrf.mxu0
        %v1864 = vadd.f32 %v1835, %v1863
        %1865 = vdwg.mxu0
        %1866 = vmatpush.msra.mxu0 %v1832
        %1867 = vmatpush.msra.mxu0 %v1831
        %1868 = vmatpush.msra.mxu0 %v1830
        %1869 = vmatpush.msra.mxu0 %v1829
        %1870 = vmatpush.msra.mxu0 %v1828
        %1871 = vmatpush.msra.mxu0 %v1827
        %1872 = vmatpush.msra.mxu0 %v1826
        %1873 = vmatpush.msra.mxu0 %v1825
        %1874 = vmatpush.msra.mxu0 %v1824
        %1875 = vmatpush.msra.mxu0 %v1823
        %1876 = vmatpush.msra.mxu0 %v1822
        %1877 = vmatpush.msra.mxu0 %v1821
        %1878 = vmatpush.msra.mxu0 %v1820
        %1879 = vmatpush.msra.mxu0 %v1819
        %1880 = vmatpush.msra.mxu0 %v1818
        %1881 = vmatpush.msra.mxu0 %v1817
        %1882 = vmatmul.f32.gmra.mxu0 %v1794
        %v1883 = vpop.f32.mrf.mxu0
        %v1884 = vadd.f32 %v1855, %v1883
        %1885 = vmatmul.f32.gmra.mxu0 %v1796
        %v1886 = vpop.f32.mrf.mxu0
        %v1887 = vadd.f32 %v1858, %v1886
        %1888 = vmatmul.f32.gmra.mxu0 %v1798
        %v1889 = vpop.f32.mrf.mxu0
        %v1890 = vadd.f32 %v1861, %v1889
        %1891 = vmatmul.f32.gmra.mxu0 %v1800
        %v1892 = vpop.f32.mrf.mxu0
        %v1893 = vadd.f32 %v1864, %v1892
        %1894 = vdwg.mxu0
        %v1895 = vadd.f32 %v1884, %v1385
        %v1896 = vadd.f32 %v1887, %v1386
        %v1897 = vadd.f32 %v1890, %v1387
        %v1898 = vadd.f32 %v1893, %v1388
        %v1899 = vld [vmem:[%s12] sm:$0x1]
        %v1900 = vld [vmem:[#allocation10] sm:$0x1]
        %v1901 = vsel %vm604, %v1895, 0.0
        %1902 = vadd.xlane.f32.xlu0 %v1901
        %v1903 = vpop.xlane.xlu0 %1902
        %v1904 = vsel %vm604, %v1896, 0.0
        %1905 = vadd.xlane.f32.xlu0 %v1904
        %v1906 = vpop.xlane.xlu0 %1905
        %v1907 = vsel %vm604, %v1897, 0.0
        %1908 = vadd.xlane.f32.xlu0 %v1907
        %v1909 = vpop.xlane.xlu0 %1908
        %v1910 = vsel %vm604, %v1898, 0.0
        %1911 = vadd.xlane.f32.xlu0 %v1910
        %v1912 = vpop.xlane.xlu0 %1911
        %v1913 = vmul.f32 %v1903, %v1298
        %v1914 = vmul.f32 %v1906, %v1298
        %v1915 = vmul.f32 %v1909, %v1298
        %v1916 = vmul.f32 %v1912, %v1298
        %v1917 = vsub.f32 %v1895, %v1913
        %v1918 = vsub.f32 %v1896, %v1914
        %v1919 = vsub.f32 %v1897, %v1915
        %v1920 = vsub.f32 %v1898, %v1916
        %v1921 = vmul.f32 %v1917, %v1917
        %v1922 = vmul.f32 %v1918, %v1918
        %v1923 = vmul.f32 %v1919, %v1919
        %v1924 = vmul.f32 %v1920, %v1920
        %v1925 = vsel %vm604, %v1921, 0.0
        %1926 = vadd.xlane.f32.xlu0 %v1925
        %v1927 = vpop.xlane.xlu0 %1926
        %v1928 = vsel %vm604, %v1922, 0.0
        %1929 = vadd.xlane.f32.xlu0 %v1928
        %v1930 = vpop.xlane.xlu0 %1929
        %v1931 = vsel %vm604, %v1923, 0.0
        %1932 = vadd.xlane.f32.xlu0 %v1931
        %v1933 = vpop.xlane.xlu0 %1932
        %v1934 = vsel %vm604, %v1924, 0.0
        %1935 = vadd.xlane.f32.xlu0 %v1934
        %v1936 = vpop.xlane.xlu0 %1935
        %v1937 = vmul.f32 %v1927, %v1298
        %v1938 = vmul.f32 %v1930, %v1298
        %v1939 = vmul.f32 %v1933, %v1298
        %v1940 = vmul.f32 %v1936, %v1298
        %v1941 = vadd.f32 %v1937, 1e-12
        %v1942 = vadd.f32 %v1938, 1e-12
        %v1943 = vadd.f32 %v1939, 1e-12
        %v1944 = vadd.f32 %v1940, 1e-12
        %v1945 = vrsqrt.pop %v1941
        %v1946 = vmul.f32 %v1945, %v1941
        %v1947 = vmul.f32 %v1946, %v1945
        %v1948 = vmul.f32 0.5, %v1947
        %v1949 = vsub.f32 1.5, %v1948
        %v1950 = vmul.f32 %v1945, %v1949
        %vm1951 = vweird.f32 %v1941
        %vm1952 = vweird.f32 %v1945
        %vm1953 = vmor %vm1951, %vm1952
        %v1954 = vsel %vm1953, %v1945, %v1950
        %v1955 = vrsqrt.pop %v1942
        %v1956 = vmul.f32 %v1955, %v1942
        %v1957 = vmul.f32 %v1956, %v1955
        %v1958 = vmul.f32 0.5, %v1957
        %v1959 = vsub.f32 1.5, %v1958
        %v1960 = vmul.f32 %v1955, %v1959
        %vm1961 = vweird.f32 %v1942
        %vm1962 = vweird.f32 %v1955
        %vm1963 = vmor %vm1961, %vm1962
        %v1964 = vsel %vm1963, %v1955, %v1960
        %v1965 = vrsqrt.pop %v1943
        %v1966 = vmul.f32 %v1965, %v1943
        %v1967 = vmul.f32 %v1966, %v1965
        %v1968 = vmul.f32 0.5, %v1967
        %v1969 = vsub.f32 1.5, %v1968
        %v1970 = vmul.f32 %v1965, %v1969
        %vm1971 = vweird.f32 %v1943
        %vm1972 = vweird.f32 %v1965
        %vm1973 = vmor %vm1971, %vm1972
        %v1974 = vsel %vm1973, %v1965, %v1970
        %v1975 = vrsqrt.pop %v1944
        %v1976 = vmul.f32 %v1975, %v1944
        %v1977 = vmul.f32 %v1976, %v1975
        %v1978 = vmul.f32 0.5, %v1977
        %v1979 = vsub.f32 1.5, %v1978
        %v1980 = vmul.f32 %v1975, %v1979
        %vm1981 = vweird.f32 %v1944
        %vm1982 = vweird.f32 %v1975
        %vm1983 = vmor %vm1981, %vm1982
        %v1984 = vsel %vm1983, %v1975, %v1980
        %v1985 = vmul.f32 %v1917, %v1954
        %v1986 = vmul.f32 %v1918, %v1964
        %v1987 = vmul.f32 %v1919, %v1974
        %v1988 = vmul.f32 %v1920, %v1984
        %v1990 = vperm.slane %v1899, 0
        %v1992 = vmul.f32 %v1985, %v1990
        %v1993 = vmul.f32 %v1986, %v1990
        %v1994 = vmul.f32 %v1987, %v1990
        %v1995 = vmul.f32 %v1988, %v1990
        %v1997 = vperm.slane %v1900, 0
        %v1999 = vadd.f32 %v1992, %v1997
        %v2000 = vadd.f32 %v1993, %v1997
        %v2001 = vadd.f32 %v1994, %v1997
        %v2002 = vadd.f32 %v1995, %v1997
        %2003 = vst.msk [vmem:[%s560] sm:$0xff] %vm604, %v1999
        %2004 = vst.msk [vmem:[%s560 + $0x8] sm:$0xff] %vm604, %v2000
        %2005 = vst.msk [vmem:[%s560 + $0x10] sm:$0xff] %vm604, %v2001
        %2006 = vst.msk [vmem:[%s560 + $0x18] sm:$0xff] %vm604, %v2002
        %s2007 = scalar_lea.vmem %s2, 128
        %v2008 = vld [vmem:[%s2007] sm:$0xff]
        %v2009 = vld [vmem:[%s2007 + $0x8] sm:$0xff]
        %v2010 = vld [vmem:[%s2007 + $0x10] sm:$0xff]
        %v2011 = vld [vmem:[%s2007 + $0x18] sm:$0xff]
        %v2012 = vld [vmem:[%s2007 + $0x20] sm:$0xff]
        %v2013 = vld [vmem:[%s2007 + $0x28] sm:$0xff]
        %v2014 = vld [vmem:[%s2007 + $0x30] sm:$0xff]
        %v2015 = vld [vmem:[%s2007 + $0x38] sm:$0xff]
        %v2016 = vld [vmem:[%s2007 + $0x40] sm:$0xff]
        %v2017 = vld [vmem:[%s2007 + $0x48] sm:$0xff]
        %v2018 = vld [vmem:[%s2007 + $0x50] sm:$0xff]
        %v2019 = vld [vmem:[%s2007 + $0x58] sm:$0xff]
        %v2020 = vld [vmem:[%s2007 + $0x60] sm:$0xff]
        %v2021 = vld [vmem:[%s2007 + $0x68] sm:$0xff]
        %v2022 = vld [vmem:[%s2007 + $0x70] sm:$0xff]
        %v2023 = vld [vmem:[%s2007 + $0x78] sm:$0xff]
        %s2024 = scalar_lea.vmem [#allocation2], 2
        %v2025 = vld [vmem:[%s2024] sm:$0x3]
        %v2027 = vperm.slane %v2025, 0
        %v2028 = vperm.slane %v2025, 1
        %v2032 = vsel %vm604, %v1999, 0
        %v2035 = vsel %vm604, %v2000, 0
        %v2038 = vsel %vm604, %v2001, 0
        %v2041 = vsel %vm604, %v2002, 0
        %2043 = vmatpush.msra.mxu0 0.0
        %2044 = vmatpush.msra.mxu0 0.0
        %2045 = vmatpush.msra.mxu0 0.0
        %2046 = vmatpush.msra.mxu0 0.0
        %2047 = vmatpush.msra.mxu0 0.0
        %2048 = vmatpush.msra.mxu0 0.0
        %2049 = vmatpush.msra.mxu0 0.0
        %2050 = vmatpush.msra.mxu0 0.0
        %2051 = vmatpush.msra.mxu0 %v2022
        %2052 = vmatpush.msra.mxu0 %v2020
        %2053 = vmatpush.msra.mxu0 %v2018
        %2054 = vmatpush.msra.mxu0 %v2016
        %2055 = vmatpush.msra.mxu0 %v2014
        %2056 = vmatpush.msra.mxu0 %v2012
        %2057 = vmatpush.msra.mxu0 %v2010
        %2058 = vmatpush.msra.mxu0 %v2008
        %2059 = vmatmul.f32.gmra.mxu0 %v2032
        %v2060 = vpop.f32.mrf.mxu0
        %v2061 = vadd.f32 %v2027, %v2060
        %2062 = vmatmul.f32.gmra.mxu0 %v2035
        %v2063 = vpop.f32.mrf.mxu0
        %v2064 = vadd.f32 %v2027, %v2063
        %2065 = vmatmul.f32.gmra.mxu0 %v2038
        %v2066 = vpop.f32.mrf.mxu0
        %v2067 = vadd.f32 %v2027, %v2066
        %2068 = vmatmul.f32.gmra.mxu0 %v2041
        %v2069 = vpop.f32.mrf.mxu0
        %v2070 = vadd.f32 %v2027, %v2069
        %2071 = vdwg.mxu0
        %2072 = vmatpush.msra.mxu0 0.0
        %2073 = vmatpush.msra.mxu0 0.0
        %2074 = vmatpush.msra.mxu0 0.0
        %2075 = vmatpush.msra.mxu0 0.0
        %2076 = vmatpush.msra.mxu0 0.0
        %2077 = vmatpush.msra.mxu0 0.0
        %2078 = vmatpush.msra.mxu0 0.0
        %2079 = vmatpush.msra.mxu0 0.0
        %2080 = vmatpush.msra.mxu0 %v2023
        %2081 = vmatpush.msra.mxu0 %v2021
        %2082 = vmatpush.msra.mxu0 %v2019
        %2083 = vmatpush.msra.mxu0 %v2017
        %2084 = vmatpush.msra.mxu0 %v2015
        %2085 = vmatpush.msra.mxu0 %v2013
        %2086 = vmatpush.msra.mxu0 %v2011
        %2087 = vmatpush.msra.mxu0 %v2009
        %2088 = vmatmul.f32.gmra.mxu0 %v2032
        %v2089 = vpop.f32.mrf.mxu0
        %v2090 = vadd.f32 %v2028, %v2089
        %2091 = vmatmul.f32.gmra.mxu0 %v2035
        %v2092 = vpop.f32.mrf.mxu0
        %v2093 = vadd.f32 %v2028, %v2092
        %2094 = vmatmul.f32.gmra.mxu0 %v2038
        %v2095 = vpop.f32.mrf.mxu0
        %v2096 = vadd.f32 %v2028, %v2095
        %2097 = vmatmul.f32.gmra.mxu0 %v2041
        %v2098 = vpop.f32.mrf.mxu0
        %v2099 = vadd.f32 %v2028, %v2098
        %2100 = vdwg.mxu0
        %2102 = vrot.lane.b32.xlu0 %v2061, 64
        %v2103 = vpop.permute.xlu0 %2102
        %v2104 = vsel %vm678, %v2061, 0
        %v2106 = vsel %vm678, %v2103, 0
        %2108 = vmatpush.xpose.msra.mxu0 0.0
        %2109 = vmatpush.xpose.msra.mxu0 0.0
        %2110 = vmatpush.xpose.msra.mxu0 0.0
        %2111 = vmatpush.xpose.msra.mxu0 0.0
        %2112 = vmatpush.xpose.msra.mxu0 0.0
        %2113 = vmatpush.xpose.msra.mxu0 0.0
        %2114 = vmatpush.xpose.msra.mxu0 0.0
        %2115 = vmatpush.xpose.msra.mxu0 0.0
        %2116 = vmatpush.xpose.msra.mxu0 0.0
        %2117 = vmatpush.xpose.msra.mxu0 0.0
        %2118 = vmatpush.xpose.msra.mxu0 0.0
        %2119 = vmatpush.xpose.msra.mxu0 0.0
        %2120 = vmatpush.xpose.msra.mxu0 0.0
        %2121 = vmatpush.xpose.msra.mxu0 0.0
        %2122 = vmatpush.xpose.msra.mxu0 0.0
        %2123 = vmatpush.xpose.msra.mxu0 %v2106
        %2124 = vmatmul.f32.gmra.mxu0 %v2104
        %v2125 = vpop.f32.mrf.mxu0
        %v2126 = vadd.f32 0.0, %v2125
        %2127 = vdwg.mxu0
        %2129 = vrot.lane.b32.xlu0 %v2064, 64
        %v2130 = vpop.permute.xlu0 %2129
        %v2131 = vsel %vm678, %v2064, 0
        %v2133 = vsel %vm678, %v2130, 0
        %2135 = vmatpush.xpose.msra.mxu0 0.0
        %2136 = vmatpush.xpose.msra.mxu0 0.0
        %2137 = vmatpush.xpose.msra.mxu0 0.0
        %2138 = vmatpush.xpose.msra.mxu0 0.0
        %2139 = vmatpush.xpose.msra.mxu0 0.0
        %2140 = vmatpush.xpose.msra.mxu0 0.0
        %2141 = vmatpush.xpose.msra.mxu0 0.0
        %2142 = vmatpush.xpose.msra.mxu0 0.0
        %2143 = vmatpush.xpose.msra.mxu0 0.0
        %2144 = vmatpush.xpose.msra.mxu0 0.0
        %2145 = vmatpush.xpose.msra.mxu0 0.0
        %2146 = vmatpush.xpose.msra.mxu0 0.0
        %2147 = vmatpush.xpose.msra.mxu0 0.0
        %2148 = vmatpush.xpose.msra.mxu0 0.0
        %2149 = vmatpush.xpose.msra.mxu0 0.0
        %2150 = vmatpush.xpose.msra.mxu0 %v2133
        %2151 = vmatmul.f32.gmra.mxu0 %v2131
        %v2152 = vpop.f32.mrf.mxu0
        %v2153 = vadd.f32 0.0, %v2152
        %2154 = vdwg.mxu0
        %2156 = vrot.lane.b32.xlu0 %v2067, 64
        %v2157 = vpop.permute.xlu0 %2156
        %v2158 = vsel %vm678, %v2067, 0
        %v2160 = vsel %vm678, %v2157, 0
        %2162 = vmatpush.xpose.msra.mxu0 0.0
        %2163 = vmatpush.xpose.msra.mxu0 0.0
        %2164 = vmatpush.xpose.msra.mxu0 0.0
        %2165 = vmatpush.xpose.msra.mxu0 0.0
        %2166 = vmatpush.xpose.msra.mxu0 0.0
        %2167 = vmatpush.xpose.msra.mxu0 0.0
        %2168 = vmatpush.xpose.msra.mxu0 0.0
        %2169 = vmatpush.xpose.msra.mxu0 0.0
        %2170 = vmatpush.xpose.msra.mxu0 0.0
        %2171 = vmatpush.xpose.msra.mxu0 0.0
        %2172 = vmatpush.xpose.msra.mxu0 0.0
        %2173 = vmatpush.xpose.msra.mxu0 0.0
        %2174 = vmatpush.xpose.msra.mxu0 0.0
        %2175 = vmatpush.xpose.msra.mxu0 0.0
        %2176 = vmatpush.xpose.msra.mxu0 0.0
        %2177 = vmatpush.xpose.msra.mxu0 %v2160
        %2178 = vmatmul.f32.gmra.mxu0 %v2158
        %v2179 = vpop.f32.mrf.mxu0
        %v2180 = vadd.f32 0.0, %v2179
        %2181 = vdwg.mxu0
        %2183 = vrot.lane.b32.xlu0 %v2070, 64
        %v2184 = vpop.permute.xlu0 %2183
        %v2185 = vsel %vm678, %v2070, 0
        %v2187 = vsel %vm678, %v2184, 0
        %2189 = vmatpush.xpose.msra.mxu0 0.0
        %2190 = vmatpush.xpose.msra.mxu0 0.0
        %2191 = vmatpush.xpose.msra.mxu0 0.0
        %2192 = vmatpush.xpose.msra.mxu0 0.0
        %2193 = vmatpush.xpose.msra.mxu0 0.0
        %2194 = vmatpush.xpose.msra.mxu0 0.0
        %2195 = vmatpush.xpose.msra.mxu0 0.0
        %2196 = vmatpush.xpose.msra.mxu0 0.0
        %2197 = vmatpush.xpose.msra.mxu0 0.0
        %2198 = vmatpush.xpose.msra.mxu0 0.0
        %2199 = vmatpush.xpose.msra.mxu0 0.0
        %2200 = vmatpush.xpose.msra.mxu0 0.0
        %2201 = vmatpush.xpose.msra.mxu0 0.0
        %2202 = vmatpush.xpose.msra.mxu0 0.0
        %2203 = vmatpush.xpose.msra.mxu0 0.0
        %2204 = vmatpush.xpose.msra.mxu0 %v2187
        %2205 = vmatmul.f32.gmra.mxu0 %v2185
        %v2206 = vpop.f32.mrf.mxu0
        %v2207 = vadd.f32 0.0, %v2206
        %2208 = vdwg.mxu0
        %v2209 = vmul.f32 %v2126, 0.17677669
        %v2210 = vmul.f32 %v2153, 0.17677669
        %v2211 = vmul.f32 %v2180, 0.17677669
        %v2212 = vmul.f32 %v2207, 0.17677669
        %v2213 = vadd.f32 %v2209, %v578
        %v2214 = vadd.f32 %v2210, %v579
        %v2215 = vadd.f32 %v2211, %v580
        %v2216 = vadd.f32 %v2212, %v581
        %v2217 = vsel %vm792, %v2213, -inf
        %2218 = vmax.xlane.f32.xlu0 %v2217
        %v2219 = vpop.xlane.xlu0 %2218
        %v2220 = vsel %vm792, %v2214, -inf
        %2221 = vmax.xlane.f32.xlu0 %v2220
        %v2222 = vpop.xlane.xlu0 %2221
        %v2223 = vsel %vm792, %v2215, -inf
        %2224 = vmax.xlane.f32.xlu0 %v2223
        %v2225 = vpop.xlane.xlu0 %2224
        %v2226 = vsel %vm792, %v2216, -inf
        %2227 = vmax.xlane.f32.xlu0 %v2226
        %v2228 = vpop.xlane.xlu0 %2227
        %v2229 = vsub.f32 %v2213, %v2219
        %v2230 = vsub.f32 %v2214, %v2222
        %v2231 = vsub.f32 %v2215, %v2225
        %v2232 = vsub.f32 %v2216, %v2228
        %v2233 = vmul.f32 %v2229, 1.442695
        %v2234 = vpow.pop %v2233
        %v2235 = vmul.f32 %v2230, 1.442695
        %v2236 = vpow.pop %v2235
        %v2237 = vmul.f32 %v2231, 1.442695
        %v2238 = vpow.pop %v2237
        %v2239 = vmul.f32 %v2232, 1.442695
        %v2240 = vpow.pop %v2239
        %v2241 = vsel %vm792, %v2234, 0.0
        %2242 = vadd.xlane.f32.xlu0 %v2241
        %v2243 = vpop.xlane.xlu0 %2242
        %v2244 = vsel %vm792, %v2236, 0.0
        %2245 = vadd.xlane.f32.xlu0 %v2244
        %v2246 = vpop.xlane.xlu0 %2245
        %v2247 = vsel %vm792, %v2238, 0.0
        %2248 = vadd.xlane.f32.xlu0 %v2247
        %v2249 = vpop.xlane.xlu0 %2248
        %v2250 = vsel %vm792, %v2240, 0.0
        %2251 = vadd.xlane.f32.xlu0 %v2250
        %v2252 = vpop.xlane.xlu0 %2251
        %v2253 = vrcp.pop %v2243
        %v2254 = vrcp.pop %v2246
        %v2255 = vrcp.pop %v2249
        %v2256 = vrcp.pop %v2252
        %v2257 = vmul.f32 %v2234, %v2253
        %v2258 = vmul.f32 %v2236, %v2254
        %v2259 = vmul.f32 %v2238, %v2255
        %v2260 = vmul.f32 %v2240, %v2256
        %v2262 = vsel %vm792, %v2257, 0
        %2264 = vmatpush.msra.mxu0 0.0
        %2265 = vmatpush.msra.mxu0 0.0
        %2266 = vmatpush.msra.mxu0 0.0
        %2267 = vmatpush.msra.mxu0 0.0
        %2268 = vmatpush.msra.mxu0 0.0
        %2269 = vmatpush.msra.mxu0 0.0
        %2270 = vmatpush.msra.mxu0 0.0
        %2271 = vmatpush.msra.mxu0 0.0
        %2272 = vmatpush.msra.mxu0 0.0
        %2273 = vmatpush.msra.mxu0 0.0
        %2274 = vmatpush.msra.mxu0 0.0
        %2275 = vmatpush.msra.mxu0 0.0
        %2276 = vmatpush.msra.mxu0 0.0
        %2277 = vmatpush.msra.mxu0 0.0
        %2278 = vmatpush.msra.mxu0 0.0
        %2279 = vmatpush.msra.mxu0 %v2090
        %2280 = vmatmul.f32.gmra.mxu0 %v2262
        %v2281 = vpop.f32.mrf.mxu0
        %v2282 = vadd.f32 0.0, %v2281
        %2283 = vdwg.mxu0
        %v2285 = vsel %vm792, %v2258, 0
        %2287 = vmatpush.msra.mxu0 0.0
        %2288 = vmatpush.msra.mxu0 0.0
        %2289 = vmatpush.msra.mxu0 0.0
        %2290 = vmatpush.msra.mxu0 0.0
        %2291 = vmatpush.msra.mxu0 0.0
        %2292 = vmatpush.msra.mxu0 0.0
        %2293 = vmatpush.msra.mxu0 0.0
        %2294 = vmatpush.msra.mxu0 0.0
        %2295 = vmatpush.msra.mxu0 0.0
        %2296 = vmatpush.msra.mxu0 0.0
        %2297 = vmatpush.msra.mxu0 0.0
        %2298 = vmatpush.msra.mxu0 0.0
        %2299 = vmatpush.msra.mxu0 0.0
        %2300 = vmatpush.msra.mxu0 0.0
        %2301 = vmatpush.msra.mxu0 0.0
        %2302 = vmatpush.msra.mxu0 %v2093
        %2303 = vmatmul.f32.gmra.mxu0 %v2285
        %v2304 = vpop.f32.mrf.mxu0
        %v2305 = vadd.f32 0.0, %v2304
        %2306 = vdwg.mxu0
        %v2308 = vsel %vm792, %v2259, 0
        %2310 = vmatpush.msra.mxu0 0.0
        %2311 = vmatpush.msra.mxu0 0.0
        %2312 = vmatpush.msra.mxu0 0.0
        %2313 = vmatpush.msra.mxu0 0.0
        %2314 = vmatpush.msra.mxu0 0.0
        %2315 = vmatpush.msra.mxu0 0.0
        %2316 = vmatpush.msra.mxu0 0.0
        %2317 = vmatpush.msra.mxu0 0.0
        %2318 = vmatpush.msra.mxu0 0.0
        %2319 = vmatpush.msra.mxu0 0.0
        %2320 = vmatpush.msra.mxu0 0.0
        %2321 = vmatpush.msra.mxu0 0.0
        %2322 = vmatpush.msra.mxu0 0.0
        %2323 = vmatpush.msra.mxu0 0.0
        %2324 = vmatpush.msra.mxu0 0.0
        %2325 = vmatpush.msra.mxu0 %v2096
        %2326 = vmatmul.f32.gmra.mxu0 %v2308
        %v2327 = vpop.f32.mrf.mxu0
        %v2328 = vadd.f32 0.0, %v2327
        %2329 = vdwg.mxu0
        %v2331 = vsel %vm792, %v2260, 0
        %2333 = vmatpush.msra.mxu0 0.0
        %2334 = vmatpush.msra.mxu0 0.0
        %2335 = vmatpush.msra.mxu0 0.0
        %2336 = vmatpush.msra.mxu0 0.0
        %2337 = vmatpush.msra.mxu0 0.0
        %2338 = vmatpush.msra.mxu0 0.0
        %2339 = vmatpush.msra.mxu0 0.0
        %2340 = vmatpush.msra.mxu0 0.0
        %2341 = vmatpush.msra.mxu0 0.0
        %2342 = vmatpush.msra.mxu0 0.0
        %2343 = vmatpush.msra.mxu0 0.0
        %2344 = vmatpush.msra.mxu0 0.0
        %2345 = vmatpush.msra.mxu0 0.0
        %2346 = vmatpush.msra.mxu0 0.0
        %2347 = vmatpush.msra.mxu0 0.0
        %2348 = vmatpush.msra.mxu0 %v2099
        %2349 = vmatmul.f32.gmra.mxu0 %v2331
        %v2350 = vpop.f32.mrf.mxu0
        %v2351 = vadd.f32 0.0, %v2350
        %2352 = vdwg.mxu0
        %2353 = vrot.lane.b32.xlu0 %v2061, 96
        %v2354 = vpop.permute.xlu0 %2353
        %2355 = vrot.lane.b32.xlu0 %v2061, 32
        %v2356 = vpop.permute.xlu0 %2355
        %v2357 = vsel %vm678, %v2354, 0
        %v2359 = vsel %vm678, %v2356, 0
        %2361 = vmatpush.xpose.msra.mxu0 0.0
        %2362 = vmatpush.xpose.msra.mxu0 0.0
        %2363 = vmatpush.xpose.msra.mxu0 0.0
        %2364 = vmatpush.xpose.msra.mxu0 0.0
        %2365 = vmatpush.xpose.msra.mxu0 0.0
        %2366 = vmatpush.xpose.msra.mxu0 0.0
        %2367 = vmatpush.xpose.msra.mxu0 0.0
        %2368 = vmatpush.xpose.msra.mxu0 0.0
        %2369 = vmatpush.xpose.msra.mxu0 0.0
        %2370 = vmatpush.xpose.msra.mxu0 0.0
        %2371 = vmatpush.xpose.msra.mxu0 0.0
        %2372 = vmatpush.xpose.msra.mxu0 0.0
        %2373 = vmatpush.xpose.msra.mxu0 0.0
        %2374 = vmatpush.xpose.msra.mxu0 0.0
        %2375 = vmatpush.xpose.msra.mxu0 0.0
        %2376 = vmatpush.xpose.msra.mxu0 %v2359
        %2377 = vmatmul.f32.gmra.mxu0 %v2357
        %v2378 = vpop.f32.mrf.mxu0
        %v2379 = vadd.f32 0.0, %v2378
        %2380 = vdwg.mxu0
        %2381 = vrot.lane.b32.xlu0 %v2064, 96
        %v2382 = vpop.permute.xlu0 %2381
        %2383 = vrot.lane.b32.xlu0 %v2064, 32
        %v2384 = vpop.permute.xlu0 %2383
        %v2385 = vsel %vm678, %v2382, 0
        %v2387 = vsel %vm678, %v2384, 0
        %2389 = vmatpush.xpose.msra.mxu0 0.0
        %2390 = vmatpush.xpose.msra.mxu0 0.0
        %2391 = vmatpush.xpose.msra.mxu0 0.0
        %2392 = vmatpush.xpose.msra.mxu0 0.0
        %2393 = vmatpush.xpose.msra.mxu0 0.0
        %2394 = vmatpush.xpose.msra.mxu0 0.0
        %2395 = vmatpush.xpose.msra.mxu0 0.0
        %2396 = vmatpush.xpose.msra.mxu0 0.0
        %2397 = vmatpush.xpose.msra.mxu0 0.0
        %2398 = vmatpush.xpose.msra.mxu0 0.0
        %2399 = vmatpush.xpose.msra.mxu0 0.0
        %2400 = vmatpush.xpose.msra.mxu0 0.0
        %2401 = vmatpush.xpose.msra.mxu0 0.0
        %2402 = vmatpush.xpose.msra.mxu0 0.0
        %2403 = vmatpush.xpose.msra.mxu0 0.0
        %2404 = vmatpush.xpose.msra.mxu0 %v2387
        %2405 = vmatmul.f32.gmra.mxu0 %v2385
        %v2406 = vpop.f32.mrf.mxu0
        %v2407 = vadd.f32 0.0, %v2406
        %2408 = vdwg.mxu0
        %2409 = vrot.lane.b32.xlu0 %v2067, 96
        %v2410 = vpop.permute.xlu0 %2409
        %2411 = vrot.lane.b32.xlu0 %v2067, 32
        %v2412 = vpop.permute.xlu0 %2411
        %v2413 = vsel %vm678, %v2410, 0
        %v2415 = vsel %vm678, %v2412, 0
        %2417 = vmatpush.xpose.msra.mxu0 0.0
        %2418 = vmatpush.xpose.msra.mxu0 0.0
        %2419 = vmatpush.xpose.msra.mxu0 0.0
        %2420 = vmatpush.xpose.msra.mxu0 0.0
        %2421 = vmatpush.xpose.msra.mxu0 0.0
        %2422 = vmatpush.xpose.msra.mxu0 0.0
        %2423 = vmatpush.xpose.msra.mxu0 0.0
        %2424 = vmatpush.xpose.msra.mxu0 0.0
        %2425 = vmatpush.xpose.msra.mxu0 0.0
        %2426 = vmatpush.xpose.msra.mxu0 0.0
        %2427 = vmatpush.xpose.msra.mxu0 0.0
        %2428 = vmatpush.xpose.msra.mxu0 0.0
        %2429 = vmatpush.xpose.msra.mxu0 0.0
        %2430 = vmatpush.xpose.msra.mxu0 0.0
        %2431 = vmatpush.xpose.msra.mxu0 0.0
        %2432 = vmatpush.xpose.msra.mxu0 %v2415
        %2433 = vmatmul.f32.gmra.mxu0 %v2413
        %v2434 = vpop.f32.mrf.mxu0
        %v2435 = vadd.f32 0.0, %v2434
        %2436 = vdwg.mxu0
        %2437 = vrot.lane.b32.xlu0 %v2070, 96
        %v2438 = vpop.permute.xlu0 %2437
        %2439 = vrot.lane.b32.xlu0 %v2070, 32
        %v2440 = vpop.permute.xlu0 %2439
        %v2441 = vsel %vm678, %v2438, 0
        %v2443 = vsel %vm678, %v2440, 0
        %2445 = vmatpush.xpose.msra.mxu0 0.0
        %2446 = vmatpush.xpose.msra.mxu0 0.0
        %2447 = vmatpush.xpose.msra.mxu0 0.0
        %2448 = vmatpush.xpose.msra.mxu0 0.0
        %2449 = vmatpush.xpose.msra.mxu0 0.0
        %2450 = vmatpush.xpose.msra.mxu0 0.0
        %2451 = vmatpush.xpose.msra.mxu0 0.0
        %2452 = vmatpush.xpose.msra.mxu0 0.0
        %2453 = vmatpush.xpose.msra.mxu0 0.0
        %2454 = vmatpush.xpose.msra.mxu0 0.0
        %2455 = vmatpush.xpose.msra.mxu0 0.0
        %2456 = vmatpush.xpose.msra.mxu0 0.0
        %2457 = vmatpush.xpose.msra.mxu0 0.0
        %2458 = vmatpush.xpose.msra.mxu0 0.0
        %2459 = vmatpush.xpose.msra.mxu0 0.0
        %2460 = vmatpush.xpose.msra.mxu0 %v2443
        %2461 = vmatmul.f32.gmra.mxu0 %v2441
        %v2462 = vpop.f32.mrf.mxu0
        %v2463 = vadd.f32 0.0, %v2462
        %2464 = vdwg.mxu0
        %v2465 = vmul.f32 %v2379, 0.17677669
        %v2466 = vmul.f32 %v2407, 0.17677669
        %v2467 = vmul.f32 %v2435, 0.17677669
        %v2468 = vmul.f32 %v2463, 0.17677669
        %v2469 = vadd.f32 %v2465, %v578
        %v2470 = vadd.f32 %v2466, %v579
        %v2471 = vadd.f32 %v2467, %v580
        %v2472 = vadd.f32 %v2468, %v581
        %v2473 = vsel %vm792, %v2469, -inf
        %2474 = vmax.xlane.f32.xlu0 %v2473
        %v2475 = vpop.xlane.xlu0 %2474
        %v2476 = vsel %vm792, %v2470, -inf
        %2477 = vmax.xlane.f32.xlu0 %v2476
        %v2478 = vpop.xlane.xlu0 %2477
        %v2479 = vsel %vm792, %v2471, -inf
        %2480 = vmax.xlane.f32.xlu0 %v2479
        %v2481 = vpop.xlane.xlu0 %2480
        %v2482 = vsel %vm792, %v2472, -inf
        %2483 = vmax.xlane.f32.xlu0 %v2482
        %v2484 = vpop.xlane.xlu0 %2483
        %v2485 = vsub.f32 %v2469, %v2475
        %v2486 = vsub.f32 %v2470, %v2478
        %v2487 = vsub.f32 %v2471, %v2481
        %v2488 = vsub.f32 %v2472, %v2484
        %v2489 = vmul.f32 %v2485, 1.442695
        %v2490 = vpow.pop %v2489
        %v2491 = vmul.f32 %v2486, 1.442695
        %v2492 = vpow.pop %v2491
        %v2493 = vmul.f32 %v2487, 1.442695
        %v2494 = vpow.pop %v2493
        %v2495 = vmul.f32 %v2488, 1.442695
        %v2496 = vpow.pop %v2495
        %v2497 = vsel %vm792, %v2490, 0.0
        %2498 = vadd.xlane.f32.xlu0 %v2497
        %v2499 = vpop.xlane.xlu0 %2498
        %v2500 = vsel %vm792, %v2492, 0.0
        %2501 = vadd.xlane.f32.xlu0 %v2500
        %v2502 = vpop.xlane.xlu0 %2501
        %v2503 = vsel %vm792, %v2494, 0.0
        %2504 = vadd.xlane.f32.xlu0 %v2503
        %v2505 = vpop.xlane.xlu0 %2504
        %v2506 = vsel %vm792, %v2496, 0.0
        %2507 = vadd.xlane.f32.xlu0 %v2506
        %v2508 = vpop.xlane.xlu0 %2507
        %v2509 = vrcp.pop %v2499
        %v2510 = vrcp.pop %v2502
        %v2511 = vrcp.pop %v2505
        %v2512 = vrcp.pop %v2508
        %v2513 = vmul.f32 %v2490, %v2509
        %v2514 = vmul.f32 %v2492, %v2510
        %v2515 = vmul.f32 %v2494, %v2511
        %v2516 = vmul.f32 %v2496, %v2512
        %2518 = vrot.lane.b32.xlu0 %v2090, 96
        %v2519 = vpop.permute.xlu0 %2518
        %v2522 = vsel %vm792, %v2513, 0
        %2524 = vmatpush.msra.mxu0 0.0
        %2525 = vmatpush.msra.mxu0 0.0
        %2526 = vmatpush.msra.mxu0 0.0
        %2527 = vmatpush.msra.mxu0 0.0
        %2528 = vmatpush.msra.mxu0 0.0
        %2529 = vmatpush.msra.mxu0 0.0
        %2530 = vmatpush.msra.mxu0 0.0
        %2531 = vmatpush.msra.mxu0 0.0
        %2532 = vmatpush.msra.mxu0 0.0
        %2533 = vmatpush.msra.mxu0 0.0
        %2534 = vmatpush.msra.mxu0 0.0
        %2535 = vmatpush.msra.mxu0 0.0
        %2536 = vmatpush.msra.mxu0 0.0
        %2537 = vmatpush.msra.mxu0 0.0
        %2538 = vmatpush.msra.mxu0 0.0
        %2539 = vmatpush.msra.mxu0 %v2519
        %2540 = vmatmul.f32.gmra.mxu0 %v2522
        %v2541 = vpop.f32.mrf.mxu0
        %v2542 = vadd.f32 0.0, %v2541
        %2543 = vdwg.mxu0
        %2545 = vrot.lane.b32.xlu0 %v2093, 96
        %v2546 = vpop.permute.xlu0 %2545
        %v2549 = vsel %vm792, %v2514, 0
        %2551 = vmatpush.msra.mxu0 0.0
        %2552 = vmatpush.msra.mxu0 0.0
        %2553 = vmatpush.msra.mxu0 0.0
        %2554 = vmatpush.msra.mxu0 0.0
        %2555 = vmatpush.msra.mxu0 0.0
        %2556 = vmatpush.msra.mxu0 0.0
        %2557 = vmatpush.msra.mxu0 0.0
        %2558 = vmatpush.msra.mxu0 0.0
        %2559 = vmatpush.msra.mxu0 0.0
        %2560 = vmatpush.msra.mxu0 0.0
        %2561 = vmatpush.msra.mxu0 0.0
        %2562 = vmatpush.msra.mxu0 0.0
        %2563 = vmatpush.msra.mxu0 0.0
        %2564 = vmatpush.msra.mxu0 0.0
        %2565 = vmatpush.msra.mxu0 0.0
        %2566 = vmatpush.msra.mxu0 %v2546
        %2567 = vmatmul.f32.gmra.mxu0 %v2549
        %v2568 = vpop.f32.mrf.mxu0
        %v2569 = vadd.f32 0.0, %v2568
        %2570 = vdwg.mxu0
        %2572 = vrot.lane.b32.xlu0 %v2096, 96
        %v2573 = vpop.permute.xlu0 %2572
        %v2576 = vsel %vm792, %v2515, 0
        %2578 = vmatpush.msra.mxu0 0.0
        %2579 = vmatpush.msra.mxu0 0.0
        %2580 = vmatpush.msra.mxu0 0.0
        %2581 = vmatpush.msra.mxu0 0.0
        %2582 = vmatpush.msra.mxu0 0.0
        %2583 = vmatpush.msra.mxu0 0.0
        %2584 = vmatpush.msra.mxu0 0.0
        %2585 = vmatpush.msra.mxu0 0.0
        %2586 = vmatpush.msra.mxu0 0.0
        %2587 = vmatpush.msra.mxu0 0.0
        %2588 = vmatpush.msra.mxu0 0.0
        %2589 = vmatpush.msra.mxu0 0.0
        %2590 = vmatpush.msra.mxu0 0.0
        %2591 = vmatpush.msra.mxu0 0.0
        %2592 = vmatpush.msra.mxu0 0.0
        %2593 = vmatpush.msra.mxu0 %v2573
        %2594 = vmatmul.f32.gmra.mxu0 %v2576
        %v2595 = vpop.f32.mrf.mxu0
        %v2596 = vadd.f32 0.0, %v2595
        %2597 = vdwg.mxu0
        %2599 = vrot.lane.b32.xlu0 %v2099, 96
        %v2600 = vpop.permute.xlu0 %2599
        %v2603 = vsel %vm792, %v2516, 0
        %2605 = vmatpush.msra.mxu0 0.0
        %2606 = vmatpush.msra.mxu0 0.0
        %2607 = vmatpush.msra.mxu0 0.0
        %2608 = vmatpush.msra.mxu0 0.0
        %2609 = vmatpush.msra.mxu0 0.0
        %2610 = vmatpush.msra.mxu0 0.0
        %2611 = vmatpush.msra.mxu0 0.0
        %2612 = vmatpush.msra.mxu0 0.0
        %2613 = vmatpush.msra.mxu0 0.0
        %2614 = vmatpush.msra.mxu0 0.0
        %2615 = vmatpush.msra.mxu0 0.0
        %2616 = vmatpush.msra.mxu0 0.0
        %2617 = vmatpush.msra.mxu0 0.0
        %2618 = vmatpush.msra.mxu0 0.0
        %2619 = vmatpush.msra.mxu0 0.0
        %2620 = vmatpush.msra.mxu0 %v2600
        %2621 = vmatmul.f32.gmra.mxu0 %v2603
        %v2622 = vpop.f32.mrf.mxu0
        %v2623 = vadd.f32 0.0, %v2622
        %2624 = vdwg.mxu0
        %2629 = vrot.lane.b32.xlu0 %v2542, 32
        %v2630 = vpop.permute.xlu0 %2629
        %2631 = vrot.lane.b32.xlu0 %v2569, 32
        %v2632 = vpop.permute.xlu0 %2631
        %2633 = vrot.lane.b32.xlu0 %v2596, 32
        %v2634 = vpop.permute.xlu0 %2633
        %2635 = vrot.lane.b32.xlu0 %v2623, 32
        %v2636 = vpop.permute.xlu0 %2635
        %v2641 = vsel %vm678, %v2282, %v2630
        %v2642 = vsel %vm678, %v2305, %v2632
        %v2643 = vsel %vm678, %v2328, %v2634
        %v2644 = vsel %vm678, %v2351, %v2636
        %s2645 = scalar_lea.vmem %s4, 64
        %v2646 = vld [vmem:[%s2645] sm:$0xff]
        %v2647 = vld [vmem:[%s2645 + $0x8] sm:$0xff]
        %v2648 = vld [vmem:[%s2645 + $0x10] sm:$0xff]
        %v2649 = vld [vmem:[%s2645 + $0x18] sm:$0xff]
        %v2650 = vld [vmem:[%s2645 + $0x20] sm:$0xff]
        %v2651 = vld [vmem:[%s2645 + $0x28] sm:$0xff]
        %v2652 = vld [vmem:[%s2645 + $0x30] sm:$0xff]
        %v2653 = vld [vmem:[%s2645 + $0x38] sm:$0xff]
        %s2654 = scalar_lea.vmem [#allocation5], 1
        %v2655 = vld [vmem:[%s2654] sm:$0x1]
        %v2657 = vperm.slane %v2655, 0
        %v2660 = vsel %vm604, %v2641, 0
        %v2663 = vsel %vm604, %v2642, 0
        %v2666 = vsel %vm604, %v2643, 0
        %v2669 = vsel %vm604, %v2644, 0
        %2671 = vmatpush.msra.mxu0 0.0
        %2672 = vmatpush.msra.mxu0 0.0
        %2673 = vmatpush.msra.mxu0 0.0
        %2674 = vmatpush.msra.mxu0 0.0
        %2675 = vmatpush.msra.mxu0 0.0
        %2676 = vmatpush.msra.mxu0 0.0
        %2677 = vmatpush.msra.mxu0 0.0
        %2678 = vmatpush.msra.mxu0 0.0
        %2679 = vmatpush.msra.mxu0 %v2653
        %2680 = vmatpush.msra.mxu0 %v2652
        %2681 = vmatpush.msra.mxu0 %v2651
        %2682 = vmatpush.msra.mxu0 %v2650
        %2683 = vmatpush.msra.mxu0 %v2649
        %2684 = vmatpush.msra.mxu0 %v2648
        %2685 = vmatpush.msra.mxu0 %v2647
        %2686 = vmatpush.msra.mxu0 %v2646
        %2687 = vmatmul.f32.gmra.mxu0 %v2660
        %v2688 = vpop.f32.mrf.mxu0
        %v2689 = vadd.f32 %v2657, %v2688
        %2690 = vmatmul.f32.gmra.mxu0 %v2663
        %v2691 = vpop.f32.mrf.mxu0
        %v2692 = vadd.f32 %v2657, %v2691
        %2693 = vmatmul.f32.gmra.mxu0 %v2666
        %v2694 = vpop.f32.mrf.mxu0
        %v2695 = vadd.f32 %v2657, %v2694
        %2696 = vmatmul.f32.gmra.mxu0 %v2669
        %v2697 = vpop.f32.mrf.mxu0
        %v2698 = vadd.f32 %v2657, %v2697
        %2699 = vdwg.mxu0
        %v2700 = vadd.f32 %v2689, %v1999
        %v2701 = vadd.f32 %v2692, %v2000
        %v2702 = vadd.f32 %v2695, %v2001
        %v2703 = vadd.f32 %v2698, %v2002
        %s2704 = scalar_lea.vmem [#allocation7], 1
        %v2705 = vld [vmem:[%s2704] sm:$0x1]
        %s2706 = scalar_lea.vmem [#allocation8], 1
        %v2707 = vld [vmem:[%s2706] sm:$0x1]
        %v2708 = vsel %vm604, %v2700, 0.0
        %2709 = vadd.xlane.f32.xlu0 %v2708
        %v2710 = vpop.xlane.xlu0 %2709
        %v2711 = vsel %vm604, %v2701, 0.0
        %2712 = vadd.xlane.f32.xlu0 %v2711
        %v2713 = vpop.xlane.xlu0 %2712
        %v2714 = vsel %vm604, %v2702, 0.0
        %2715 = vadd.xlane.f32.xlu0 %v2714
        %v2716 = vpop.xlane.xlu0 %2715
        %v2717 = vsel %vm604, %v2703, 0.0
        %2718 = vadd.xlane.f32.xlu0 %v2717
        %v2719 = vpop.xlane.xlu0 %2718
        %v2720 = vmul.f32 %v2710, %v1298
        %v2721 = vmul.f32 %v2713, %v1298
        %v2722 = vmul.f32 %v2716, %v1298
        %v2723 = vmul.f32 %v2719, %v1298
        %v2724 = vsub.f32 %v2700, %v2720
        %v2725 = vsub.f32 %v2701, %v2721
        %v2726 = vsub.f32 %v2702, %v2722
        %v2727 = vsub.f32 %v2703, %v2723
        %v2728 = vmul.f32 %v2724, %v2724
        %v2729 = vmul.f32 %v2725, %v2725
        %v2730 = vmul.f32 %v2726, %v2726
        %v2731 = vmul.f32 %v2727, %v2727
        %v2732 = vsel %vm604, %v2728, 0.0
        %2733 = vadd.xlane.f32.xlu0 %v2732
        %v2734 = vpop.xlane.xlu0 %2733
        %v2735 = vsel %vm604, %v2729, 0.0
        %2736 = vadd.xlane.f32.xlu0 %v2735
        %v2737 = vpop.xlane.xlu0 %2736
        %v2738 = vsel %vm604, %v2730, 0.0
        %2739 = vadd.xlane.f32.xlu0 %v2738
        %v2740 = vpop.xlane.xlu0 %2739
        %v2741 = vsel %vm604, %v2731, 0.0
        %2742 = vadd.xlane.f32.xlu0 %v2741
        %v2743 = vpop.xlane.xlu0 %2742
        %v2744 = vmul.f32 %v2734, %v1298
        %v2745 = vmul.f32 %v2737, %v1298
        %v2746 = vmul.f32 %v2740, %v1298
        %v2747 = vmul.f32 %v2743, %v1298
        %v2748 = vadd.f32 %v2744, 1e-12
        %v2749 = vadd.f32 %v2745, 1e-12
        %v2750 = vadd.f32 %v2746, 1e-12
        %v2751 = vadd.f32 %v2747, 1e-12
        %v2752 = vrsqrt.pop %v2748
        %v2753 = vmul.f32 %v2752, %v2748
        %v2754 = vmul.f32 %v2753, %v2752
        %v2755 = vmul.f32 0.5, %v2754
        %v2756 = vsub.f32 1.5, %v2755
        %v2757 = vmul.f32 %v2752, %v2756
        %vm2758 = vweird.f32 %v2748
        %vm2759 = vweird.f32 %v2752
        %vm2760 = vmor %vm2758, %vm2759
        %v2761 = vsel %vm2760, %v2752, %v2757
        %v2762 = vrsqrt.pop %v2749
        %v2763 = vmul.f32 %v2762, %v2749
        %v2764 = vmul.f32 %v2763, %v2762
        %v2765 = vmul.f32 0.5, %v2764
        %v2766 = vsub.f32 1.5, %v2765
        %v2767 = vmul.f32 %v2762, %v2766
        %vm2768 = vweird.f32 %v2749
        %vm2769 = vweird.f32 %v2762
        %vm2770 = vmor %vm2768, %vm2769
        %v2771 = vsel %vm2770, %v2762, %v2767
        %v2772 = vrsqrt.pop %v2750
        %v2773 = vmul.f32 %v2772, %v2750
        %v2774 = vmul.f32 %v2773, %v2772
        %v2775 = vmul.f32 0.5, %v2774
        %v2776 = vsub.f32 1.5, %v2775
        %v2777 = vmul.f32 %v2772, %v2776
        %vm2778 = vweird.f32 %v2750
        %vm2779 = vweird.f32 %v2772
        %vm2780 = vmor %vm2778, %vm2779
        %v2781 = vsel %vm2780, %v2772, %v2777
        %v2782 = vrsqrt.pop %v2751
        %v2783 = vmul.f32 %v2782, %v2751
        %v2784 = vmul.f32 %v2783, %v2782
        %v2785 = vmul.f32 0.5, %v2784
        %v2786 = vsub.f32 1.5, %v2785
        %v2787 = vmul.f32 %v2782, %v2786
        %vm2788 = vweird.f32 %v2751
        %vm2789 = vweird.f32 %v2782
        %vm2790 = vmor %vm2788, %vm2789
        %v2791 = vsel %vm2790, %v2782, %v2787
        %v2792 = vmul.f32 %v2724, %v2761
        %v2793 = vmul.f32 %v2725, %v2771
        %v2794 = vmul.f32 %v2726, %v2781
        %v2795 = vmul.f32 %v2727, %v2791
        %v2797 = vperm.slane %v2705, 0
        %v2799 = vmul.f32 %v2792, %v2797
        %v2800 = vmul.f32 %v2793, %v2797
        %v2801 = vmul.f32 %v2794, %v2797
        %v2802 = vmul.f32 %v2795, %v2797
        %v2804 = vperm.slane %v2707, 0
        %v2806 = vadd.f32 %v2799, %v2804
        %v2807 = vadd.f32 %v2800, %v2804
        %v2808 = vadd.f32 %v2801, %v2804
        %v2809 = vadd.f32 %v2802, %v2804
        %s2810 = scalar_lea.vmem %s8, 128
        %v2811 = vld [vmem:[%s2810] sm:$0xff]
        %v2812 = vld [vmem:[%s2810 + $0x8] sm:$0xff]
        %v2813 = vld [vmem:[%s2810 + $0x10] sm:$0xff]
        %v2814 = vld [vmem:[%s2810 + $0x18] sm:$0xff]
        %v2815 = vld [vmem:[%s2810 + $0x20] sm:$0xff]
        %v2816 = vld [vmem:[%s2810 + $0x28] sm:$0xff]
        %v2817 = vld [vmem:[%s2810 + $0x30] sm:$0xff]
        %v2818 = vld [vmem:[%s2810 + $0x38] sm:$0xff]
        %v2819 = vld [vmem:[%s2810 + $0x40] sm:$0xff]
        %v2820 = vld [vmem:[%s2810 + $0x48] sm:$0xff]
        %v2821 = vld [vmem:[%s2810 + $0x50] sm:$0xff]
        %v2822 = vld [vmem:[%s2810 + $0x58] sm:$0xff]
        %v2823 = vld [vmem:[%s2810 + $0x60] sm:$0xff]
        %v2824 = vld [vmem:[%s2810 + $0x68] sm:$0xff]
        %v2825 = vld [vmem:[%s2810 + $0x70] sm:$0xff]
        %v2826 = vld [vmem:[%s2810 + $0x78] sm:$0xff]
        %s2827 = scalar_lea.vmem %s9, 2
        %v2828 = vld [vmem:[%s2827] sm:$0x3]
        %v2830 = vperm.slane %v2828, 0
        %v2831 = vperm.slane %v2828, 1
        %v2835 = vsel %vm604, %v2806, 0
        %v2838 = vsel %vm604, %v2807, 0
        %v2841 = vsel %vm604, %v2808, 0
        %v2844 = vsel %vm604, %v2809, 0
        %2846 = vmatpush.msra.mxu0 0.0
        %2847 = vmatpush.msra.mxu0 0.0
        %2848 = vmatpush.msra.mxu0 0.0
        %2849 = vmatpush.msra.mxu0 0.0
        %2850 = vmatpush.msra.mxu0 0.0
        %2851 = vmatpush.msra.mxu0 0.0
        %2852 = vmatpush.msra.mxu0 0.0
        %2853 = vmatpush.msra.mxu0 0.0
        %2854 = vmatpush.msra.mxu0 %v2825
        %2855 = vmatpush.msra.mxu0 %v2823
        %2856 = vmatpush.msra.mxu0 %v2821
        %2857 = vmatpush.msra.mxu0 %v2819
        %2858 = vmatpush.msra.mxu0 %v2817
        %2859 = vmatpush.msra.mxu0 %v2815
        %2860 = vmatpush.msra.mxu0 %v2813
        %2861 = vmatpush.msra.mxu0 %v2811
        %2862 = vmatmul.f32.gmra.mxu0 %v2835
        %v2863 = vpop.f32.mrf.mxu0
        %v2864 = vadd.f32 %v2830, %v2863
        %2865 = vmatmul.f32.gmra.mxu0 %v2838
        %v2866 = vpop.f32.mrf.mxu0
        %v2867 = vadd.f32 %v2830, %v2866
        %2868 = vmatmul.f32.gmra.mxu0 %v2841
        %v2869 = vpop.f32.mrf.mxu0
        %v2870 = vadd.f32 %v2830, %v2869
        %2871 = vmatmul.f32.gmra.mxu0 %v2844
        %v2872 = vpop.f32.mrf.mxu0
        %v2873 = vadd.f32 %v2830, %v2872
        %2874 = vdwg.mxu0
        %2875 = vmatpush.msra.mxu0 0.0
        %2876 = vmatpush.msra.mxu0 0.0
        %2877 = vmatpush.msra.mxu0 0.0
        %2878 = vmatpush.msra.mxu0 0.0
        %2879 = vmatpush.msra.mxu0 0.0
        %2880 = vmatpush.msra.mxu0 0.0
        %2881 = vmatpush.msra.mxu0 0.0
        %2882 = vmatpush.msra.mxu0 0.0
        %2883 = vmatpush.msra.mxu0 %v2826
        %2884 = vmatpush.msra.mxu0 %v2824
        %2885 = vmatpush.msra.mxu0 %v2822
        %2886 = vmatpush.msra.mxu0 %v2820
        %2887 = vmatpush.msra.mxu0 %v2818
        %2888 = vmatpush.msra.mxu0 %v2816
        %2889 = vmatpush.msra.mxu0 %v2814
        %2890 = vmatpush.msra.mxu0 %v2812
        %2891 = vmatmul.f32.gmra.mxu0 %v2835
        %v2892 = vpop.f32.mrf.mxu0
        %v2893 = vadd.f32 %v2831, %v2892
        %2894 = vmatmul.f32.gmra.mxu0 %v2838
        %v2895 = vpop.f32.mrf.mxu0
        %v2896 = vadd.f32 %v2831, %v2895
        %2897 = vmatmul.f32.gmra.mxu0 %v2841
        %v2898 = vpop.f32.mrf.mxu0
        %v2899 = vadd.f32 %v2831, %v2898
        %2900 = vmatmul.f32.gmra.mxu0 %v2844
        %v2901 = vpop.f32.mrf.mxu0
        %v2902 = vadd.f32 %v2831, %v2901
        %2903 = vdwg.mxu0
        %v2904 = vmul.f32 %v2864, 0.5
        %v2905 = vmul.f32 %v2893, 0.5
        %v2906 = vmul.f32 %v2867, 0.5
        %v2907 = vmul.f32 %v2896, 0.5
        %v2908 = vmul.f32 %v2870, 0.5
        %v2909 = vmul.f32 %v2899, 0.5
        %v2910 = vmul.f32 %v2873, 0.5
        %v2911 = vmul.f32 %v2902, 0.5
        %v2912 = vmul.f32 %v2864, 0.70710677
        %v2913 = vmul.f32 %v2893, 0.70710677
        %v2914 = vmul.f32 %v2867, 0.70710677
        %v2915 = vmul.f32 %v2896, 0.70710677
        %v2916 = vmul.f32 %v2870, 0.70710677
        %v2917 = vmul.f32 %v2899, 0.70710677
        %v2918 = vmul.f32 %v2873, 0.70710677
        %v2919 = vmul.f32 %v2902, 0.70710677
        %v2920 = vand.u32 2147483647, %v2912
        %v2921 = vand.u32 2147483647, %v2913
        %v2922 = vand.u32 2147483647, %v2914
        %v2923 = vand.u32 2147483647, %v2915
        %v2924 = vand.u32 2147483647, %v2916
        %v2925 = vand.u32 2147483647, %v2917
        %v2926 = vand.u32 2147483647, %v2918
        %v2927 = vand.u32 2147483647, %v2919
        %v2928 = vmul.f32 %v2920, 0.3275911
        %v2929 = vmul.f32 %v2921, 0.3275911
        %v2930 = vmul.f32 %v2922, 0.3275911
        %v2931 = vmul.f32 %v2923, 0.3275911
        %v2932 = vmul.f32 %v2924, 0.3275911
        %v2933 = vmul.f32 %v2925, 0.3275911
        %v2934 = vmul.f32 %v2926, 0.3275911
        %v2935 = vmul.f32 %v2927, 0.3275911
        %v2936 = vadd.f32 %v2928, 1.0
        %v2937 = vadd.f32 %v2929, 1.0
        %v2938 = vadd.f32 %v2930, 1.0
        %v2939 = vadd.f32 %v2931, 1.0
        %v2940 = vadd.f32 %v2932, 1.0
        %v2941 = vadd.f32 %v2933, 1.0
        %v2942 = vadd.f32 %v2934, 1.0
        %v2943 = vadd.f32 %v2935, 1.0
        %v2944 = vrcp.pop %v2936
        %v2945 = vmul.f32 %v2936, %v2944
        %v2946 = vsub.f32 1.0, %v2945
        %v2947 = vmul.f32 %v2944, %v2946
        %v2948 = vadd.f32 %v2944, %v2947
        %vm2949 = vweird.f32 %v2936
        %vm2950 = vweird.f32 %v2944
        %vm2951 = vmor %vm2949, %vm2950
        %v2952 = vsel %vm2951, %v2944, %v2948
        %v2953 = vand.u32 2147483647, %v2936
        %vm2954 = vcmp.eq.f32.partialorder %v2953, 8.507059e+37
        %v2955 = vand.u32 %v2936, 2147483648
        %v2956 = vor.u32 1.1754944e-38, %v2955
        %v2957 = vsel %vm2954, %v2956, %v2952
        %v2958 = vmul.f32 1.0, %v2957
        %v2959 = vrcp.pop %v2937
        %v2960 = vmul.f32 %v2937, %v2959
        %v2961 = vsub.f32 1.0, %v2960
        %v2962 = vmul.f32 %v2959, %v2961
        %v2963 = vadd.f32 %v2959, %v2962
        %vm2964 = vweird.f32 %v2937
        %vm2965 = vweird.f32 %v2959
        %vm2966 = vmor %vm2964, %vm2965
        %v2967 = vsel %vm2966, %v2959, %v2963
        %v2968 = vand.u32 2147483647, %v2937
        %vm2969 = vcmp.eq.f32.partialorder %v2968, 8.507059e+37
        %v2970 = vand.u32 %v2937, 2147483648
        %v2971 = vor.u32 1.1754944e-38, %v2970
        %v2972 = vsel %vm2969, %v2971, %v2967
        %v2973 = vmul.f32 1.0, %v2972
        %v2974 = vrcp.pop %v2938
        %v2975 = vmul.f32 %v2938, %v2974
        %v2976 = vsub.f32 1.0, %v2975
        %v2977 = vmul.f32 %v2974, %v2976
        %v2978 = vadd.f32 %v2974, %v2977
        %vm2979 = vweird.f32 %v2938
        %vm2980 = vweird.f32 %v2974
        %vm2981 = vmor %vm2979, %vm2980
        %v2982 = vsel %vm2981, %v2974, %v2978
        %v2983 = vand.u32 2147483647, %v2938
        %vm2984 = vcmp.eq.f32.partialorder %v2983, 8.507059e+37
        %v2985 = vand.u32 %v2938, 2147483648
        %v2986 = vor.u32 1.1754944e-38, %v2985
        %v2987 = vsel %vm2984, %v2986, %v2982
        %v2988 = vmul.f32 1.0, %v2987
        %v2989 = vrcp.pop %v2939
        %v2990 = vmul.f32 %v2939, %v2989
        %v2991 = vsub.f32 1.0, %v2990
        %v2992 = vmul.f32 %v2989, %v2991
        %v2993 = vadd.f32 %v2989, %v2992
        %vm2994 = vweird.f32 %v2939
        %vm2995 = vweird.f32 %v2989
        %vm2996 = vmor %vm2994, %vm2995
        %v2997 = vsel %vm2996, %v2989, %v2993
        %v2998 = vand.u32 2147483647, %v2939
        %vm2999 = vcmp.eq.f32.partialorder %v2998, 8.507059e+37
        %v3000 = vand.u32 %v2939, 2147483648
        %v3001 = vor.u32 1.1754944e-38, %v3000
        %v3002 = vsel %vm2999, %v3001, %v2997
        %v3003 = vmul.f32 1.0, %v3002
        %v3004 = vrcp.pop %v2940
        %v3005 = vmul.f32 %v2940, %v3004
        %v3006 = vsub.f32 1.0, %v3005
        %v3007 = vmul.f32 %v3004, %v3006
        %v3008 = vadd.f32 %v3004, %v3007
        %vm3009 = vweird.f32 %v2940
        %vm3010 = vweird.f32 %v3004
        %vm3011 = vmor %vm3009, %vm3010
        %v3012 = vsel %vm3011, %v3004, %v3008
        %v3013 = vand.u32 2147483647, %v2940
        %vm3014 = vcmp.eq.f32.partialorder %v3013, 8.507059e+37
        %v3015 = vand.u32 %v2940, 2147483648
        %v3016 = vor.u32 1.1754944e-38, %v3015
        %v3017 = vsel %vm3014, %v3016, %v3012
        %v3018 = vmul.f32 1.0, %v3017
        %v3019 = vrcp.pop %v2941
        %v3020 = vmul.f32 %v2941, %v3019
        %v3021 = vsub.f32 1.0, %v3020
        %v3022 = vmul.f32 %v3019, %v3021
        %v3023 = vadd.f32 %v3019, %v3022
        %vm3024 = vweird.f32 %v2941
        %vm3025 = vweird.f32 %v3019
        %vm3026 = vmor %vm3024, %vm3025
        %v3027 = vsel %vm3026, %v3019, %v3023
        %v3028 = vand.u32 2147483647, %v2941
        %vm3029 = vcmp.eq.f32.partialorder %v3028, 8.507059e+37
        %v3030 = vand.u32 %v2941, 2147483648
        %v3031 = vor.u32 1.1754944e-38, %v3030
        %v3032 = vsel %vm3029, %v3031, %v3027
        %v3033 = vmul.f32 1.0, %v3032
        %v3034 = vrcp.pop %v2942
        %v3035 = vmul.f32 %v2942, %v3034
        %v3036 = vsub.f32 1.0, %v3035
        %v3037 = vmul.f32 %v3034, %v3036
        %v3038 = vadd.f32 %v3034, %v3037
        %vm3039 = vweird.f32 %v2942
        %vm3040 = vweird.f32 %v3034
        %vm3041 = vmor %vm3039, %vm3040
        %v3042 = vsel %vm3041, %v3034, %v3038
        %v3043 = vand.u32 2147483647, %v2942
        %vm3044 = vcmp.eq.f32.partialorder %v3043, 8.507059e+37
        %v3045 = vand.u32 %v2942, 2147483648
        %v3046 = vor.u32 1.1754944e-38, %v3045
        %v3047 = vsel %vm3044, %v3046, %v3042
        %v3048 = vmul.f32 1.0, %v3047
        %v3049 = vrcp.pop %v2943
        %v3050 = vmul.f32 %v2943, %v3049
        %v3051 = vsub.f32 1.0, %v3050
        %v3052 = vmul.f32 %v3049, %v3051
        %v3053 = vadd.f32 %v3049, %v3052
        %vm3054 = vweird.f32 %v2943
        %vm3055 = vweird.f32 %v3049
        %vm3056 = vmor %vm3054, %vm3055
        %v3057 = vsel %vm3056, %v3049, %v3053
        %v3058 = vand.u32 2147483647, %v2943
        %vm3059 = vcmp.eq.f32.partialorder %v3058, 8.507059e+37
        %v3060 = vand.u32 %v2943, 2147483648
        %v3061 = vor.u32 1.1754944e-38, %v3060
        %v3062 = vsel %vm3059, %v3061, %v3057
        %v3063 = vmul.f32 1.0, %v3062
        %v3064 = vmul.f32 %v2958, 1.0614054
        %v3065 = vmul.f32 %v2973, 1.0614054
        %v3066 = vmul.f32 %v2988, 1.0614054
        %v3067 = vmul.f32 %v3003, 1.0614054
        %v3068 = vmul.f32 %v3018, 1.0614054
        %v3069 = vmul.f32 %v3033, 1.0614054
        %v3070 = vmul.f32 %v3048, 1.0614054
        %v3071 = vmul.f32 %v3063, 1.0614054
        %v3072 = vadd.f32 %v3064, -1.4531521
        %v3073 = vadd.f32 %v3065, -1.4531521
        %v3074 = vadd.f32 %v3066, -1.4531521
        %v3075 = vadd.f32 %v3067, -1.4531521
        %v3076 = vadd.f32 %v3068, -1.4531521
        %v3077 = vadd.f32 %v3069, -1.4531521
        %v3078 = vadd.f32 %v3070, -1.4531521
        %v3079 = vadd.f32 %v3071, -1.4531521
        %v3080 = vmul.f32 %v3072, %v2958
        %v3081 = vmul.f32 %v3073, %v2973
        %v3082 = vmul.f32 %v3074, %v2988
        %v3083 = vmul.f32 %v3075, %v3003
        %v3084 = vmul.f32 %v3076, %v3018
        %v3085 = vmul.f32 %v3077, %v3033
        %v3086 = vmul.f32 %v3078, %v3048
        %v3087 = vmul.f32 %v3079, %v3063
        %v3088 = vadd.f32 %v3080, 1.4214138
        %v3089 = vadd.f32 %v3081, 1.4214138
        %v3090 = vadd.f32 %v3082, 1.4214138
        %v3091 = vadd.f32 %v3083, 1.4214138
        %v3092 = vadd.f32 %v3084, 1.4214138
        %v3093 = vadd.f32 %v3085, 1.4214138
        %v3094 = vadd.f32 %v3086, 1.4214138
        %v3095 = vadd.f32 %v3087, 1.4214138
        %v3096 = vmul.f32 %v3088, %v2958
        %v3097 = vmul.f32 %v3089, %v2973
        %v3098 = vmul.f32 %v3090, %v2988
        %v3099 = vmul.f32 %v3091, %v3003
        %v3100 = vmul.f32 %v3092, %v3018
        %v3101 = vmul.f32 %v3093, %v3033
        %v3102 = vmul.f32 %v3094, %v3048
        %v3103 = vmul.f32 %v3095, %v3063
        %v3104 = vadd.f32 %v3096, -0.28449672
        %v3105 = vadd.f32 %v3097, -0.28449672
        %v3106 = vadd.f32 %v3098, -0.28449672
        %v3107 = vadd.f32 %v3099, -0.28449672
        %v3108 = vadd.f32 %v3100, -0.28449672
        %v3109 = vadd.f32 %v3101, -0.28449672
        %v3110 = vadd.f32 %v3102, -0.28449672
        %v3111 = vadd.f32 %v3103, -0.28449672
        %v3112 = vmul.f32 %v3104, %v2958
        %v3113 = vmul.f32 %v3105, %v2973
        %v3114 = vmul.f32 %v3106, %v2988
        %v3115 = vmul.f32 %v3107, %v3003
        %v3116 = vmul.f32 %v3108, %v3018
        %v3117 = vmul.f32 %v3109, %v3033
        %v3118 = vmul.f32 %v3110, %v3048
        %v3119 = vmul.f32 %v3111, %v3063
        %v3120 = vadd.f32 %v3112, 0.2548296
        %v3121 = vadd.f32 %v3113, 0.2548296
        %v3122 = vadd.f32 %v3114, 0.2548296
        %v3123 = vadd.f32 %v3115, 0.2548296
        %v3124 = vadd.f32 %v3116, 0.2548296
        %v3125 = vadd.f32 %v3117, 0.2548296
        %v3126 = vadd.f32 %v3118, 0.2548296
        %v3127 = vadd.f32 %v3119, 0.2548296
        %v3128 = vmul.f32 %v3120, %v2958
        %v3129 = vmul.f32 %v3121, %v2973
        %v3130 = vmul.f32 %v3122, %v2988
        %v3131 = vmul.f32 %v3123, %v3003
        %v3132 = vmul.f32 %v3124, %v3018
        %v3133 = vmul.f32 %v3125, %v3033
        %v3134 = vmul.f32 %v3126, %v3048
        %v3135 = vmul.f32 %v3127, %v3063
        %v3136 = vsub.f32 0.0, %v2920
        %v3137 = vsub.f32 0.0, %v2921
        %v3138 = vsub.f32 0.0, %v2922
        %v3139 = vsub.f32 0.0, %v2923
        %v3140 = vsub.f32 0.0, %v2924
        %v3141 = vsub.f32 0.0, %v2925
        %v3142 = vsub.f32 0.0, %v2926
        %v3143 = vsub.f32 0.0, %v2927
        %v3144 = vmul.f32 %v3136, %v2920
        %v3145 = vmul.f32 %v3137, %v2921
        %v3146 = vmul.f32 %v3138, %v2922
        %v3147 = vmul.f32 %v3139, %v2923
        %v3148 = vmul.f32 %v3140, %v2924
        %v3149 = vmul.f32 %v3141, %v2925
        %v3150 = vmul.f32 %v3142, %v2926
        %v3151 = vmul.f32 %v3143, %v2927
        %v3152 = vmul.f32 %v3144, 1.442695
        %v3153 = vpow.pop %v3152
        %v3154 = vmul.f32 %v3145, 1.442695
        %v3155 = vpow.pop %v3154
        %v3156 = vmul.f32 %v3146, 1.442695
        %v3157 = vpow.pop %v3156
        %v3158 = vmul.f32 %v3147, 1.442695
        %v3159 = vpow.pop %v3158
        %v3160 = vmul.f32 %v3148, 1.442695
        %v3161 = vpow.pop %v3160
        %v3162 = vmul.f32 %v3149, 1.442695
        %v3163 = vpow.pop %v3162
        %v3164 = vmul.f32 %v3150, 1.442695
        %v3165 = vpow.pop %v3164
        %v3166 = vmul.f32 %v3151, 1.442695
        %v3167 = vpow.pop %v3166
        %v3168 = vmul.f32 %v3128, %v3153
        %v3169 = vmul.f32 %v3129, %v3155
        %v3170 = vmul.f32 %v3130, %v3157
        %v3171 = vmul.f32 %v3131, %v3159
        %v3172 = vmul.f32 %v3132, %v3161
        %v3173 = vmul.f32 %v3133, %v3163
        %v3174 = vmul.f32 %v3134, %v3165
        %v3175 = vmul.f32 %v3135, %v3167
        %v3176 = vsub.f32 1.0, %v3168
        %v3177 = vsub.f32 1.0, %v3169
        %v3178 = vsub.f32 1.0, %v3170
        %v3179 = vsub.f32 1.0, %v3171
        %v3180 = vsub.f32 1.0, %v3172
        %v3181 = vsub.f32 1.0, %v3173
        %v3182 = vsub.f32 1.0, %v3174
        %v3183 = vsub.f32 1.0, %v3175
        %vm3184 = vcmp.ge.f32.partialorder %v2912, 0.0
        %vm3185 = vcmp.ge.f32.partialorder %v2913, 0.0
        %vm3186 = vcmp.ge.f32.partialorder %v2914, 0.0
        %vm3187 = vcmp.ge.f32.partialorder %v2915, 0.0
        %vm3188 = vcmp.ge.f32.partialorder %v2916, 0.0
        %vm3189 = vcmp.ge.f32.partialorder %v2917, 0.0
        %vm3190 = vcmp.ge.f32.partialorder %v2918, 0.0
        %vm3191 = vcmp.ge.f32.partialorder %v2919, 0.0
        %v3192 = vsub.f32 0.0, %v3176
        %v3193 = vsub.f32 0.0, %v3177
        %v3194 = vsub.f32 0.0, %v3178
        %v3195 = vsub.f32 0.0, %v3179
        %v3196 = vsub.f32 0.0, %v3180
        %v3197 = vsub.f32 0.0, %v3181
        %v3198 = vsub.f32 0.0, %v3182
        %v3199 = vsub.f32 0.0, %v3183
        %v3200 = vsel %vm3184, %v3176, %v3192
        %v3201 = vsel %vm3185, %v3177, %v3193
        %v3202 = vsel %vm3186, %v3178, %v3194
        %v3203 = vsel %vm3187, %v3179, %v3195
        %v3204 = vsel %vm3188, %v3180, %v3196
        %v3205 = vsel %vm3189, %v3181, %v3197
        %v3206 = vsel %vm3190, %v3182, %v3198
        %v3207 = vsel %vm3191, %v3183, %v3199
        %v3208 = vadd.f32 %v3200, 1.0
        %v3209 = vadd.f32 %v3201, 1.0
        %v3210 = vadd.f32 %v3202, 1.0
        %v3211 = vadd.f32 %v3203, 1.0
        %v3212 = vadd.f32 %v3204, 1.0
        %v3213 = vadd.f32 %v3205, 1.0
        %v3214 = vadd.f32 %v3206, 1.0
        %v3215 = vadd.f32 %v3207, 1.0
        %v3216 = vmul.f32 %v2904, %v3208
        %v3217 = vmul.f32 %v2905, %v3209
        %v3218 = vmul.f32 %v2906, %v3210
        %v3219 = vmul.f32 %v2907, %v3211
        %v3220 = vmul.f32 %v2908, %v3212
        %v3221 = vmul.f32 %v2909, %v3213
        %v3222 = vmul.f32 %v2910, %v3214
        %v3223 = vmul.f32 %v2911, %v3215
        %s3224 = scalar_lea.vmem %s10, 256
        %v3225 = vld [vmem:[%s3224] sm:$0xff]
        %v3226 = vld [vmem:[%s3224 + $0x8] sm:$0xff]
        %v3227 = vld [vmem:[%s3224 + $0x10] sm:$0xff]
        %v3228 = vld [vmem:[%s3224 + $0x18] sm:$0xff]
        %v3229 = vld [vmem:[%s3224 + $0x20] sm:$0xff]
        %v3230 = vld [vmem:[%s3224 + $0x28] sm:$0xff]
        %v3231 = vld [vmem:[%s3224 + $0x30] sm:$0xff]
        %v3232 = vld [vmem:[%s3224 + $0x38] sm:$0xff]
        %v3233 = vld [vmem:[%s3224 + $0x40] sm:$0xff]
        %v3234 = vld [vmem:[%s3224 + $0x48] sm:$0xff]
        %v3235 = vld [vmem:[%s3224 + $0x50] sm:$0xff]
        %v3236 = vld [vmem:[%s3224 + $0x58] sm:$0xff]
        %v3237 = vld [vmem:[%s3224 + $0x60] sm:$0xff]
        %v3238 = vld [vmem:[%s3224 + $0x68] sm:$0xff]
        %v3239 = vld [vmem:[%s3224 + $0x70] sm:$0xff]
        %v3240 = vld [vmem:[%s3224 + $0x78] sm:$0xff]
        %v3241 = vld [vmem:[%s3224 + $0x80] sm:$0xff]
        %v3242 = vld [vmem:[%s3224 + $0x88] sm:$0xff]
        %v3243 = vld [vmem:[%s3224 + $0x90] sm:$0xff]
        %v3244 = vld [vmem:[%s3224 + $0x98] sm:$0xff]
        %v3245 = vld [vmem:[%s3224 + $0xa0] sm:$0xff]
        %v3246 = vld [vmem:[%s3224 + $0xa8] sm:$0xff]
        %v3247 = vld [vmem:[%s3224 + $0xb0] sm:$0xff]
        %v3248 = vld [vmem:[%s3224 + $0xb8] sm:$0xff]
        %v3249 = vld [vmem:[%s3224 + $0xc0] sm:$0xff]
        %v3250 = vld [vmem:[%s3224 + $0xc8] sm:$0xff]
        %v3251 = vld [vmem:[%s3224 + $0xd0] sm:$0xff]
        %v3252 = vld [vmem:[%s3224 + $0xd8] sm:$0xff]
        %v3253 = vld [vmem:[%s3224 + $0xe0] sm:$0xff]
        %v3254 = vld [vmem:[%s3224 + $0xe8] sm:$0xff]
        %v3255 = vld [vmem:[%s3224 + $0xf0] sm:$0xff]
        %v3256 = vld [vmem:[%s3224 + $0xf8] sm:$0xff]
        %s3257 = scalar_lea.vmem %s11, 1
        %v3258 = vld [vmem:[%s3257] sm:$0x1]
        %v3260 = vperm.slane %v3258, 0
        %3262 = vmatpush.msra.mxu0 %v3240
        %3263 = vmatpush.msra.mxu0 %v3239
        %3264 = vmatpush.msra.mxu0 %v3238
        %3265 = vmatpush.msra.mxu0 %v3237
        %3266 = vmatpush.msra.mxu0 %v3236
        %3267 = vmatpush.msra.mxu0 %v3235
        %3268 = vmatpush.msra.mxu0 %v3234
        %3269 = vmatpush.msra.mxu0 %v3233
        %3270 = vmatpush.msra.mxu0 %v3232
        %3271 = vmatpush.msra.mxu0 %v3231
        %3272 = vmatpush.msra.mxu0 %v3230
        %3273 = vmatpush.msra.mxu0 %v3229
        %3274 = vmatpush.msra.mxu0 %v3228
        %3275 = vmatpush.msra.mxu0 %v3227
        %3276 = vmatpush.msra.mxu0 %v3226
        %3277 = vmatpush.msra.mxu0 %v3225
        %3278 = vmatmul.f32.gmra.mxu0 %v3216
        %v3279 = vpop.f32.mrf.mxu0
        %v3280 = vadd.f32 %v3260, %v3279
        %3281 = vmatmul.f32.gmra.mxu0 %v3218
        %v3282 = vpop.f32.mrf.mxu0
        %v3283 = vadd.f32 %v3260, %v3282
        %3284 = vmatmul.f32.gmra.mxu0 %v3220
        %v3285 = vpop.f32.mrf.mxu0
        %v3286 = vadd.f32 %v3260, %v3285
        %3287 = vmatmul.f32.gmra.mxu0 %v3222
        %v3288 = vpop.f32.mrf.mxu0
        %v3289 = vadd.f32 %v3260, %v3288
        %3290 = vdwg.mxu0
        %3291 = vmatpush.msra.mxu0 %v3256
        %3292 = vmatpush.msra.mxu0 %v3255
        %3293 = vmatpush.msra.mxu0 %v3254
        %3294 = vmatpush.msra.mxu0 %v3253
        %3295 = vmatpush.msra.mxu0 %v3252
        %3296 = vmatpush.msra.mxu0 %v3251
        %3297 = vmatpush.msra.mxu0 %v3250
        %3298 = vmatpush.msra.mxu0 %v3249
        %3299 = vmatpush.msra.mxu0 %v3248
        %3300 = vmatpush.msra.mxu0 %v3247
        %3301 = vmatpush.msra.mxu0 %v3246
        %3302 = vmatpush.msra.mxu0 %v3245
        %3303 = vmatpush.msra.mxu0 %v3244
        %3304 = vmatpush.msra.mxu0 %v3243
        %3305 = vmatpush.msra.mxu0 %v3242
        %3306 = vmatpush.msra.mxu0 %v3241
        %3307 = vmatmul.f32.gmra.mxu0 %v3217
        %v3308 = vpop.f32.mrf.mxu0
        %v3309 = vadd.f32 %v3280, %v3308
        %3310 = vmatmul.f32.gmra.mxu0 %v3219
        %v3311 = vpop.f32.mrf.mxu0
        %v3312 = vadd.f32 %v3283, %v3311
        %3313 = vmatmul.f32.gmra.mxu0 %v3221
        %v3314 = vpop.f32.mrf.mxu0
        %v3315 = vadd.f32 %v3286, %v3314
        %3316 = vmatmul.f32.gmra.mxu0 %v3223
        %v3317 = vpop.f32.mrf.mxu0
        %v3318 = vadd.f32 %v3289, %v3317
        %3319 = vdwg.mxu0
        %v3320 = vadd.f32 %v3309, %v2806
        %v3321 = vadd.f32 %v3312, %v2807
        %v3322 = vadd.f32 %v3315, %v2808
        %v3323 = vadd.f32 %v3318, %v2809
        %s3324 = scalar_lea.vmem %s12, 1
        %v3325 = vld [vmem:[%s3324] sm:$0x1]
        %s3326 = scalar_lea.vmem [#allocation10], 1
        %v3327 = vld [vmem:[%s3326] sm:$0x1]
        %v3328 = vsel %vm604, %v3320, 0.0
        %3329 = vadd.xlane.f32.xlu0 %v3328
        %v3330 = vpop.xlane.xlu0 %3329
        %v3331 = vsel %vm604, %v3321, 0.0
        %3332 = vadd.xlane.f32.xlu0 %v3331
        %v3333 = vpop.xlane.xlu0 %3332
        %v3334 = vsel %vm604, %v3322, 0.0
        %3335 = vadd.xlane.f32.xlu0 %v3334
        %v3336 = vpop.xlane.xlu0 %3335
        %v3337 = vsel %vm604, %v3323, 0.0
        %3338 = vadd.xlane.f32.xlu0 %v3337
        %v3339 = vpop.xlane.xlu0 %3338
        %v3340 = vmul.f32 %v3330, %v1298
        %v3341 = vmul.f32 %v3333, %v1298
        %v3342 = vmul.f32 %v3336, %v1298
        %v3343 = vmul.f32 %v3339, %v1298
        %v3344 = vsub.f32 %v3320, %v3340
        %v3345 = vsub.f32 %v3321, %v3341
        %v3346 = vsub.f32 %v3322, %v3342
        %v3347 = vsub.f32 %v3323, %v3343
        %v3348 = vmul.f32 %v3344, %v3344
        %v3349 = vmul.f32 %v3345, %v3345
        %v3350 = vmul.f32 %v3346, %v3346
        %v3351 = vmul.f32 %v3347, %v3347
        %v3352 = vsel %vm604, %v3348, 0.0
        %3353 = vadd.xlane.f32.xlu0 %v3352
        %v3354 = vpop.xlane.xlu0 %3353
        %v3355 = vsel %vm604, %v3349, 0.0
        %3356 = vadd.xlane.f32.xlu0 %v3355
        %v3357 = vpop.xlane.xlu0 %3356
        %v3358 = vsel %vm604, %v3350, 0.0
        %3359 = vadd.xlane.f32.xlu0 %v3358
        %v3360 = vpop.xlane.xlu0 %3359
        %v3361 = vsel %vm604, %v3351, 0.0
        %3362 = vadd.xlane.f32.xlu0 %v3361
        %v3363 = vpop.xlane.xlu0 %3362
        %v3364 = vmul.f32 %v3354, %v1298
        %v3365 = vmul.f32 %v3357, %v1298
        %v3366 = vmul.f32 %v3360, %v1298
        %v3367 = vmul.f32 %v3363, %v1298
        %v3368 = vadd.f32 %v3364, 1e-12
        %v3369 = vadd.f32 %v3365, 1e-12
        %v3370 = vadd.f32 %v3366, 1e-12
        %v3371 = vadd.f32 %v3367, 1e-12
        %v3372 = vrsqrt.pop %v3368
        %v3373 = vmul.f32 %v3372, %v3368
        %v3374 = vmul.f32 %v3373, %v3372
        %v3375 = vmul.f32 0.5, %v3374
        %v3376 = vsub.f32 1.5, %v3375
        %v3377 = vmul.f32 %v3372, %v3376
        %vm3378 = vweird.f32 %v3368
        %vm3379 = vweird.f32 %v3372
        %vm3380 = vmor %vm3378, %vm3379
        %v3381 = vsel %vm3380, %v3372, %v3377
        %v3382 = vrsqrt.pop %v3369
        %v3383 = vmul.f32 %v3382, %v3369
        %v3384 = vmul.f32 %v3383, %v3382
        %v3385 = vmul.f32 0.5, %v3384
        %v3386 = vsub.f32 1.5, %v3385
        %v3387 = vmul.f32 %v3382, %v3386
        %vm3388 = vweird.f32 %v3369
        %vm3389 = vweird.f32 %v3382
        %vm3390 = vmor %vm3388, %vm3389
        %v3391 = vsel %vm3390, %v3382, %v3387
        %v3392 = vrsqrt.pop %v3370
        %v3393 = vmul.f32 %v3392, %v3370
        %v3394 = vmul.f32 %v3393, %v3392
        %v3395 = vmul.f32 0.5, %v3394
        %v3396 = vsub.f32 1.5, %v3395
        %v3397 = vmul.f32 %v3392, %v3396
        %vm3398 = vweird.f32 %v3370
        %vm3399 = vweird.f32 %v3392
        %vm3400 = vmor %vm3398, %vm3399
        %v3401 = vsel %vm3400, %v3392, %v3397
        %v3402 = vrsqrt.pop %v3371
        %v3403 = vmul.f32 %v3402, %v3371
        %v3404 = vmul.f32 %v3403, %v3402
        %v3405 = vmul.f32 0.5, %v3404
        %v3406 = vsub.f32 1.5, %v3405
        %v3407 = vmul.f32 %v3402, %v3406
        %vm3408 = vweird.f32 %v3371
        %vm3409 = vweird.f32 %v3402
        %vm3410 = vmor %vm3408, %vm3409
        %v3411 = vsel %vm3410, %v3402, %v3407
        %v3412 = vmul.f32 %v3344, %v3381
        %v3413 = vmul.f32 %v3345, %v3391
        %v3414 = vmul.f32 %v3346, %v3401
        %v3415 = vmul.f32 %v3347, %v3411
        %v3417 = vperm.slane %v3325, 0
        %v3419 = vmul.f32 %v3412, %v3417
        %v3420 = vmul.f32 %v3413, %v3417
        %v3421 = vmul.f32 %v3414, %v3417
        %v3422 = vmul.f32 %v3415, %v3417
        %v3424 = vperm.slane %v3327, 0
        %v3426 = vadd.f32 %v3419, %v3424
        %v3427 = vadd.f32 %v3420, %v3424
        %v3428 = vadd.f32 %v3421, %v3424
        %v3429 = vadd.f32 %v3422, %v3424
        %s3430 = scalar_lea.vmem %s560, 32 [#allocation11]
        %3431 = vst.msk [vmem:[%s3430] sm:$0xff] %vm604, %v3426
        %3432 = vst.msk [vmem:[%s3430 + $0x8] sm:$0xff] %vm604, %v3427
        %3433 = vst.msk [vmem:[%s3430 + $0x10] sm:$0xff] %vm604, %v3428
        %3434 = vst.msk [vmem:[%s3430 + $0x18] sm:$0xff] %vm604, %v3429
        %s3435 = sand.u32 %s343, 1
        %s3436 = scalar_lea.sflag [#allocation4], %s3435
        %s3437 = sand.u32 %s343, 1
        %s3438 = smul.addr %s3437, 64
        %s3439 = scalar_lea.vmem [#allocation11], %s3438
        // Predicated region
        $region97: #{tpu_custom_call.1} parent=75 // pred_check
          %p3440 = pneg %p353
        $region98: #{tpu_custom_call.1} parent=75 // pred_check_branch
          %3442 = sbr.rel (%p3440) target = $region100
        $region99: #{tpu_custom_call.1} parent=75 // pred_region
          #allocation13 [shape = 'u32[6]{0}', space=smem, size = 0x18, scoped, tag = 'DMA stride descriptor']
          %s3443 = smul.u32 4, %s31
          %3445 = vsyncadd %s3436, 0
          %s3446 = smul.addr %s3443, 8
          %s3447 = scalar_lea.hbm %s14, %s3446
          %s3449 = sshll.u32 1, 14
          %s3450 = sxor.u32 4294967295, %s3449
          %s3453 = sshll.u32 7, 18
          %s3454 = sxor.u32 4294967295, %s3453
          %s3455 = sand.u32 0, %s3454
          %s3457 = sor.u32 %s3455, 0
          %s3458 = sshll.u32 %s3439, 4
          %s3459 = int_to_ptr.vmem [resolvable:$true] %s3458
          %s3460 = sshll.u32 %s3447, 4
          %s3461 = int_to_ptr.hbm [resolvable:$true] %s3460
          %3467 = sst [smem:[#allocation13]] 512
          %s3468 = scalar_lea.smem [#allocation13], 1
          %3469 = sst [smem:[%s3468]] 1024
          %s3470 = scalar_lea.smem [#allocation13], 2
          %3471 = sst [smem:[%s3470]] 4
          %s3472 = scalar_lea.smem [#allocation13], 3
          %3473 = sst [smem:[%s3472]] 128
          %s3474 = scalar_lea.smem [#allocation13], 4
          %3475 = sst [smem:[%s3474]] 128
          %s3476 = scalar_lea.smem [#allocation13], 5
          %3477 = sst [smem:[%s3476]] 8
          %3479 = dma.general %s3459, 1024, %s3461, %s3436, [#allocation12], [#allocation13], %s3457, 0
        $region100: #{tpu_custom_call.1} parent=75 // pred_fallthru
          _
      $region76: #{tpu_custom_call.1} parent=5 // pred_fallthru
        _
      %p3480 = scmp.le.s32.totalorder 2, %s26
      // Predicated region
      $region101: #{tpu_custom_call.1} parent=5 // pred_check
        %p3481 = pneg %p3480
      $region102: #{tpu_custom_call.1} parent=5 // pred_check_branch
        %3483 = sbr.rel (%p3481) target = $region104
      $region103: #{tpu_custom_call.1} parent=5 // pred_region
        %s3484 = ssub.s32 %s26, 2
        // Predicated region
        $region105: #{tpu_custom_call.1} parent=103 // pred_check
          %p3485 = pneg %p359
        $region106: #{tpu_custom_call.1} parent=103 // pred_check_branch
          %3487 = sbr.rel (%p3485) target = $region108
        $region107: #{tpu_custom_call.1} parent=103 // pred_region
          %s3488 = sand.u32 %s344, 1
          %s3489 = scalar_lea.sflag [#allocation4], %s3488
          %s3490 = sand.u32 %s344, 1
          %s3491 = smul.addr %s3490, 64
          %s3492 = scalar_lea.vmem [#allocation11], %s3491
          %3494 = dma.done %s3489, 1024
        $region108: #{tpu_custom_call.1} parent=103 // pred_fallthru
          _
      $region104: #{tpu_custom_call.1} parent=5 // pred_fallthru
        _
    $region6: #{tpu_custom_call.1} parent=1 // loop_footer
      %s30 = sadd.s32 1, %s26
    $region7: #{tpu_custom_call.1} parent=1 // loop_footer_branch
      %25 = sbr.rel target = $region3
    $region8: #{tpu_custom_call.1} parent=1 // loop_exit
      _
    %3495 = vsyncpa [#allocation3], 1
    %s3496 = scalar_lea.sflag [#allocation3], 1
    %3497 = vsyncpa %s3496, 1
    %3498 = vsyncpa [#allocation6], 1
    %3499 = vsyncpa [#allocation9], 1
    %3500 = vsyncpa [#allocation4], 1
    %s3501 = scalar_lea.sflag [#allocation4], 1
    %3502 = vsyncpa %s3501, 1

</llo_original>
